<compile_context>
chip_gen: v5e
topology: v5e:2x2
jax: 0.10.0
libtpu: 0.0.40
codegen_flags: <defaults>
</compile_context>

<pallas_src>
import functools
import math

import jax
import jax.numpy as jnp
from jax.experimental import pallas as pl
from jax.experimental.pallas import tpu as pltpu


def _fmha_kernel(*refs, inv_temp, has_mask):
    if has_mask:
        s_ref, m_ref, v_ref, w_ref, b_ref, out_ref, asum_ref = refs
    else:
        s_ref, v_ref, w_ref, b_ref, out_ref, asum_ref = refs
        m_ref = None

    f32 = jnp.float32
    g = pl.program_id(1)                          # head-group index (reduction axis)

    # TODO(synk): TempSoftmax is not defined in attention_moduls.py; implemented as
    # softmax(S / temp) over the last dim (deterministic inference path, no dropout).
    s = s_ref[...].astype(f32) * inv_temp         # (P, Bb, T, T)
    if has_mask:
        # mask stays at its natural shape: (T, T) shared (broadcasts) or full block
        s = jnp.where(m_ref[...] != 0, -jnp.inf, s)

    # numerically-stable temperature softmax over the last (lane) dim
    s_max = jnp.max(s, axis=-1, keepdims=True)
    e = jnp.exp(s - s_max)
    denom = jnp.sum(e, axis=-1, keepdims=True)
    a = e * pl.reciprocal(denom, approx=True)     # divide on the EUP slot

    P, Bb, T, _ = a.shape
    v = v_ref[...]                                # (P, Bb, T, H) bf16
    H = v.shape[-1]

    # per-head attention output: bf16 probabilities on the MXU, f32 accumulation
    av = jnp.einsum('btk,bkh->bth',
                    a.reshape(P * Bb, T, T).astype(v.dtype),
                    v.reshape(P * Bb, T, H),
                    preferred_element_type=f32).reshape(P, Bb, T, H)

    # head group g's share of concat([head_0 .. head_{NH-1}]) @ W_prj:
    # concat the P heads along the hidden (lane) dim -> one K = P*H matmul.
    if P > 1:
        cat = jnp.concatenate([av[i] for i in range(P)], axis=-1)   # (Bb, T, P*H)
    else:
        cat = av[0]
    w = w_ref[g]                                  # (P*H, Hout); W is fully resident
    contrib = jnp.dot(cat.reshape(Bb * T, P * H), w,
                      preferred_element_type=f32).reshape(Bb, T, -1)

    @pl.when(g == 0)
    def _init():
        out_ref[...] = jnp.zeros_like(out_ref)
        asum_ref[...] = jnp.zeros_like(asum_ref)

    asum_ref[...] += jnp.sum(a, axis=0)           # sum of A over the heads in the group
    out_ref[...] += contrib

    @pl.when(g == pl.num_programs(1) - 1)
    def _finalize():
        bias = b_ref[...][None]                   # (1, 1, Hout)
        out_ref[...] = jnp.maximum(out_ref[...] + bias, 0.0)   # Linear bias + ReLU


def _tpu_vmem_capacity_bytes():
    try:
        cap = getattr(pltpu.get_tpu_info(), "vmem_capacity_bytes", None)
        if cap:
            return int(cap)
    except Exception:
        pass
    return 64 * 1024 * 1024                       # conservative fallback (v7x per-TC)


def _pick_batch_block(batch, T, H, Hout, hps, full_mask, budget_bytes):
    # per-batch-row VMEM bytes at one grid step: double-buffered bf16 S/V streams,
    # int8 mask (only if per-row), resident f32 accumulators, rough intermediates.
    per_row = (
        2 * hps * T * T * 2                    # S blocks (x2 buffers, bf16)
        + 2 * hps * T * H * 2                  # V blocks
        + (2 * hps * T * T if full_mask else 0)  # int8 mask blocks
        + 2 * T * Hout * 4                     # resident projected output
        + 2 * T * T * 4                        # resident A-sum accumulator
        + hps * T * T * 4 * 3                  # softmax intermediates (s, e, a)
        + hps * T * H * 4 * 2                  # av / cat intermediates
    )
    cap = max(1, budget_bytes // per_row)
    # keep >= 2 batch blocks so the "parallel" axis can shard across v7x's 2 TCs
    hard = max(1, min(cap, batch // 2 if batch >= 2 else 1, 256))
    # prefer a block that divides batch (avoids a padded HBM copy); else pad
    div = next((d for d in range(hard, 0, -1) if batch % d == 0), 1)
    return div if 2 * div >= hard else hard


def feature_mha_forward(S, V, params, *, n_head, batch_size, temp=1.0,
                        att_mask=None, b_blk=None, heads_per_step=None,
                        stream_dtype=jnp.bfloat16):
    NH, B = int(n_head), int(batch_size)
    NHB, T, Tk = S.shape
    assert Tk == T and NHB == NH * B, (S.shape, NH, B)
    H = V.shape[-1]
    NHH, Hout = params['w_prj'].shape
    assert NHH == NH * H

    # heads per grid step: 2 feeds the 256-wide MXU (v6e/v7x) and halves grid steps
    P = heads_per_step if heads_per_step is not None else (2 if NH % 2 == 0 else 1)
    P = max(1, min(int(P), NH))
    assert NH % P == 0, (NH, P)

    # ---- mask: natural broadcast shape, int8, resident when shared -------------
    has_mask = att_mask is not None
    mask_shared = False
    m_op = None
    if has_mask:
        m = jnp.asarray(att_mask)
        if m.ndim == 2 and m.shape == (T, T):
            mask_shared = True
        elif m.ndim == 3 and m.shape[0] == 1 and m.shape[1:] == (T, T):
            m = m[0]
            mask_shared = True
        else:
            m = jnp.broadcast_to(m, (NH * B, T, T))
        m_op = (m != 0).astype(jnp.int8)

    # ---- generation-aware VMEM budget + batch block -----------------------------
    vmem_cap = _tpu_vmem_capacity_bytes()
    budget = min(int(vmem_cap * 0.6), 96 * 1024 * 1024)
    Bb = b_blk if b_blk is not None else _pick_batch_block(
        B, T, H, Hout, P, has_mask and not mask_shared, budget)
    Bb = max(1, min(int(Bb), B))
    Bpad = pl.cdiv(B, Bb) * Bb

    def to_blocks(x, dtype):            # (NH*B, T, D) -> (NH, Bpad, T, D), head-major
        if x.dtype != dtype:
            x = x.astype(dtype)
        x = x.reshape(NH, B, T, x.shape[-1])
        if Bpad != B:
            x = jnp.pad(x, ((0, 0), (0, Bpad - B), (0, 0), (0, 0)))
        return x

    S4 = to_blocks(S, stream_dtype)
    V4 = to_blocks(V, stream_dtype)
    W3 = params['w_prj'].astype(jnp.float32).reshape(NH // P, P * H, Hout)
    b2 = params['b_prj'].astype(jnp.float32).reshape(1, Hout)

    operands = [S4]
    in_specs = [pl.BlockSpec((P, Bb, T, T), lambda i, g: (g, i, 0, 0))]        # S
    if has_mask:
        if mask_shared:
            operands.append(m_op)                                              # (T,T) int8
            in_specs.append(pl.BlockSpec((T, T), lambda i, g: (0, 0)))         # resident
        else:
            operands.append(to_blocks(m_op, jnp.int8))
            in_specs.append(pl.BlockSpec((P, Bb, T, T), lambda i, g: (g, i, 0, 0)))
    operands += [V4, W3, b2]
    in_specs += [
        pl.BlockSpec((P, Bb, T, H), lambda i, g: (g, i, 0, 0)),                # V
        pl.BlockSpec((NH // P, P * H, Hout), lambda i, g: (0, 0, 0)),          # W resident
        pl.BlockSpec((1, Hout), lambda i, g: (0, 0)),                          # bias resident
    ]
    out_specs = [
        pl.BlockSpec((Bb, T, Hout), lambda i, g: (i, 0, 0)),   # projected out (acc over g)
        pl.BlockSpec((Bb, T, T), lambda i, g: (i, 0, 0)),      # sum_h A (acc over g)
    ]
    out_shape = [
        jax.ShapeDtypeStruct((Bpad, T, Hout), jnp.float32),
        jax.ShapeDtypeStruct((Bpad, T, T), jnp.float32),
    ]

    # advisory cost estimate for XLA scheduling around a long, mem-bound call
    s_bytes = NH * B * T * T * S4.dtype.itemsize
    v_bytes = NH * B * T * H * V4.dtype.itemsize
    m_bytes = 0 if not has_mask else (T * T if mask_shared else NH * B * T * T)
    cost = pl.CostEstimate(
        flops=2 * NH * B * T * T * H + 2 * B * T * NH * H * Hout,
        transcendentals=NH * B * T * T,
        bytes_accessed=s_bytes + v_bytes + m_bytes + NH * H * Hout * 4
                       + B * T * Hout * 4 + B * T * T * 4)

    kernel = functools.partial(_fmha_kernel, inv_temp=1.0 / float(temp),
                               has_mask=has_mask)
    out_p, asum_p = pl.pallas_call(
        kernel,
        out_shape=out_shape,
        grid_spec=pltpu.PrefetchScalarGridSpec(
            num_scalar_prefetch=0,
            grid=(Bpad // Bb, NH // P),                 # head-group (reduction) axis last
            in_specs=in_specs,
            out_specs=out_specs),
        compiler_params=pltpu.CompilerParams(
            dimension_semantics=("parallel", "arbitrary"),
            vmem_limit_bytes=int(min(vmem_cap * 0.9, budget + (16 << 20)))),
        cost_estimate=cost,
    )(*operands)

    out = out_p[:B]
    asum = asum_p[:B]
    if T == 1:                       # mirror torch's .squeeze() on the bmm result
        out = out[:, 0, :]
    return out, asum


def init_params(key, n_head, hidden_dim):
    """nn.Linear(n_head*hidden, hidden) default init; weight stored transposed
    (in_features, out_features) so the kernel computes x @ W."""
    in_f = n_head * hidden_dim
    bound = 1.0 / math.sqrt(in_f)
    kw, kb = jax.random.split(key)
    return {
        'w_prj': jax.random.uniform(kw, (in_f, hidden_dim), jnp.float32, -bound, bound),
        'b_prj': jax.random.uniform(kb, (1, hidden_dim), jnp.float32, -bound, bound),
    }


def reference_forward(S, V, params, *, n_head, batch_size, temp=1.0, att_mask=None):
    """Pure-JAX (f32) mirror of the PyTorch forward (sanity check)."""
    NH, B = n_head, batch_size
    T = S.shape[1]
    H = V.shape[-1]
    s = S.astype(jnp.float32)
    if att_mask is not None:
        s = jnp.where(jnp.broadcast_to(att_mask != 0, S.shape), -jnp.inf, s)
    A = jax.nn.softmax(s / temp, axis=-1)
    av = jnp.einsum('ntk,nkh->nth', A, V.astype(jnp.float32))
    cat = jnp.transpose(av.reshape(NH, B, T, H), (1, 2, 0, 3)).reshape(B, T, NH * H)
    out = jnp.maximum(cat @ params['w_prj'] + params['b_prj'], 0.0)
    if T == 1:
        out = out[:, 0, :]
    a_sum = A.reshape(NH, B, T, T).sum(axis=0)
    return out, a_sum


if __name__ == "__main__":
    NH, B, T, H = 4, 8, 128, 128      # n_head, batch, seq/feature length, hidden_dim
    temp = 0.8

    key = jax.random.PRNGKey(0)
    ks, kv, kp = jax.random.split(key, 3)
    S = jax.random.normal(ks, (NH * B, T, T), jnp.float32)
    V = jax.random.normal(kv, (NH * B, T, H), jnp.float32)
    # mask at its natural broadcast shape (T, T): strict upper triangle masked,
    # diagonal kept so no row is fully masked.
    att_mask = jnp.arange(T)[None, :] > jnp.arange(T)[:, None]
    params = init_params(kp, NH, H)

    out, a_sum = feature_mha_forward(S, V, params, n_head=NH, batch_size=B,
                                     temp=temp, att_mask=att_mask)
    out = jax.block_until_ready(out)
    a_sum = jax.block_until_ready(a_sum)

    ref_out, ref_asum = reference_forward(S, V, params, n_head=NH, batch_size=B,
                                          temp=temp, att_mask=att_mask)

    assert out.shape == (B, T, H), out.shape
    assert a_sum.shape == (B, T, T), a_sum.shape
    assert bool(jnp.allclose(jnp.sum(a_sum, axis=-1), float(NH), atol=5e-2))
    assert bool(jnp.allclose(a_sum, ref_asum, atol=3e-2, rtol=2e-2))
    assert bool(jnp.allclose(out, ref_out, atol=2e-2, rtol=5e-2))
    print("KERNEL_OK")
</pallas_src>

<mosaic_0001>
module attributes {stable_mosaic.version = 11 : i64} {
  func.func @_fmha_kernel(%arg0: i32, %arg1: i32, %arg2: memref<2x4x128x128xbf16, #tpu.memory_space<vmem>>, %arg3: memref<128x128xi8, #tpu.memory_space<vmem>>, %arg4: memref<2x4x128x128xbf16, #tpu.memory_space<vmem>>, %arg5: memref<2x256x128xf32, #tpu.memory_space<vmem>>, %arg6: memref<1x128xf32, #tpu.memory_space<vmem>>, %arg7: memref<4x128x128xf32, #tpu.memory_space<vmem>>, %arg8: memref<4x128x128xf32, #tpu.memory_space<vmem>>) attributes {dimension_semantics = [#tpu.dimension_semantics<parallel>, #tpu.dimension_semantics<arbitrary>], iteration_bounds = array<i64: 2, 2>, scalar_prefetch = 0 : i64, scratch_operands = 0 : i64, tpu.core_type = #tpu.core_type<tc>, window_params = [{transform_indices = @transform_0, window_bounds = array<i64: 2, 4, 128, 128>}, {pipeline_mode = #tpu.pipeline_mode<synchronous>, transform_indices = @transform_1, window_bounds = array<i64: 128, 128>}, {transform_indices = @transform_2, window_bounds = array<i64: 2, 4, 128, 128>}, {pipeline_mode = #tpu.pipeline_mode<synchronous>, transform_indices = @transform_3, window_bounds = array<i64: 2, 256, 128>}, {pipeline_mode = #tpu.pipeline_mode<synchronous>, transform_indices = @transform_4, window_bounds = array<i64: 1, 128>}, {transform_indices = @transform_5, window_bounds = array<i64: 4, 128, 128>}, {transform_indices = @transform_6, window_bounds = array<i64: 4, 128, 128>}]} {
    %c0 = arith.constant 0 : index
    %c0_0 = arith.constant 0 : index
    %c0_1 = arith.constant 0 : index
    %c0_2 = arith.constant 0 : index
    %0 = vector.load %arg2[%c0, %c0_0, %c0_1, %c0_2] : memref<2x4x128x128xbf16, #tpu.memory_space<vmem>>, vector<2x4x128x128xbf16>
    %1 = arith.extf %0 : vector<2x4x128x128xbf16> to vector<2x4x128x128xf32>
    %cst = arith.constant 1.250000e+00 : f32
    %2 = vector.broadcast %cst : f32 to vector<2x4x128x128xf32>
    %3 = arith.mulf %1, %2 : vector<2x4x128x128xf32>
    %c0_3 = arith.constant 0 : index
    %c0_4 = arith.constant 0 : index
    %4 = vector.load %arg3[%c0_3, %c0_4] : memref<128x128xi8, #tpu.memory_space<vmem>>, vector<128x128xi8>
    %c0_i8 = arith.constant 0 : i8
    %5 = vector.broadcast %c0_i8 : i8 to vector<128x128xi8>
    %6 = arith.cmpi ne, %4, %5 : vector<128x128xi8>
    %cst_5 = arith.constant 0xFF800000 : f32
    %7 = vector.shape_cast %6 : vector<128x128xi1> to vector<1x1x128x128xi1>
    %8 = vector.broadcast %7 : vector<1x1x128x128xi1> to vector<2x4x128x128xi1>
    %9 = vector.broadcast %cst_5 : f32 to vector<2x4x128x128xf32>
    %10 = arith.select %8, %9, %3 : vector<2x4x128x128xi1>, vector<2x4x128x128xf32>
    %cst_6 = arith.constant dense<0xFF800000> : vector<2x4x128xf32>
    %11 = vector.multi_reduction <maximumf>, %10, %cst_6 [3] : vector<2x4x128x128xf32> to vector<2x4x128xf32>
    %12 = vector.shape_cast %11 : vector<2x4x128xf32> to vector<2x4x128x1xf32>
    %13 = vector.broadcast %12 : vector<2x4x128x1xf32> to vector<2x4x128x128xf32>
    %14 = arith.subf %10, %13 : vector<2x4x128x128xf32>
    %15 = math.exp %14 : vector<2x4x128x128xf32>
    %cst_7 = arith.constant dense<0.000000e+00> : vector<2x4x128xf32>
    %16 = vector.multi_reduction <add>, %15, %cst_7 [3] : vector<2x4x128x128xf32> to vector<2x4x128xf32>
    %17 = vector.shape_cast %16 : vector<2x4x128xf32> to vector<2x4x128x1xf32>
    %18 = tpu.reciprocal %17 {approx = true} : vector<2x4x128x1xf32> -> vector<2x4x128x1xf32>
    %19 = vector.broadcast %18 : vector<2x4x128x1xf32> to vector<2x4x128x128xf32>
    %20 = arith.mulf %15, %19 : vector<2x4x128x128xf32>
    %c0_8 = arith.constant 0 : index
    %c0_9 = arith.constant 0 : index
    %c0_10 = arith.constant 0 : index
    %c0_11 = arith.constant 0 : index
    %21 = vector.load %arg4[%c0_8, %c0_9, %c0_10, %c0_11] : memref<2x4x128x128xbf16, #tpu.memory_space<vmem>>, vector<2x4x128x128xbf16>
    %22 = vector.shape_cast %20 : vector<2x4x128x128xf32> to vector<8x128x128xf32>
    %23 = arith.truncf %22 : vector<8x128x128xf32> to vector<8x128x128xbf16>
    %24 = vector.shape_cast %21 : vector<2x4x128x128xbf16> to vector<8x128x128xbf16>
    "tpu.trace_start"() <{level = 10 : i32, message = "btk,bkh->bth"}> : () -> ()
    %cst_12 = arith.constant dense<0.000000e+00> : vector<8x128x128xf32>
    %25 = tpu.matmul %23, %24, %cst_12 {dimension_numbers = #tpu.dot_dimension_numbers<[2], [1], [1], [2], [0, 0, 0, 1, 1, 2], [0], [0]>} : vector<8x128x128xbf16>, vector<8x128x128xbf16>, vector<8x128x128xf32> -> vector<8x128x128xf32>
    "tpu.trace_stop"() : () -> ()
    %26 = vector.shape_cast %25 : vector<8x128x128xf32> to vector<2x4x128x128xf32>
    %27 = vector.extract_strided_slice %26 {offsets = [0, 0, 0, 0], sizes = [1, 4, 128, 128], strides = [1, 1, 1, 1]} : vector<2x4x128x128xf32> to vector<1x4x128x128xf32>
    %28 = vector.shape_cast %27 : vector<1x4x128x128xf32> to vector<4x128x128xf32>
    %29 = vector.extract_strided_slice %26 {offsets = [1, 0, 0, 0], sizes = [1, 4, 128, 128], strides = [1, 1, 1, 1]} : vector<2x4x128x128xf32> to vector<1x4x128x128xf32>
    %30 = vector.shape_cast %29 : vector<1x4x128x128xf32> to vector<4x128x128xf32>
    %31 = tpu.concatenate %28, %30 in 2 : vector<4x128x128xf32>, vector<4x128x128xf32> -> vector<4x128x256xf32>
    %32 = arith.index_cast %arg1 : i32 to index
    %c0_13 = arith.constant 0 : index
    %c0_14 = arith.constant 0 : index
    %33 = vector.load %arg5[%32, %c0_13, %c0_14] : memref<2x256x128xf32, #tpu.memory_space<vmem>>, vector<1x256x128xf32>
    %34 = vector.shape_cast %33 : vector<1x256x128xf32> to vector<256x128xf32>
    %35 = vector.shape_cast %31 : vector<4x128x256xf32> to vector<512x256xf32>
    %cst_15 = arith.constant dense<0.000000e+00> : vector<512x128xf32>
    %36 = tpu.matmul %35, %34, %cst_15 {dimension_numbers = #tpu.dot_dimension_numbers<[1], [0], [0], [1], [0, 0, 1, 1], [], []>} : vector<512x256xf32>, vector<256x128xf32>, vector<512x128xf32> -> vector<512x128xf32>
    %37 = vector.shape_cast %36 : vector<512x128xf32> to vector<4x128x128xf32>
    %c0_i32 = arith.constant 0 : i32
    %38 = arith.cmpi eq, %arg1, %c0_i32 : i32
    %39 = arith.extui %38 : i1 to i32
    %c0_i32_16 = arith.constant 0 : i32
    %40 = arith.cmpi ne, %39, %c0_i32_16 : i32
    scf.if %40 {
      %cst_31 = arith.constant 0.000000e+00 : f32
      %51 = vector.broadcast %cst_31 : f32 to vector<4x128x128xf32>
      %c0_32 = arith.constant 0 : index
      %c0_33 = arith.constant 0 : index
      %c0_34 = arith.constant 0 : index
      %52 = vector.load %arg7[%c0_32, %c0_33, %c0_34] : memref<4x128x128xf32, #tpu.memory_space<vmem>>, vector<4x128x128xf32>
      tpu.vector_store %arg7[%c0_32, %c0_33, %c0_34], %51 {strides = array<i32>} : memref<4x128x128xf32, #tpu.memory_space<vmem>>, vector<4x128x128xf32>,
      %cst_35 = arith.constant 0.000000e+00 : f32
      %53 = vector.broadcast %cst_35 : f32 to vector<4x128x128xf32>
      %c0_36 = arith.constant 0 : index
      %c0_37 = arith.constant 0 : index
      %c0_38 = arith.constant 0 : index
      %54 = vector.load %arg8[%c0_36, %c0_37, %c0_38] : memref<4x128x128xf32, #tpu.memory_space<vmem>>, vector<4x128x128xf32>
      tpu.vector_store %arg8[%c0_36, %c0_37, %c0_38], %53 {strides = array<i32>} : memref<4x128x128xf32, #tpu.memory_space<vmem>>, vector<4x128x128xf32>,
    } else {
    }
    %c0_17 = arith.constant 0 : index
    %c0_18 = arith.constant 0 : index
    %c0_19 = arith.constant 0 : index
    %41 = vector.load %arg8[%c0_17, %c0_18, %c0_19] : memref<4x128x128xf32, #tpu.memory_space<vmem>>, vector<4x128x128xf32>
    %cst_20 = arith.constant dense<0.000000e+00> : vector<4x128x128xf32>
    %42 = vector.multi_reduction <add>, %20, %cst_20 [0] : vector<2x4x128x128xf32> to vector<4x128x128xf32>
    %43 = arith.addf %41, %42 : vector<4x128x128xf32>
    %c0_21 = arith.constant 0 : index
    %c0_22 = arith.constant 0 : index
    %c0_23 = arith.constant 0 : index
    %44 = vector.load %arg8[%c0_21, %c0_22, %c0_23] : memref<4x128x128xf32, #tpu.memory_space<vmem>>, vector<4x128x128xf32>
    tpu.vector_store %arg8[%c0_21, %c0_22, %c0_23], %43 {strides = array<i32>} : memref<4x128x128xf32, #tpu.memory_space<vmem>>, vector<4x128x128xf32>,
    %c0_24 = arith.constant 0 : index
    %c0_25 = arith.constant 0 : index
    %c0_26 = arith.constant 0 : index
    %45 = vector.load %arg7[%c0_24, %c0_25, %c0_26] : memref<4x128x128xf32, #tpu.memory_space<vmem>>, vector<4x128x128xf32>
    %46 = arith.addf %45, %37 : vector<4x128x128xf32>
    %c0_27 = arith.constant 0 : index
    %c0_28 = arith.constant 0 : index
    %c0_29 = arith.constant 0 : index
    %47 = vector.load %arg7[%c0_27, %c0_28, %c0_29] : memref<4x128x128xf32, #tpu.memory_space<vmem>>, vector<4x128x128xf32>
    tpu.vector_store %arg7[%c0_27, %c0_28, %c0_29], %46 {strides = array<i32>} : memref<4x128x128xf32, #tpu.memory_space<vmem>>, vector<4x128x128xf32>,
    %c1_i32 = arith.constant 1 : i32
    %48 = arith.cmpi eq, %arg1, %c1_i32 : i32
    %49 = arith.extui %48 : i1 to i32
    %c0_i32_30 = arith.constant 0 : i32
    %50 = arith.cmpi ne, %49, %c0_i32_30 : i32
    scf.if %50 {
      %c0_31 = arith.constant 0 : index
      %c0_32 = arith.constant 0 : index
      %51 = vector.load %arg6[%c0_31, %c0_32] : memref<1x128xf32, #tpu.memory_space<vmem>>, vector<1x128xf32>
      %52 = vector.shape_cast %51 : vector<1x128xf32> to vector<1x1x128xf32>
      %c0_33 = arith.constant 0 : index
      %c0_34 = arith.constant 0 : index
      %c0_35 = arith.constant 0 : index
      %53 = vector.load %arg7[%c0_33, %c0_34, %c0_35] : memref<4x128x128xf32, #tpu.memory_space<vmem>>, vector<4x128x128xf32>
      %54 = vector.broadcast %52 : vector<1x1x128xf32> to vector<4x128x128xf32>
      %55 = arith.addf %53, %54 : vector<4x128x128xf32>
      %cst_36 = arith.constant 0.000000e+00 : f32
      %56 = vector.broadcast %cst_36 : f32 to vector<4x128x128xf32>
      %57 = arith.maximumf %55, %56 : vector<4x128x128xf32>
      %c0_37 = arith.constant 0 : index
      %c0_38 = arith.constant 0 : index
      %c0_39 = arith.constant 0 : index
      %58 = vector.load %arg7[%c0_37, %c0_38, %c0_39] : memref<4x128x128xf32, #tpu.memory_space<vmem>>, vector<4x128x128xf32>
      tpu.vector_store %arg7[%c0_37, %c0_38, %c0_39], %57 {strides = array<i32>} : memref<4x128x128xf32, #tpu.memory_space<vmem>>, vector<4x128x128xf32>,
    } else {
    }
    return
  }
  func.func @transform_0(%arg0: i32, %arg1: i32) -> (i32, i32, i32, i32) {
    %c0_i32 = arith.constant 0 : i32
    %c0_i32_0 = arith.constant 0 : i32
    %c0_i32_1 = arith.constant 0 : i32
    return %arg1, %arg0, %c0_i32, %c0_i32_0 : i32, i32, i32, i32
  }
  func.func @transform_1(%arg0: i32, %arg1: i32) -> (i32, i32) {
    %c0_i32 = arith.constant 0 : i32
    %c0_i32_0 = arith.constant 0 : i32
    %c0_i32_1 = arith.constant 0 : i32
    return %c0_i32, %c0_i32_0 : i32, i32
  }
  func.func @transform_2(%arg0: i32, %arg1: i32) -> (i32, i32, i32, i32) {
    %c0_i32 = arith.constant 0 : i32
    %c0_i32_0 = arith.constant 0 : i32
    %c0_i32_1 = arith.constant 0 : i32
    return %arg1, %arg0, %c0_i32, %c0_i32_0 : i32, i32, i32, i32
  }
  func.func @transform_3(%arg0: i32, %arg1: i32) -> (i32, i32, i32) {
    %c0_i32 = arith.constant 0 : i32
    %c0_i32_0 = arith.constant 0 : i32
    %c0_i32_1 = arith.constant 0 : i32
    %c0_i32_2 = arith.constant 0 : i32
    return %c0_i32, %c0_i32_0, %c0_i32_1 : i32, i32, i32
  }
  func.func @transform_4(%arg0: i32, %arg1: i32) -> (i32, i32) {
    %c0_i32 = arith.constant 0 : i32
    %c0_i32_0 = arith.constant 0 : i32
    %c0_i32_1 = arith.constant 0 : i32
    return %c0_i32, %c0_i32_0 : i32, i32
  }
  func.func @transform_5(%arg0: i32, %arg1: i32) -> (i32, i32, i32) {
    %c0_i32 = arith.constant 0 : i32
    %c0_i32_0 = arith.constant 0 : i32
    %c0_i32_1 = arith.constant 0 : i32
    return %arg0, %c0_i32, %c0_i32_0 : i32, i32, i32
  }
  func.func @transform_6(%arg0: i32, %arg1: i32) -> (i32, i32, i32) {
    %c0_i32 = arith.constant 0 : i32
    %c0_i32_0 = arith.constant 0 : i32
    %c0_i32_1 = arith.constant 0 : i32
    return %arg0, %c0_i32, %c0_i32_0 : i32, i32, i32
  }
}

</mosaic_0001>

<llo_original>
// kernel: tpu_custom_call.1
$region0: #{tpu_custom_call.1}
  #allocation0 [shape = 'u32[]', space=smem, size = 0x4, offset = 0x4, fixed_abs, tag = 'smem constant byte address 0x4 - core index']
  #allocation1 [shape = 'u32[72,128]{1,0:T(1,128)}', space=vmem, size = 0x9000, scoped, tag = 'internal scratch']
  #allocation12 [shape = 's32[]', space=sflag, size = 0x4, offset = 0, fixed_abs, tag = 'sflag constant byte address 0x0 - dummy sync flag']
  #allocation14 [shape = 's32[]', space=sflag, size = 0x4, offset = 0, fixed_abs, tag = 'sflag constant byte address 0x0 - dummy sync flag']
  %s0 = inlined_call_operand.hbm [shape: bf16[4,8,128,128], index: 0, kind: input, shape index: {}]
  %s1 = inlined_call_operand.hbm [shape: s8[128,128], index: 1, kind: input, shape index: {}]
  %s2 = inlined_call_operand.hbm [shape: bf16[4,8,128,128], index: 2, kind: input, shape index: {}]
  %s3 = inlined_call_operand.hbm [shape: f32[2,256,128], index: 3, kind: input, shape index: {}]
  %s4 = inlined_call_operand.vmem [shape: f32[1,128], index: 4, kind: input, shape index: {}]
  %s5 = inlined_call_operand.hbm [shape: f32[8,128,128], index: 5, kind: output, shape index: {0}]
  %s6 = inlined_call_operand.hbm [shape: f32[8,128,128], index: 6, kind: output, shape index: {1}]
  %7 = xla_tuple %s5, %s6
  %s8 = sld [smem:[#allocation0]]
  $region85: #{tpu_custom_call.1} parent=0
    _
  %s10 = ssub.s32 1, %s8
  %s11 = scalar_select 0, %s10, %s8
  $region1: #{tpu_custom_call.1} parent=0
    #allocation2 [shape = 'u8[524288]{0}', space=vmem, size = 0x80000, scoped, tag = 'input window, operand 0']
    #allocation3 [shape = 's32[2]{0}', space=sflag, size = 0x8, scoped, tag = 'scoped memory for tpu_custom_call.1']
    #allocation4 [shape = 's32[2]{0}', space=sflag, size = 0x8, scoped, tag = 'scoped memory for tpu_custom_call.1']
    #allocation5 [shape = 'u8[16384]{0}', space=vmem, size = 0x4000, scoped, tag = 'input window, operand 1, single buffered']
    #allocation6 [shape = 's32[1]{0}', space=sflag, size = 0x4, scoped, tag = 'scoped memory for tpu_custom_call.1']
    #allocation7 [shape = 'u8[524288]{0}', space=vmem, size = 0x80000, scoped, tag = 'input window, operand 2']
    #allocation8 [shape = 'u8[262144]{0}', space=vmem, size = 0x40000, scoped, tag = 'input window, operand 3, single buffered']
    #allocation9 [shape = 'u8[524288]{0}', space=vmem, size = 0x80000, scoped, tag = 'output window, operand 0']
    #allocation10 [shape = 'u8[524288]{0}', space=vmem, size = 0x80000, scoped, tag = 'output window, operand 1']
    #allocation11 [shape = 's32[2]{0}', space=sflag, size = 0x8, scoped, tag = 'scoped memory for tpu_custom_call.1']
    %12 = vsyncpa [#allocation3], 0
    %s13 = scalar_lea.sflag [#allocation3], 1
    %14 = vsyncpa %s13, 0
    %15 = vsyncpa [#allocation6], 0
    %16 = vsyncpa [#allocation4], 0
    %s17 = scalar_lea.sflag [#allocation4], 1
    %18 = vsyncpa %s17, 0
    %19 = vsyncpa [#allocation11], 0
    %s20 = scalar_lea.sflag [#allocation11], 1
    %21 = vsyncpa %s20, 0
    loop: start=0, step=1, limit=6
    $region2: #{tpu_custom_call.1} parent=1 // loop_pre_header
      _
    $region3: #{tpu_custom_call.1} parent=1 // loop_header
      %s23 = sphi 0, %s27
      %p24 = scmp.ge.s32.totalorder %s23, 6
      %s30 = sphi 0, %s42
      %s31 = sphi 0, %s38
      %s32 = sphi 0, %s30
      %s33 = sphi 0, %s31
      %s34 = sphi 0, %s32
      %s35 = sphi 0, %s33
      %s47 = sphi 0, %s49
      %s50 = sphi 0, %s47
      %s51 = sphi 0, %s50
      %s67 = sphi 0, %s51
      %s71 = sphi 0, %s71
      %s73 = sphi 0, %s71
      %s74 = sphi 0, %s73
      %s88 = sphi 0, %s74
      %s96 = sphi 0, %s98
      %s99 = sphi 0, %s96
      %s100 = sphi 0, %s99
      %s116 = sphi 0, %s100
      %s120 = sphi 0, %s120
      %s122 = sphi 0, %s120
      %s123 = sphi 0, %s122
      %s137 = sphi 0, %s123
      %s141 = sphi 0, %s141
      %s143 = sphi 0, %s141
      %s144 = sphi 0, %s143
      %s158 = sphi 0, %s144
      %s164 = sphi 0, %s166
      %s167 = sphi 0, %s164
      %s168 = sphi 0, %s167
      %s184 = sphi 0, %s168
      %s190 = sphi 0, %s192
      %s193 = sphi 0, %s190
      %s194 = sphi 0, %s193
      %s210 = sphi 0, %s194
    $region4: #{tpu_custom_call.1} parent=1 // loop_header_branch
      %26 = sbr.rel (%p24) target = $region8
    $region5: #{tpu_custom_call.1} parent=1 // loop_body
      %s28 = ssub.s32 %s23, 1
      %s29 = ssub.s32 %s23, 2
      %s36 = sadd.s32 1, %s31
      %p37 = scmp.ge.s32.totalorder %s36, 2
      %s38 = scalar_select %p37, 0, %s36
      %s39 = sadd.s32 1, %s30
      %s40 = scalar_select %p37, %s39, %s30
      %p41 = scmp.ge.s32.totalorder %s40, 2
      %s42 = scalar_select %p41, 0, %s40
      %s43 = ssub.s32 %s31, %s38
      %s44 = ssub.s32 %s30, %s42
      %s45 = sor.u32 %s43, %s44
      %p46 = scmp.eq.s32.totalorder %s45, 0
      %s48 = sadd.s32 %s47, 1
      %s49 = scalar_select %p46, %s47, %s48
      %p52 = pneg %p46
      %p53 = scmp.eq.s32.totalorder %s23, 3
      %p54 = por %p52, %p53
      %p55 = scmp.ne.s32.totalorder %s47, %s50
      %p56 = scmp.eq.s32.totalorder %s23, 0
      %p57 = por %p55, %p56
      %p58 = scmp.ne.s32.totalorder %s47, %s50
      %p59 = scmp.eq.s32.totalorder %s28, 3
      %p60 = por %p58, %p59
      %p61 = scmp.ne.s32.totalorder %s50, %s51
      %p62 = scmp.eq.s32.totalorder %s28, 0
      %p63 = por %p61, %p62
      %p64 = scmp.ne.s32.totalorder %s50, %s51
      %p65 = scmp.eq.s32.totalorder %s29, 3
      %p66 = por %p64, %p65
      %p68 = scmp.ne.s32.totalorder %s51, %s67
      %p69 = scmp.eq.s32.totalorder %s29, 0
      %p70 = por %p68, %p69
      %s72 = sadd.s32 %s71, 1
      %p75 = scmp.eq.s32.totalorder %s23, 3
      %p76 = scmp.ne.s32.totalorder %s71, %s73
      %p77 = scmp.eq.s32.totalorder %s23, 0
      %p78 = por %p76, %p77
      %p79 = scmp.ne.s32.totalorder %s71, %s73
      %p80 = scmp.eq.s32.totalorder %s28, 3
      %p81 = por %p79, %p80
      %p82 = scmp.ne.s32.totalorder %s73, %s74
      %p83 = scmp.eq.s32.totalorder %s28, 0
      %p84 = por %p82, %p83
      %p85 = scmp.ne.s32.totalorder %s73, %s74
      %p86 = scmp.eq.s32.totalorder %s29, 3
      %p87 = por %p85, %p86
      %p89 = scmp.ne.s32.totalorder %s74, %s88
      %p90 = scmp.eq.s32.totalorder %s29, 0
      %p91 = por %p89, %p90
      %s92 = ssub.s32 %s31, %s38
      %s93 = ssub.s32 %s30, %s42
      %s94 = sor.u32 %s92, %s93
      %p95 = scmp.eq.s32.totalorder %s94, 0
      %s97 = sadd.s32 %s96, 1
      %s98 = scalar_select %p95, %s96, %s97
      %p101 = pneg %p95
      %p102 = scmp.eq.s32.totalorder %s23, 3
      %p103 = por %p101, %p102
      %p104 = scmp.ne.s32.totalorder %s96, %s99
      %p105 = scmp.eq.s32.totalorder %s23, 0
      %p106 = por %p104, %p105
      %p107 = scmp.ne.s32.totalorder %s96, %s99
      %p108 = scmp.eq.s32.totalorder %s28, 3
      %p109 = por %p107, %p108
      %p110 = scmp.ne.s32.totalorder %s99, %s100
      %p111 = scmp.eq.s32.totalorder %s28, 0
      %p112 = por %p110, %p111
      %p113 = scmp.ne.s32.totalorder %s99, %s100
      %p114 = scmp.eq.s32.totalorder %s29, 3
      %p115 = por %p113, %p114
      %p117 = scmp.ne.s32.totalorder %s100, %s116
      %p118 = scmp.eq.s32.totalorder %s29, 0
      %p119 = por %p117, %p118
      %s121 = sadd.s32 %s120, 1
      %p124 = scmp.eq.s32.totalorder %s23, 3
      %p125 = scmp.ne.s32.totalorder %s120, %s122
      %p126 = scmp.eq.s32.totalorder %s23, 0
      %p127 = por %p125, %p126
      %p128 = scmp.ne.s32.totalorder %s120, %s122
      %p129 = scmp.eq.s32.totalorder %s28, 3
      %p130 = por %p128, %p129
      %p131 = scmp.ne.s32.totalorder %s122, %s123
      %p132 = scmp.eq.s32.totalorder %s28, 0
      %p133 = por %p131, %p132
      %p134 = scmp.ne.s32.totalorder %s122, %s123
      %p135 = scmp.eq.s32.totalorder %s29, 3
      %p136 = por %p134, %p135
      %p138 = scmp.ne.s32.totalorder %s123, %s137
      %p139 = scmp.eq.s32.totalorder %s29, 0
      %p140 = por %p138, %p139
      %s142 = sadd.s32 %s141, 1
      %p145 = scmp.eq.s32.totalorder %s23, 3
      %p146 = scmp.ne.s32.totalorder %s141, %s143
      %p147 = scmp.eq.s32.totalorder %s23, 0
      %p148 = por %p146, %p147
      %p149 = scmp.ne.s32.totalorder %s141, %s143
      %p150 = scmp.eq.s32.totalorder %s28, 3
      %p151 = por %p149, %p150
      %p152 = scmp.ne.s32.totalorder %s143, %s144
      %p153 = scmp.eq.s32.totalorder %s28, 0
      %p154 = por %p152, %p153
      %p155 = scmp.ne.s32.totalorder %s143, %s144
      %p156 = scmp.eq.s32.totalorder %s29, 3
      %p157 = por %p155, %p156
      %p159 = scmp.ne.s32.totalorder %s144, %s158
      %p160 = scmp.eq.s32.totalorder %s29, 0
      %p161 = por %p159, %p160
      %s162 = ssub.s32 %s30, %s42
      %p163 = scmp.eq.s32.totalorder %s162, 0
      %s165 = sadd.s32 %s164, 1
      %s166 = scalar_select %p163, %s164, %s165
      %p169 = pneg %p163
      %p170 = scmp.eq.s32.totalorder %s23, 3
      %p171 = por %p169, %p170
      %p172 = scmp.ne.s32.totalorder %s164, %s167
      %p173 = scmp.eq.s32.totalorder %s23, 0
      %p174 = por %p172, %p173
      %p175 = scmp.ne.s32.totalorder %s164, %s167
      %p176 = scmp.eq.s32.totalorder %s28, 3
      %p177 = por %p175, %p176
      %p178 = scmp.ne.s32.totalorder %s167, %s168
      %p179 = scmp.eq.s32.totalorder %s28, 0
      %p180 = por %p178, %p179
      %p181 = scmp.ne.s32.totalorder %s167, %s168
      %p182 = scmp.eq.s32.totalorder %s29, 3
      %p183 = por %p181, %p182
      %p185 = scmp.ne.s32.totalorder %s168, %s184
      %p186 = scmp.eq.s32.totalorder %s29, 0
      %p187 = por %p185, %p186
      %s188 = ssub.s32 %s30, %s42
      %p189 = scmp.eq.s32.totalorder %s188, 0
      %s191 = sadd.s32 %s190, 1
      %s192 = scalar_select %p189, %s190, %s191
      %p195 = pneg %p189
      %p196 = scmp.eq.s32.totalorder %s23, 3
      %p197 = por %p195, %p196
      %p198 = scmp.ne.s32.totalorder %s190, %s193
      %p199 = scmp.eq.s32.totalorder %s23, 0
      %p200 = por %p198, %p199
      %p201 = scmp.ne.s32.totalorder %s190, %s193
      %p202 = scmp.eq.s32.totalorder %s28, 3
      %p203 = por %p201, %p202
      %p204 = scmp.ne.s32.totalorder %s193, %s194
      %p205 = scmp.eq.s32.totalorder %s28, 0
      %p206 = por %p204, %p205
      %p207 = scmp.ne.s32.totalorder %s193, %s194
      %p208 = scmp.eq.s32.totalorder %s29, 3
      %p209 = por %p207, %p208
      %p211 = scmp.ne.s32.totalorder %s194, %s210
      %p212 = scmp.eq.s32.totalorder %s29, 0
      %p213 = por %p211, %p212
      %p214 = scmp.le.s32.totalorder 1, %s23
      %p215 = scmp.lt.s32.totalorder %s23, 5
      %p216 = pnand %p214, %p215
      %p217 = pneg %p216
      // Predicated region
      $region9: #{tpu_custom_call.1} parent=5 // pred_check
        _
      $region10: #{tpu_custom_call.1} parent=5 // pred_check_branch
        %219 = sbr.rel (%p216) target = $region12
      $region11: #{tpu_custom_call.1} parent=5 // pred_region
        %s220 = ssub.s32 %s23, 1
        // Predicated region
        $region13: #{tpu_custom_call.1} parent=11 // pred_check
          %p221 = pneg %p84
        $region14: #{tpu_custom_call.1} parent=11 // pred_check_branch
          %223 = sbr.rel (%p221) target = $region16
        $region15: #{tpu_custom_call.1} parent=11 // pred_region
          %225 = vsyncadd [#allocation6], 0
          %s226 = sshll.u32 %s1, 4
          %s227 = int_to_ptr.hbm [resolvable:$true] %s226
          %s228 = sshll.u32 [#allocation5], 4
          %s229 = int_to_ptr.vmem [resolvable:$true] %s228
          %234 = dma.hbm_to_vmem [thread:$0]  %s227, 512, %s229, [#allocation6], 128, 128, 8
        $region16: #{tpu_custom_call.1} parent=11 // pred_fallthru
          _
        // Predicated region
        $region17: #{tpu_custom_call.1} parent=11 // pred_check
          %p235 = pneg %p133
        $region18: #{tpu_custom_call.1} parent=11 // pred_check_branch
          %237 = sbr.rel (%p235) target = $region20
        $region19: #{tpu_custom_call.1} parent=11 // pred_region
          %239 = vsyncadd [#allocation6], 0
          %s240 = sshll.u32 %s3, 4
          %s241 = int_to_ptr.hbm [resolvable:$true] %s240
          %s242 = sshll.u32 [#allocation8], 4
          %s243 = int_to_ptr.vmem [resolvable:$true] %s242
          %248 = dma.hbm_to_vmem [thread:$0]  %s241, 8192, %s243, [#allocation6], 128, 128, 8
        $region20: #{tpu_custom_call.1} parent=11 // pred_fallthru
          _
        // Predicated region
        $region21: #{tpu_custom_call.1} parent=11 // pred_check
          %p249 = pneg %p154
        $region22: #{tpu_custom_call.1} parent=11 // pred_check_branch
          %251 = sbr.rel (%p249) target = $region24
        $region23: #{tpu_custom_call.1} parent=11 // pred_region
          _
        $region24: #{tpu_custom_call.1} parent=11 // pred_fallthru
          _
      $region12: #{tpu_custom_call.1} parent=5 // pred_fallthru
        _
      %p252 = scmp.lt.s32.totalorder %s23, 4
      // Predicated region
      $region25: #{tpu_custom_call.1} parent=5 // pred_check
        %p253 = pneg %p252
      $region26: #{tpu_custom_call.1} parent=5 // pred_check_branch
        %255 = sbr.rel (%p253) target = $region28
      $region27: #{tpu_custom_call.1} parent=5 // pred_region
        // Predicated region
        $region29: #{tpu_custom_call.1} parent=27 // pred_check
          %p256 = pneg %p57
        $region30: #{tpu_custom_call.1} parent=27 // pred_check_branch
          %258 = sbr.rel (%p256) target = $region32
        $region31: #{tpu_custom_call.1} parent=27 // pred_region
          #allocation13 [shape = 'u32[6]{0}', space=smem, size = 0x18, scoped, tag = 'DMA stride descriptor']
          %s259 = sand.u32 %s23, 1
          %s260 = scalar_lea.sflag [#allocation3], %s259
          %s261 = sand.u32 %s47, 1
          %s262 = smul.addr %s261, 512
          %s263 = scalar_lea.vmem [#allocation2], %s262
          %s264 = smul.u32 2, %s31
          %s265 = smul.u32 4, %s30
          %267 = vsyncadd %s260, 0
          %s268 = smul.addr %s265, 16
          %s269 = smul.addr %s264, 128
          %s270 = sadd.s32 %s268, %s269
          %s271 = smul.addr %s270, 4
          %s272 = scalar_lea.hbm %s0, %s271
          %s274 = sshll.u32 1, 14
          %s275 = sxor.u32 4294967295, %s274
          %s277 = sld [smem:[#allocation0]]
          %s278 = sadd.s32 2, %s277
          %s280 = sshll.u32 7, 26
          %s281 = sxor.u32 4294967295, %s280
          %s282 = sand.u32 0, %s281
          %s283 = sshll.u32 %s278, 26
          %s284 = sor.u32 %s282, %s283
          %s285 = sshll.u32 %s272, 4
          %s286 = int_to_ptr.hbm [resolvable:$true] %s285
          %s287 = sshll.u32 %s263, 4
          %s288 = int_to_ptr.vmem [resolvable:$true] %s287
          %294 = sst [smem:[#allocation13]] 8192
          %s295 = scalar_lea.smem [#allocation13], 1
          %296 = sst [smem:[%s295]] 4096
          %s297 = scalar_lea.smem [#allocation13], 2
          %298 = sst [smem:[%s297]] 64
          %s299 = scalar_lea.smem [#allocation13], 3
          %300 = sst [smem:[%s299]] 64
          %s301 = scalar_lea.smem [#allocation13], 4
          %302 = sst [smem:[%s301]] 64
          %s303 = scalar_lea.smem [#allocation13], 5
          %304 = sst [smem:[%s303]] 4
          %306 = dma.general %s286, 8192, %s288, %s260, [#allocation12], [#allocation13], %s284, 0
        $region32: #{tpu_custom_call.1} parent=27 // pred_fallthru
          _
        // Predicated region
        $region33: #{tpu_custom_call.1} parent=27 // pred_check
          %p307 = pneg %p106
        $region34: #{tpu_custom_call.1} parent=27 // pred_check_branch
          %309 = sbr.rel (%p307) target = $region36
        $region35: #{tpu_custom_call.1} parent=27 // pred_region
          #allocation15 [shape = 'u32[6]{0}', space=smem, size = 0x18, scoped, tag = 'DMA stride descriptor']
          %s310 = sand.u32 %s23, 1
          %s311 = scalar_lea.sflag [#allocation3], %s310
          %s312 = sand.u32 %s96, 1
          %s313 = smul.addr %s312, 512
          %s314 = scalar_lea.vmem [#allocation7], %s313
          %s315 = smul.u32 2, %s31
          %s316 = smul.u32 4, %s30
          %318 = vsyncadd %s311, 0
          %s319 = smul.addr %s316, 16
          %s320 = smul.addr %s315, 128
          %s321 = sadd.s32 %s319, %s320
          %s322 = smul.addr %s321, 4
          %s323 = scalar_lea.hbm %s2, %s322
          %s325 = sshll.u32 1, 14
          %s326 = sxor.u32 4294967295, %s325
          %s328 = sld [smem:[#allocation0]]
          %s329 = sadd.s32 2, %s328
          %s331 = sshll.u32 7, 26
          %s332 = sxor.u32 4294967295, %s331
          %s333 = sand.u32 0, %s332
          %s334 = sshll.u32 %s329, 26
          %s335 = sor.u32 %s333, %s334
          %s336 = sshll.u32 %s323, 4
          %s337 = int_to_ptr.hbm [resolvable:$true] %s336
          %s338 = sshll.u32 %s314, 4
          %s339 = int_to_ptr.vmem [resolvable:$true] %s338
          %345 = sst [smem:[#allocation15]] 8192
          %s346 = scalar_lea.smem [#allocation15], 1
          %347 = sst [smem:[%s346]] 4096
          %s348 = scalar_lea.smem [#allocation15], 2
          %349 = sst [smem:[%s348]] 64
          %s350 = scalar_lea.smem [#allocation15], 3
          %351 = sst [smem:[%s350]] 64
          %s352 = scalar_lea.smem [#allocation15], 4
          %353 = sst [smem:[%s352]] 64
          %s354 = scalar_lea.smem [#allocation15], 5
          %355 = sst [smem:[%s354]] 4
          %357 = dma.general %s337, 8192, %s339, %s311, [#allocation14], [#allocation15], %s335, 0
        $region36: #{tpu_custom_call.1} parent=27 // pred_fallthru
          _
      $region28: #{tpu_custom_call.1} parent=5 // pred_fallthru
        _
      %p358 = scmp.le.s32.totalorder 1, %s23
      %p359 = scmp.lt.s32.totalorder %s23, 5
      %p360 = pnand %p358, %p359
      %p361 = pneg %p360
      // Predicated region
      $region37: #{tpu_custom_call.1} parent=5 // pred_check
        _
      $region38: #{tpu_custom_call.1} parent=5 // pred_check_branch
        %363 = sbr.rel (%p360) target = $region40
      $region39: #{tpu_custom_call.1} parent=5 // pred_region
        %s364 = ssub.s32 %s23, 1
        %s365 = sand.u32 %s28, 1
        %s366 = scalar_lea.sflag [#allocation3], %s365
        %s367 = sand.u32 %s50, 1
        %s368 = smul.addr %s367, 512
        %s369 = scalar_lea.vmem [#allocation2], %s368
        // Predicated region
        $region41: #{tpu_custom_call.1} parent=39 // pred_check
          %p370 = pneg %p63
        $region42: #{tpu_custom_call.1} parent=39 // pred_check_branch
          %372 = sbr.rel (%p370) target = $region44
        $region43: #{tpu_custom_call.1} parent=39 // pred_region
          %374 = dma.done %s366, 8192
        $region44: #{tpu_custom_call.1} parent=39 // pred_fallthru
          _
        // Predicated region
        $region45: #{tpu_custom_call.1} parent=39 // pred_check
          %p375 = pneg %p84
        $region46: #{tpu_custom_call.1} parent=39 // pred_check_branch
          %377 = sbr.rel (%p375) target = $region48
        $region47: #{tpu_custom_call.1} parent=39 // pred_region
          %379 = dma.done [#allocation6], 512
        $region48: #{tpu_custom_call.1} parent=39 // pred_fallthru
          _
        %s380 = sand.u32 %s28, 1
        %s381 = scalar_lea.sflag [#allocation3], %s380
        %s382 = sand.u32 %s99, 1
        %s383 = smul.addr %s382, 512
        %s384 = scalar_lea.vmem [#allocation7], %s383
        // Predicated region
        $region49: #{tpu_custom_call.1} parent=39 // pred_check
          %p385 = pneg %p112
        $region50: #{tpu_custom_call.1} parent=39 // pred_check_branch
          %387 = sbr.rel (%p385) target = $region52
        $region51: #{tpu_custom_call.1} parent=39 // pred_region
          %389 = dma.done %s381, 8192
        $region52: #{tpu_custom_call.1} parent=39 // pred_fallthru
          _
        // Predicated region
        $region53: #{tpu_custom_call.1} parent=39 // pred_check
          %p390 = pneg %p133
        $region54: #{tpu_custom_call.1} parent=39 // pred_check_branch
          %392 = sbr.rel (%p390) target = $region56
        $region55: #{tpu_custom_call.1} parent=39 // pred_region
          %394 = dma.done [#allocation6], 8192
        $region56: #{tpu_custom_call.1} parent=39 // pred_fallthru
          _
        %s395 = sand.u32 %s28, 1
        %s396 = scalar_lea.sflag [#allocation3], %s395
        %s397 = sand.u32 %s50, 1
        %s398 = smul.addr %s397, 512
        %s399 = scalar_lea.vmem [#allocation2], %s398
        %p400 = pneg %p63
        %p401 = pneg %p60
        %p402 = pneg %p84
        %p403 = pneg %p81
        %s404 = sand.u32 %s28, 1
        %s405 = scalar_lea.sflag [#allocation3], %s404
        %s406 = sand.u32 %s99, 1
        %s407 = smul.addr %s406, 512
        %s408 = scalar_lea.vmem [#allocation7], %s407
        %p409 = pneg %p112
        %p410 = pneg %p109
        %p411 = pneg %p133
        %p412 = pneg %p130
        %p413 = pneg %p154
        %p414 = pneg %p151
        %p415 = pneg %p180
        %p416 = pneg %p177
        %s417 = sand.u32 %s167, 1
        %s418 = scalar_lea.sflag [#allocation4], %s417
        %s419 = sand.u32 %s167, 1
        %s420 = smul.addr %s419, 512
        %s421 = scalar_lea.vmem [#allocation9], %s420
        %p422 = pneg %p206
        %p423 = pneg %p203
        %s424 = sand.u32 %s193, 1
        %s425 = scalar_lea.sflag [#allocation11], %s424
        %s426 = sand.u32 %s193, 1
        %s427 = smul.addr %s426, 512
        %s428 = scalar_lea.vmem [#allocation10], %s427
        %s429 = smul.u32 2, %s33
        %s430 = smul.u32 4, %s32
        %s431 = smul.u32 2, %s33
        %s432 = smul.u32 4, %s32
        %s433 = smul.u32 4, %s32
        %s434 = smul.u32 4, %s32
        %v437 = vld [vmem:[%s369] sm:$0xf]
        %v438 = vld [vmem:[%s369 + $0x4] sm:$0xf]
        %v439 = vld [vmem:[%s369 + $0x8] sm:$0xf]
        %v440 = vld [vmem:[%s369 + $0xc] sm:$0xf]
        %v441 = vld [vmem:[%s369 + $0x10] sm:$0xf]
        %v442 = vld [vmem:[%s369 + $0x14] sm:$0xf]
        %v443 = vld [vmem:[%s369 + $0x18] sm:$0xf]
        %v444 = vld [vmem:[%s369 + $0x1c] sm:$0xf]
        %v445 = vld [vmem:[%s369 + $0x20] sm:$0xf]
        %v446 = vld [vmem:[%s369 + $0x24] sm:$0xf]
        %v447 = vld [vmem:[%s369 + $0x28] sm:$0xf]
        %v448 = vld [vmem:[%s369 + $0x2c] sm:$0xf]
        %v449 = vld [vmem:[%s369 + $0x30] sm:$0xf]
        %v450 = vld [vmem:[%s369 + $0x34] sm:$0xf]
        %v451 = vld [vmem:[%s369 + $0x38] sm:$0xf]
        %v452 = vld [vmem:[%s369 + $0x3c] sm:$0xf]
        %v453 = vld [vmem:[%s369 + $0x40] sm:$0xf]
        %v454 = vld [vmem:[%s369 + $0x44] sm:$0xf]
        %v455 = vld [vmem:[%s369 + $0x48] sm:$0xf]
        %v456 = vld [vmem:[%s369 + $0x4c] sm:$0xf]
        %v457 = vld [vmem:[%s369 + $0x50] sm:$0xf]
        %v458 = vld [vmem:[%s369 + $0x54] sm:$0xf]
        %v459 = vld [vmem:[%s369 + $0x58] sm:$0xf]
        %v460 = vld [vmem:[%s369 + $0x5c] sm:$0xf]
        %v461 = vld [vmem:[%s369 + $0x60] sm:$0xf]
        %v462 = vld [vmem:[%s369 + $0x64] sm:$0xf]
        %v463 = vld [vmem:[%s369 + $0x68] sm:$0xf]
        %v464 = vld [vmem:[%s369 + $0x6c] sm:$0xf]
        %v465 = vld [vmem:[%s369 + $0x70] sm:$0xf]
        %v466 = vld [vmem:[%s369 + $0x74] sm:$0xf]
        %v467 = vld [vmem:[%s369 + $0x78] sm:$0xf]
        %v468 = vld [vmem:[%s369 + $0x7c] sm:$0xf]
        %v469 = vld [vmem:[%s369 + $0x80] sm:$0xf]
        %v470 = vld [vmem:[%s369 + $0x84] sm:$0xf]
        %v471 = vld [vmem:[%s369 + $0x88] sm:$0xf]
        %v472 = vld [vmem:[%s369 + $0x8c] sm:$0xf]
        %v473 = vld [vmem:[%s369 + $0x90] sm:$0xf]
        %v474 = vld [vmem:[%s369 + $0x94] sm:$0xf]
        %v475 = vld [vmem:[%s369 + $0x98] sm:$0xf]
        %v476 = vld [vmem:[%s369 + $0x9c] sm:$0xf]
        %v477 = vld [vmem:[%s369 + $0xa0] sm:$0xf]
        %v478 = vld [vmem:[%s369 + $0xa4] sm:$0xf]
        %v479 = vld [vmem:[%s369 + $0xa8] sm:$0xf]
        %v480 = vld [vmem:[%s369 + $0xac] sm:$0xf]
        %v481 = vld [vmem:[%s369 + $0xb0] sm:$0xf]
        %v482 = vld [vmem:[%s369 + $0xb4] sm:$0xf]
        %v483 = vld [vmem:[%s369 + $0xb8] sm:$0xf]
        %v484 = vld [vmem:[%s369 + $0xbc] sm:$0xf]
        %v485 = vld [vmem:[%s369 + $0xc0] sm:$0xf]
        %v486 = vld [vmem:[%s369 + $0xc4] sm:$0xf]
        %v487 = vld [vmem:[%s369 + $0xc8] sm:$0xf]
        %v488 = vld [vmem:[%s369 + $0xcc] sm:$0xf]
        %v489 = vld [vmem:[%s369 + $0xd0] sm:$0xf]
        %v490 = vld [vmem:[%s369 + $0xd4] sm:$0xf]
        %v491 = vld [vmem:[%s369 + $0xd8] sm:$0xf]
        %v492 = vld [vmem:[%s369 + $0xdc] sm:$0xf]
        %v493 = vld [vmem:[%s369 + $0xe0] sm:$0xf]
        %v494 = vld [vmem:[%s369 + $0xe4] sm:$0xf]
        %v495 = vld [vmem:[%s369 + $0xe8] sm:$0xf]
        %v496 = vld [vmem:[%s369 + $0xec] sm:$0xf]
        %v497 = vld [vmem:[%s369 + $0xf0] sm:$0xf]
        %v498 = vld [vmem:[%s369 + $0xf4] sm:$0xf]
        %v499 = vld [vmem:[%s369 + $0xf8] sm:$0xf]
        %v500 = vld [vmem:[%s369 + $0xfc] sm:$0xf]
        %v501 = vld [vmem:[%s369 + $0x100] sm:$0xf]
        %v502 = vld [vmem:[%s369 + $0x104] sm:$0xf]
        %v503 = vld [vmem:[%s369 + $0x108] sm:$0xf]
        %v504 = vld [vmem:[%s369 + $0x10c] sm:$0xf]
        %v505 = vld [vmem:[%s369 + $0x110] sm:$0xf]
        %v506 = vld [vmem:[%s369 + $0x114] sm:$0xf]
        %v507 = vld [vmem:[%s369 + $0x118] sm:$0xf]
        %v508 = vld [vmem:[%s369 + $0x11c] sm:$0xf]
        %v509 = vld [vmem:[%s369 + $0x120] sm:$0xf]
        %v510 = vld [vmem:[%s369 + $0x124] sm:$0xf]
        %v511 = vld [vmem:[%s369 + $0x128] sm:$0xf]
        %v512 = vld [vmem:[%s369 + $0x12c] sm:$0xf]
        %v513 = vld [vmem:[%s369 + $0x130] sm:$0xf]
        %v514 = vld [vmem:[%s369 + $0x134] sm:$0xf]
        %v515 = vld [vmem:[%s369 + $0x138] sm:$0xf]
        %v516 = vld [vmem:[%s369 + $0x13c] sm:$0xf]
        %v517 = vld [vmem:[%s369 + $0x140] sm:$0xf]
        %v518 = vld [vmem:[%s369 + $0x144] sm:$0xf]
        %v519 = vld [vmem:[%s369 + $0x148] sm:$0xf]
        %v520 = vld [vmem:[%s369 + $0x14c] sm:$0xf]
        %v521 = vld [vmem:[%s369 + $0x150] sm:$0xf]
        %v522 = vld [vmem:[%s369 + $0x154] sm:$0xf]
        %v523 = vld [vmem:[%s369 + $0x158] sm:$0xf]
        %v524 = vld [vmem:[%s369 + $0x15c] sm:$0xf]
        %v525 = vld [vmem:[%s369 + $0x160] sm:$0xf]
        %v526 = vld [vmem:[%s369 + $0x164] sm:$0xf]
        %v527 = vld [vmem:[%s369 + $0x168] sm:$0xf]
        %v528 = vld [vmem:[%s369 + $0x16c] sm:$0xf]
        %v529 = vld [vmem:[%s369 + $0x170] sm:$0xf]
        %v530 = vld [vmem:[%s369 + $0x174] sm:$0xf]
        %v531 = vld [vmem:[%s369 + $0x178] sm:$0xf]
        %v532 = vld [vmem:[%s369 + $0x17c] sm:$0xf]
        %v533 = vld [vmem:[%s369 + $0x180] sm:$0xf]
        %v534 = vld [vmem:[%s369 + $0x184] sm:$0xf]
        %v535 = vld [vmem:[%s369 + $0x188] sm:$0xf]
        %v536 = vld [vmem:[%s369 + $0x18c] sm:$0xf]
        %v537 = vld [vmem:[%s369 + $0x190] sm:$0xf]
        %v538 = vld [vmem:[%s369 + $0x194] sm:$0xf]
        %v539 = vld [vmem:[%s369 + $0x198] sm:$0xf]
        %v540 = vld [vmem:[%s369 + $0x19c] sm:$0xf]
        %v541 = vld [vmem:[%s369 + $0x1a0] sm:$0xf]
        %v542 = vld [vmem:[%s369 + $0x1a4] sm:$0xf]
        %v543 = vld [vmem:[%s369 + $0x1a8] sm:$0xf]
        %v544 = vld [vmem:[%s369 + $0x1ac] sm:$0xf]
        %v545 = vld [vmem:[%s369 + $0x1b0] sm:$0xf]
        %v546 = vld [vmem:[%s369 + $0x1b4] sm:$0xf]
        %v547 = vld [vmem:[%s369 + $0x1b8] sm:$0xf]
        %v548 = vld [vmem:[%s369 + $0x1bc] sm:$0xf]
        %v549 = vld [vmem:[%s369 + $0x1c0] sm:$0xf]
        %v550 = vld [vmem:[%s369 + $0x1c4] sm:$0xf]
        %v551 = vld [vmem:[%s369 + $0x1c8] sm:$0xf]
        %v552 = vld [vmem:[%s369 + $0x1cc] sm:$0xf]
        %v553 = vld [vmem:[%s369 + $0x1d0] sm:$0xf]
        %v554 = vld [vmem:[%s369 + $0x1d4] sm:$0xf]
        %v555 = vld [vmem:[%s369 + $0x1d8] sm:$0xf]
        %v556 = vld [vmem:[%s369 + $0x1dc] sm:$0xf]
        %v557 = vld [vmem:[%s369 + $0x1e0] sm:$0xf]
        %v558 = vld [vmem:[%s369 + $0x1e4] sm:$0xf]
        %v559 = vld [vmem:[%s369 + $0x1e8] sm:$0xf]
        %v560 = vld [vmem:[%s369 + $0x1ec] sm:$0xf]
        %v561 = vld [vmem:[%s369 + $0x1f0] sm:$0xf]
        %v562 = vld [vmem:[%s369 + $0x1f4] sm:$0xf]
        %v563 = vld [vmem:[%s369 + $0x1f8] sm:$0xf]
        %v564 = vld [vmem:[%s369 + $0x1fc] sm:$0xf]
        %v565 = vunpack.c.l.bf16 %v437
        %v566 = vunpack.c.l.bf16 %v438
        %v567 = vunpack.c.l.bf16 %v439
        %v568 = vunpack.c.l.bf16 %v440
        %v569 = vunpack.c.l.bf16 %v441
        %v570 = vunpack.c.l.bf16 %v442
        %v571 = vunpack.c.l.bf16 %v443
        %v572 = vunpack.c.l.bf16 %v444
        %v573 = vunpack.c.l.bf16 %v445
        %v574 = vunpack.c.l.bf16 %v446
        %v575 = vunpack.c.l.bf16 %v447
        %v576 = vunpack.c.l.bf16 %v448
        %v577 = vunpack.c.l.bf16 %v449
        %v578 = vunpack.c.l.bf16 %v450
        %v579 = vunpack.c.l.bf16 %v451
        %v580 = vunpack.c.l.bf16 %v452
        %v581 = vunpack.c.l.bf16 %v453
        %v582 = vunpack.c.l.bf16 %v454
        %v583 = vunpack.c.l.bf16 %v455
        %v584 = vunpack.c.l.bf16 %v456
        %v585 = vunpack.c.l.bf16 %v457
        %v586 = vunpack.c.l.bf16 %v458
        %v587 = vunpack.c.l.bf16 %v459
        %v588 = vunpack.c.l.bf16 %v460
        %v589 = vunpack.c.l.bf16 %v461
        %v590 = vunpack.c.l.bf16 %v462
        %v591 = vunpack.c.l.bf16 %v463
        %v592 = vunpack.c.l.bf16 %v464
        %v593 = vunpack.c.l.bf16 %v465
        %v594 = vunpack.c.l.bf16 %v466
        %v595 = vunpack.c.l.bf16 %v467
        %v596 = vunpack.c.l.bf16 %v468
        %v597 = vunpack.c.l.bf16 %v469
        %v598 = vunpack.c.l.bf16 %v470
        %v599 = vunpack.c.l.bf16 %v471
        %v600 = vunpack.c.l.bf16 %v472
        %v601 = vunpack.c.l.bf16 %v473
        %v602 = vunpack.c.l.bf16 %v474
        %v603 = vunpack.c.l.bf16 %v475
        %v604 = vunpack.c.l.bf16 %v476
        %v605 = vunpack.c.l.bf16 %v477
        %v606 = vunpack.c.l.bf16 %v478
        %v607 = vunpack.c.l.bf16 %v479
        %v608 = vunpack.c.l.bf16 %v480
        %v609 = vunpack.c.l.bf16 %v481
        %v610 = vunpack.c.l.bf16 %v482
        %v611 = vunpack.c.l.bf16 %v483
        %v612 = vunpack.c.l.bf16 %v484
        %v613 = vunpack.c.l.bf16 %v485
        %v614 = vunpack.c.l.bf16 %v486
        %v615 = vunpack.c.l.bf16 %v487
        %v616 = vunpack.c.l.bf16 %v488
        %v617 = vunpack.c.l.bf16 %v489
        %v618 = vunpack.c.l.bf16 %v490
        %v619 = vunpack.c.l.bf16 %v491
        %v620 = vunpack.c.l.bf16 %v492
        %v621 = vunpack.c.l.bf16 %v493
        %v622 = vunpack.c.l.bf16 %v494
        %v623 = vunpack.c.l.bf16 %v495
        %v624 = vunpack.c.l.bf16 %v496
        %v625 = vunpack.c.l.bf16 %v497
        %v626 = vunpack.c.l.bf16 %v498
        %v627 = vunpack.c.l.bf16 %v499
        %v628 = vunpack.c.l.bf16 %v500
        %v629 = vunpack.c.l.bf16 %v501
        %v630 = vunpack.c.l.bf16 %v502
        %v631 = vunpack.c.l.bf16 %v503
        %v632 = vunpack.c.l.bf16 %v504
        %v633 = vunpack.c.l.bf16 %v505
        %v634 = vunpack.c.l.bf16 %v506
        %v635 = vunpack.c.l.bf16 %v507
        %v636 = vunpack.c.l.bf16 %v508
        %v637 = vunpack.c.l.bf16 %v509
        %v638 = vunpack.c.l.bf16 %v510
        %v639 = vunpack.c.l.bf16 %v511
        %v640 = vunpack.c.l.bf16 %v512
        %v641 = vunpack.c.l.bf16 %v513
        %v642 = vunpack.c.l.bf16 %v514
        %v643 = vunpack.c.l.bf16 %v515
        %v644 = vunpack.c.l.bf16 %v516
        %v645 = vunpack.c.l.bf16 %v517
        %v646 = vunpack.c.l.bf16 %v518
        %v647 = vunpack.c.l.bf16 %v519
        %v648 = vunpack.c.l.bf16 %v520
        %v649 = vunpack.c.l.bf16 %v521
        %v650 = vunpack.c.l.bf16 %v522
        %v651 = vunpack.c.l.bf16 %v523
        %v652 = vunpack.c.l.bf16 %v524
        %v653 = vunpack.c.l.bf16 %v525
        %v654 = vunpack.c.l.bf16 %v526
        %v655 = vunpack.c.l.bf16 %v527
        %v656 = vunpack.c.l.bf16 %v528
        %v657 = vunpack.c.l.bf16 %v529
        %v658 = vunpack.c.l.bf16 %v530
        %v659 = vunpack.c.l.bf16 %v531
        %v660 = vunpack.c.l.bf16 %v532
        %v661 = vunpack.c.l.bf16 %v533
        %v662 = vunpack.c.l.bf16 %v534
        %v663 = vunpack.c.l.bf16 %v535
        %v664 = vunpack.c.l.bf16 %v536
        %v665 = vunpack.c.l.bf16 %v537
        %v666 = vunpack.c.l.bf16 %v538
        %v667 = vunpack.c.l.bf16 %v539
        %v668 = vunpack.c.l.bf16 %v540
        %v669 = vunpack.c.l.bf16 %v541
        %v670 = vunpack.c.l.bf16 %v542
        %v671 = vunpack.c.l.bf16 %v543
        %v672 = vunpack.c.l.bf16 %v544
        %v673 = vunpack.c.l.bf16 %v545
        %v674 = vunpack.c.l.bf16 %v546
        %v675 = vunpack.c.l.bf16 %v547
        %v676 = vunpack.c.l.bf16 %v548
        %v677 = vunpack.c.l.bf16 %v549
        %v678 = vunpack.c.l.bf16 %v550
        %v679 = vunpack.c.l.bf16 %v551
        %v680 = vunpack.c.l.bf16 %v552
        %v681 = vunpack.c.l.bf16 %v553
        %v682 = vunpack.c.l.bf16 %v554
        %v683 = vunpack.c.l.bf16 %v555
        %v684 = vunpack.c.l.bf16 %v556
        %v685 = vunpack.c.l.bf16 %v557
        %v686 = vunpack.c.l.bf16 %v558
        %v687 = vunpack.c.l.bf16 %v559
        %v688 = vunpack.c.l.bf16 %v560
        %v689 = vunpack.c.l.bf16 %v561
        %v690 = vunpack.c.l.bf16 %v562
        %v691 = vunpack.c.l.bf16 %v563
        %v692 = vunpack.c.l.bf16 %v564
        %v693 = vmul.f32 %v565, 1.25
        %v694 = vmul.f32 %v566, 1.25
        %v695 = vmul.f32 %v567, 1.25
        %v696 = vmul.f32 %v568, 1.25
        %v697 = vmul.f32 %v569, 1.25
        %v698 = vmul.f32 %v570, 1.25
        %v699 = vmul.f32 %v571, 1.25
        %v700 = vmul.f32 %v572, 1.25
        %v701 = vmul.f32 %v573, 1.25
        %v702 = vmul.f32 %v574, 1.25
        %v703 = vmul.f32 %v575, 1.25
        %v704 = vmul.f32 %v576, 1.25
        %v705 = vmul.f32 %v577, 1.25
        %v706 = vmul.f32 %v578, 1.25
        %v707 = vmul.f32 %v579, 1.25
        %v708 = vmul.f32 %v580, 1.25
        %v709 = vmul.f32 %v581, 1.25
        %v710 = vmul.f32 %v582, 1.25
        %v711 = vmul.f32 %v583, 1.25
        %v712 = vmul.f32 %v584, 1.25
        %v713 = vmul.f32 %v585, 1.25
        %v714 = vmul.f32 %v586, 1.25
        %v715 = vmul.f32 %v587, 1.25
        %v716 = vmul.f32 %v588, 1.25
        %v717 = vmul.f32 %v589, 1.25
        %v718 = vmul.f32 %v590, 1.25
        %v719 = vmul.f32 %v591, 1.25
        %v720 = vmul.f32 %v592, 1.25
        %v721 = vmul.f32 %v593, 1.25
        %v722 = vmul.f32 %v594, 1.25
        %v723 = vmul.f32 %v595, 1.25
        %v724 = vmul.f32 %v596, 1.25
        %v725 = vmul.f32 %v597, 1.25
        %v726 = vmul.f32 %v598, 1.25
        %v727 = vmul.f32 %v599, 1.25
        %v728 = vmul.f32 %v600, 1.25
        %v729 = vmul.f32 %v601, 1.25
        %v730 = vmul.f32 %v602, 1.25
        %v731 = vmul.f32 %v603, 1.25
        %v732 = vmul.f32 %v604, 1.25
        %v733 = vmul.f32 %v605, 1.25
        %v734 = vmul.f32 %v606, 1.25
        %v735 = vmul.f32 %v607, 1.25
        %v736 = vmul.f32 %v608, 1.25
        %v737 = vmul.f32 %v609, 1.25
        %v738 = vmul.f32 %v610, 1.25
        %v739 = vmul.f32 %v611, 1.25
        %v740 = vmul.f32 %v612, 1.25
        %v741 = vmul.f32 %v613, 1.25
        %v742 = vmul.f32 %v614, 1.25
        %v743 = vmul.f32 %v615, 1.25
        %v744 = vmul.f32 %v616, 1.25
        %v745 = vmul.f32 %v617, 1.25
        %v746 = vmul.f32 %v618, 1.25
        %v747 = vmul.f32 %v619, 1.25
        %v748 = vmul.f32 %v620, 1.25
        %v749 = vmul.f32 %v621, 1.25
        %v750 = vmul.f32 %v622, 1.25
        %v751 = vmul.f32 %v623, 1.25
        %v752 = vmul.f32 %v624, 1.25
        %v753 = vmul.f32 %v625, 1.25
        %v754 = vmul.f32 %v626, 1.25
        %v755 = vmul.f32 %v627, 1.25
        %v756 = vmul.f32 %v628, 1.25
        %v757 = vmul.f32 %v629, 1.25
        %v758 = vmul.f32 %v630, 1.25
        %v759 = vmul.f32 %v631, 1.25
        %v760 = vmul.f32 %v632, 1.25
        %v761 = vmul.f32 %v633, 1.25
        %v762 = vmul.f32 %v634, 1.25
        %v763 = vmul.f32 %v635, 1.25
        %v764 = vmul.f32 %v636, 1.25
        %v765 = vmul.f32 %v637, 1.25
        %v766 = vmul.f32 %v638, 1.25
        %v767 = vmul.f32 %v639, 1.25
        %v768 = vmul.f32 %v640, 1.25
        %v769 = vmul.f32 %v641, 1.25
        %v770 = vmul.f32 %v642, 1.25
        %v771 = vmul.f32 %v643, 1.25
        %v772 = vmul.f32 %v644, 1.25
        %v773 = vmul.f32 %v645, 1.25
        %v774 = vmul.f32 %v646, 1.25
        %v775 = vmul.f32 %v647, 1.25
        %v776 = vmul.f32 %v648, 1.25
        %v777 = vmul.f32 %v649, 1.25
        %v778 = vmul.f32 %v650, 1.25
        %v779 = vmul.f32 %v651, 1.25
        %v780 = vmul.f32 %v652, 1.25
        %v781 = vmul.f32 %v653, 1.25
        %v782 = vmul.f32 %v654, 1.25
        %v783 = vmul.f32 %v655, 1.25
        %v784 = vmul.f32 %v656, 1.25
        %v785 = vmul.f32 %v657, 1.25
        %v786 = vmul.f32 %v658, 1.25
        %v787 = vmul.f32 %v659, 1.25
        %v788 = vmul.f32 %v660, 1.25
        %v789 = vmul.f32 %v661, 1.25
        %v790 = vmul.f32 %v662, 1.25
        %v791 = vmul.f32 %v663, 1.25
        %v792 = vmul.f32 %v664, 1.25
        %v793 = vmul.f32 %v665, 1.25
        %v794 = vmul.f32 %v666, 1.25
        %v795 = vmul.f32 %v667, 1.25
        %v796 = vmul.f32 %v668, 1.25
        %v797 = vmul.f32 %v669, 1.25
        %v798 = vmul.f32 %v670, 1.25
        %v799 = vmul.f32 %v671, 1.25
        %v800 = vmul.f32 %v672, 1.25
        %v801 = vmul.f32 %v673, 1.25
        %v802 = vmul.f32 %v674, 1.25
        %v803 = vmul.f32 %v675, 1.25
        %v804 = vmul.f32 %v676, 1.25
        %v805 = vmul.f32 %v677, 1.25
        %v806 = vmul.f32 %v678, 1.25
        %v807 = vmul.f32 %v679, 1.25
        %v808 = vmul.f32 %v680, 1.25
        %v809 = vmul.f32 %v681, 1.25
        %v810 = vmul.f32 %v682, 1.25
        %v811 = vmul.f32 %v683, 1.25
        %v812 = vmul.f32 %v684, 1.25
        %v813 = vmul.f32 %v685, 1.25
        %v814 = vmul.f32 %v686, 1.25
        %v815 = vmul.f32 %v687, 1.25
        %v816 = vmul.f32 %v688, 1.25
        %v817 = vmul.f32 %v689, 1.25
        %v818 = vmul.f32 %v690, 1.25
        %v819 = vmul.f32 %v691, 1.25
        %v820 = vmul.f32 %v692, 1.25
        %v821 = vld [vmem:[#allocation5] sm:$0xff]
        %v822 = vld [vmem:[#allocation5 + $0x8] sm:$0xff]
        %v823 = vld [vmem:[#allocation5 + $0x10] sm:$0xff]
        %v824 = vld [vmem:[#allocation5 + $0x18] sm:$0xff]
        %vm825 = vnez %v821
        %vm826 = vnez %v822
        %vm827 = vnez %v823
        %vm828 = vnez %v824
        %v829 = vsel %vm825, 16843009, 0
        %v830 = vsel %vm826, 16843009, 0
        %v831 = vsel %vm827, 16843009, 0
        %v832 = vsel %vm828, 16843009, 0
        %v833 = vunpack.c.0.s8 %v829
        %v834 = vunpack.c.1.s8 %v829
        %v835 = vunpack.c.2.s8 %v829
        %v836 = vunpack.c.3.s8 %v829
        %v837 = vunpack.c.0.s8 %v830
        %v838 = vunpack.c.1.s8 %v830
        %v839 = vunpack.c.2.s8 %v830
        %v840 = vunpack.c.3.s8 %v830
        %v841 = vunpack.c.0.s8 %v831
        %v842 = vunpack.c.1.s8 %v831
        %v843 = vunpack.c.2.s8 %v831
        %v844 = vunpack.c.3.s8 %v831
        %v845 = vunpack.c.0.s8 %v832
        %v846 = vunpack.c.1.s8 %v832
        %v847 = vunpack.c.2.s8 %v832
        %v848 = vunpack.c.3.s8 %v832
        %v849 = vpack.c.b16 %v833, %v833
        %v850 = vpack.c.b8 %v849, %v849
        %v851 = vpack.c.b16 %v834, %v834
        %v852 = vpack.c.b8 %v851, %v851
        %v853 = vpack.c.b16 %v835, %v835
        %v854 = vpack.c.b8 %v853, %v853
        %v855 = vpack.c.b16 %v836, %v836
        %v856 = vpack.c.b8 %v855, %v855
        %v857 = vpack.c.b16 %v837, %v837
        %v858 = vpack.c.b8 %v857, %v857
        %v859 = vpack.c.b16 %v838, %v838
        %v860 = vpack.c.b8 %v859, %v859
        %v861 = vpack.c.b16 %v839, %v839
        %v862 = vpack.c.b8 %v861, %v861
        %v863 = vpack.c.b16 %v840, %v840
        %v864 = vpack.c.b8 %v863, %v863
        %v865 = vpack.c.b16 %v841, %v841
        %v866 = vpack.c.b8 %v865, %v865
        %v867 = vpack.c.b16 %v842, %v842
        %v868 = vpack.c.b8 %v867, %v867
        %v869 = vpack.c.b16 %v843, %v843
        %v870 = vpack.c.b8 %v869, %v869
        %v871 = vpack.c.b16 %v844, %v844
        %v872 = vpack.c.b8 %v871, %v871
        %v873 = vpack.c.b16 %v845, %v845
        %v874 = vpack.c.b8 %v873, %v873
        %v875 = vpack.c.b16 %v846, %v846
        %v876 = vpack.c.b8 %v875, %v875
        %v877 = vpack.c.b16 %v847, %v847
        %v878 = vpack.c.b8 %v877, %v877
        %v879 = vpack.c.b16 %v848, %v848
        %v880 = vpack.c.b8 %v879, %v879
        %vm881 = vnez %v850
        %vm882 = vnez %v852
        %vm883 = vnez %v854
        %vm884 = vnez %v856
        %vm885 = vnez %v858
        %vm886 = vnez %v860
        %vm887 = vnez %v862
        %vm888 = vnez %v864
        %vm889 = vnez %v866
        %vm890 = vnez %v868
        %vm891 = vnez %v870
        %vm892 = vnez %v872
        %vm893 = vnez %v874
        %vm894 = vnez %v876
        %vm895 = vnez %v878
        %vm896 = vnez %v880
        %v897 = vsel %vm881, 16843009, 0
        %v898 = vsel %vm882, 16843009, 0
        %v899 = vsel %vm883, 16843009, 0
        %v900 = vsel %vm884, 16843009, 0
        %v901 = vsel %vm885, 16843009, 0
        %v902 = vsel %vm886, 16843009, 0
        %v903 = vsel %vm887, 16843009, 0
        %v904 = vsel %vm888, 16843009, 0
        %v905 = vsel %vm889, 16843009, 0
        %v906 = vsel %vm890, 16843009, 0
        %v907 = vsel %vm891, 16843009, 0
        %v908 = vsel %vm892, 16843009, 0
        %v909 = vsel %vm893, 16843009, 0
        %v910 = vsel %vm894, 16843009, 0
        %v911 = vsel %vm895, 16843009, 0
        %v912 = vsel %vm896, 16843009, 0
        %v913 = vunpack.c.0.s8 %v897
        %v914 = vunpack.c.0.s8 %v898
        %v915 = vunpack.c.0.s8 %v899
        %v916 = vunpack.c.0.s8 %v900
        %v917 = vunpack.c.0.s8 %v901
        %v918 = vunpack.c.0.s8 %v902
        %v919 = vunpack.c.0.s8 %v903
        %v920 = vunpack.c.0.s8 %v904
        %v921 = vunpack.c.0.s8 %v905
        %v922 = vunpack.c.0.s8 %v906
        %v923 = vunpack.c.0.s8 %v907
        %v924 = vunpack.c.0.s8 %v908
        %v925 = vunpack.c.0.s8 %v909
        %v926 = vunpack.c.0.s8 %v910
        %v927 = vunpack.c.0.s8 %v911
        %v928 = vunpack.c.0.s8 %v912
        %vm929 = vcmp.ne.s32.totalorder %v913, 0
        %vm930 = vcmp.ne.s32.totalorder %v914, 0
        %vm931 = vcmp.ne.s32.totalorder %v915, 0
        %vm932 = vcmp.ne.s32.totalorder %v916, 0
        %vm933 = vcmp.ne.s32.totalorder %v917, 0
        %vm934 = vcmp.ne.s32.totalorder %v918, 0
        %vm935 = vcmp.ne.s32.totalorder %v919, 0
        %vm936 = vcmp.ne.s32.totalorder %v920, 0
        %vm937 = vcmp.ne.s32.totalorder %v921, 0
        %vm938 = vcmp.ne.s32.totalorder %v922, 0
        %vm939 = vcmp.ne.s32.totalorder %v923, 0
        %vm940 = vcmp.ne.s32.totalorder %v924, 0
        %vm941 = vcmp.ne.s32.totalorder %v925, 0
        %vm942 = vcmp.ne.s32.totalorder %v926, 0
        %vm943 = vcmp.ne.s32.totalorder %v927, 0
        %vm944 = vcmp.ne.s32.totalorder %v928, 0
        %v945 = vsel %vm929, 1, 0
        %v946 = vsel %vm930, 1, 0
        %v947 = vsel %vm931, 1, 0
        %v948 = vsel %vm932, 1, 0
        %v949 = vsel %vm933, 1, 0
        %v950 = vsel %vm934, 1, 0
        %v951 = vsel %vm935, 1, 0
        %v952 = vsel %vm936, 1, 0
        %v953 = vsel %vm937, 1, 0
        %v954 = vsel %vm938, 1, 0
        %v955 = vsel %vm939, 1, 0
        %v956 = vsel %vm940, 1, 0
        %v957 = vsel %vm941, 1, 0
        %v958 = vsel %vm942, 1, 0
        %v959 = vsel %vm943, 1, 0
        %v960 = vsel %vm944, 1, 0
        %vm961 = vcmp.eq.s32.totalorder %v945, 1
        %vm962 = vcmp.eq.s32.totalorder %v946, 1
        %vm963 = vcmp.eq.s32.totalorder %v947, 1
        %vm964 = vcmp.eq.s32.totalorder %v948, 1
        %vm965 = vcmp.eq.s32.totalorder %v949, 1
        %vm966 = vcmp.eq.s32.totalorder %v950, 1
        %vm967 = vcmp.eq.s32.totalorder %v951, 1
        %vm968 = vcmp.eq.s32.totalorder %v952, 1
        %vm969 = vcmp.eq.s32.totalorder %v953, 1
        %vm970 = vcmp.eq.s32.totalorder %v954, 1
        %vm971 = vcmp.eq.s32.totalorder %v955, 1
        %vm972 = vcmp.eq.s32.totalorder %v956, 1
        %vm973 = vcmp.eq.s32.totalorder %v957, 1
        %vm974 = vcmp.eq.s32.totalorder %v958, 1
        %vm975 = vcmp.eq.s32.totalorder %v959, 1
        %vm976 = vcmp.eq.s32.totalorder %v960, 1
        %v977 = vsel %vm961, -inf, %v693
        %v978 = vsel %vm962, -inf, %v694
        %v979 = vsel %vm963, -inf, %v695
        %v980 = vsel %vm964, -inf, %v696
        %v981 = vsel %vm965, -inf, %v697
        %v982 = vsel %vm966, -inf, %v698
        %v983 = vsel %vm967, -inf, %v699
        %v984 = vsel %vm968, -inf, %v700
        %v985 = vsel %vm969, -inf, %v701
        %v986 = vsel %vm970, -inf, %v702
        %v987 = vsel %vm971, -inf, %v703
        %v988 = vsel %vm972, -inf, %v704
        %v989 = vsel %vm973, -inf, %v705
        %v990 = vsel %vm974, -inf, %v706
        %v991 = vsel %vm975, -inf, %v707
        %v992 = vsel %vm976, -inf, %v708
        %v993 = vsel %vm961, -inf, %v709
        %v994 = vsel %vm962, -inf, %v710
        %v995 = vsel %vm963, -inf, %v711
        %v996 = vsel %vm964, -inf, %v712
        %v997 = vsel %vm965, -inf, %v713
        %v998 = vsel %vm966, -inf, %v714
        %v999 = vsel %vm967, -inf, %v715
        %v1000 = vsel %vm968, -inf, %v716
        %v1001 = vsel %vm969, -inf, %v717
        %v1002 = vsel %vm970, -inf, %v718
        %v1003 = vsel %vm971, -inf, %v719
        %v1004 = vsel %vm972, -inf, %v720
        %v1005 = vsel %vm973, -inf, %v721
        %v1006 = vsel %vm974, -inf, %v722
        %v1007 = vsel %vm975, -inf, %v723
        %v1008 = vsel %vm976, -inf, %v724
        %v1009 = vsel %vm961, -inf, %v725
        %v1010 = vsel %vm962, -inf, %v726
        %v1011 = vsel %vm963, -inf, %v727
        %v1012 = vsel %vm964, -inf, %v728
        %v1013 = vsel %vm965, -inf, %v729
        %v1014 = vsel %vm966, -inf, %v730
        %v1015 = vsel %vm967, -inf, %v731
        %v1016 = vsel %vm968, -inf, %v732
        %v1017 = vsel %vm969, -inf, %v733
        %v1018 = vsel %vm970, -inf, %v734
        %v1019 = vsel %vm971, -inf, %v735
        %v1020 = vsel %vm972, -inf, %v736
        %v1021 = vsel %vm973, -inf, %v737
        %v1022 = vsel %vm974, -inf, %v738
        %v1023 = vsel %vm975, -inf, %v739
        %v1024 = vsel %vm976, -inf, %v740
        %v1025 = vsel %vm961, -inf, %v741
        %v1026 = vsel %vm962, -inf, %v742
        %v1027 = vsel %vm963, -inf, %v743
        %v1028 = vsel %vm964, -inf, %v744
        %v1029 = vsel %vm965, -inf, %v745
        %v1030 = vsel %vm966, -inf, %v746
        %v1031 = vsel %vm967, -inf, %v747
        %v1032 = vsel %vm968, -inf, %v748
        %v1033 = vsel %vm969, -inf, %v749
        %v1034 = vsel %vm970, -inf, %v750
        %v1035 = vsel %vm971, -inf, %v751
        %v1036 = vsel %vm972, -inf, %v752
        %v1037 = vsel %vm973, -inf, %v753
        %v1038 = vsel %vm974, -inf, %v754
        %v1039 = vsel %vm975, -inf, %v755
        %v1040 = vsel %vm976, -inf, %v756
        %v1041 = vsel %vm961, -inf, %v757
        %v1042 = vsel %vm962, -inf, %v758
        %v1043 = vsel %vm963, -inf, %v759
        %v1044 = vsel %vm964, -inf, %v760
        %v1045 = vsel %vm965, -inf, %v761
        %v1046 = vsel %vm966, -inf, %v762
        %v1047 = vsel %vm967, -inf, %v763
        %v1048 = vsel %vm968, -inf, %v764
        %v1049 = vsel %vm969, -inf, %v765
        %v1050 = vsel %vm970, -inf, %v766
        %v1051 = vsel %vm971, -inf, %v767
        %v1052 = vsel %vm972, -inf, %v768
        %v1053 = vsel %vm973, -inf, %v769
        %v1054 = vsel %vm974, -inf, %v770
        %v1055 = vsel %vm975, -inf, %v771
        %v1056 = vsel %vm976, -inf, %v772
        %v1057 = vsel %vm961, -inf, %v773
        %v1058 = vsel %vm962, -inf, %v774
        %v1059 = vsel %vm963, -inf, %v775
        %v1060 = vsel %vm964, -inf, %v776
        %v1061 = vsel %vm965, -inf, %v777
        %v1062 = vsel %vm966, -inf, %v778
        %v1063 = vsel %vm967, -inf, %v779
        %v1064 = vsel %vm968, -inf, %v780
        %v1065 = vsel %vm969, -inf, %v781
        %v1066 = vsel %vm970, -inf, %v782
        %v1067 = vsel %vm971, -inf, %v783
        %v1068 = vsel %vm972, -inf, %v784
        %v1069 = vsel %vm973, -inf, %v785
        %v1070 = vsel %vm974, -inf, %v786
        %v1071 = vsel %vm975, -inf, %v787
        %v1072 = vsel %vm976, -inf, %v788
        %v1073 = vsel %vm961, -inf, %v789
        %v1074 = vsel %vm962, -inf, %v790
        %v1075 = vsel %vm963, -inf, %v791
        %v1076 = vsel %vm964, -inf, %v792
        %v1077 = vsel %vm965, -inf, %v793
        %v1078 = vsel %vm966, -inf, %v794
        %v1079 = vsel %vm967, -inf, %v795
        %v1080 = vsel %vm968, -inf, %v796
        %v1081 = vsel %vm969, -inf, %v797
        %v1082 = vsel %vm970, -inf, %v798
        %v1083 = vsel %vm971, -inf, %v799
        %v1084 = vsel %vm972, -inf, %v800
        %v1085 = vsel %vm973, -inf, %v801
        %v1086 = vsel %vm974, -inf, %v802
        %v1087 = vsel %vm975, -inf, %v803
        %v1088 = vsel %vm976, -inf, %v804
        %v1089 = vsel %vm961, -inf, %v805
        %v1090 = vsel %vm962, -inf, %v806
        %v1091 = vsel %vm963, -inf, %v807
        %v1092 = vsel %vm964, -inf, %v808
        %v1093 = vsel %vm965, -inf, %v809
        %v1094 = vsel %vm966, -inf, %v810
        %v1095 = vsel %vm967, -inf, %v811
        %v1096 = vsel %vm968, -inf, %v812
        %v1097 = vsel %vm969, -inf, %v813
        %v1098 = vsel %vm970, -inf, %v814
        %v1099 = vsel %vm971, -inf, %v815
        %v1100 = vsel %vm972, -inf, %v816
        %v1101 = vsel %vm973, -inf, %v817
        %v1102 = vsel %vm974, -inf, %v818
        %v1103 = vsel %vm975, -inf, %v819
        %v1104 = vsel %vm976, -inf, %v820
        %1105 = vmax.xlane.f32.xlu0 %v977
        %v1106 = vpop.xlane.xlu0 %1105
        %1107 = vmax.xlane.f32.xlu0 %v978
        %v1108 = vpop.xlane.xlu0 %1107
        %1109 = vmax.xlane.f32.xlu0 %v979
        %v1110 = vpop.xlane.xlu0 %1109
        %1111 = vmax.xlane.f32.xlu0 %v980
        %v1112 = vpop.xlane.xlu0 %1111
        %1113 = vmax.xlane.f32.xlu0 %v981
        %v1114 = vpop.xlane.xlu0 %1113
        %1115 = vmax.xlane.f32.xlu0 %v982
        %v1116 = vpop.xlane.xlu0 %1115
        %1117 = vmax.xlane.f32.xlu0 %v983
        %v1118 = vpop.xlane.xlu0 %1117
        %1119 = vmax.xlane.f32.xlu0 %v984
        %v1120 = vpop.xlane.xlu0 %1119
        %1121 = vmax.xlane.f32.xlu0 %v985
        %v1122 = vpop.xlane.xlu0 %1121
        %1123 = vmax.xlane.f32.xlu0 %v986
        %v1124 = vpop.xlane.xlu0 %1123
        %1125 = vmax.xlane.f32.xlu0 %v987
        %v1126 = vpop.xlane.xlu0 %1125
        %1127 = vmax.xlane.f32.xlu0 %v988
        %v1128 = vpop.xlane.xlu0 %1127
        %1129 = vmax.xlane.f32.xlu0 %v989
        %v1130 = vpop.xlane.xlu0 %1129
        %1131 = vmax.xlane.f32.xlu0 %v990
        %v1132 = vpop.xlane.xlu0 %1131
        %1133 = vmax.xlane.f32.xlu0 %v991
        %v1134 = vpop.xlane.xlu0 %1133
        %1135 = vmax.xlane.f32.xlu0 %v992
        %v1136 = vpop.xlane.xlu0 %1135
        %1137 = vmax.xlane.f32.xlu0 %v993
        %v1138 = vpop.xlane.xlu0 %1137
        %1139 = vmax.xlane.f32.xlu0 %v994
        %v1140 = vpop.xlane.xlu0 %1139
        %1141 = vmax.xlane.f32.xlu0 %v995
        %v1142 = vpop.xlane.xlu0 %1141
        %1143 = vmax.xlane.f32.xlu0 %v996
        %v1144 = vpop.xlane.xlu0 %1143
        %1145 = vmax.xlane.f32.xlu0 %v997
        %v1146 = vpop.xlane.xlu0 %1145
        %1147 = vmax.xlane.f32.xlu0 %v998
        %v1148 = vpop.xlane.xlu0 %1147
        %1149 = vmax.xlane.f32.xlu0 %v999
        %v1150 = vpop.xlane.xlu0 %1149
        %1151 = vmax.xlane.f32.xlu0 %v1000
        %v1152 = vpop.xlane.xlu0 %1151
        %1153 = vmax.xlane.f32.xlu0 %v1001
        %v1154 = vpop.xlane.xlu0 %1153
        %1155 = vmax.xlane.f32.xlu0 %v1002
        %v1156 = vpop.xlane.xlu0 %1155
        %1157 = vmax.xlane.f32.xlu0 %v1003
        %v1158 = vpop.xlane.xlu0 %1157
        %1159 = vmax.xlane.f32.xlu0 %v1004
        %v1160 = vpop.xlane.xlu0 %1159
        %1161 = vmax.xlane.f32.xlu0 %v1005
        %v1162 = vpop.xlane.xlu0 %1161
        %1163 = vmax.xlane.f32.xlu0 %v1006
        %v1164 = vpop.xlane.xlu0 %1163
        %1165 = vmax.xlane.f32.xlu0 %v1007
        %v1166 = vpop.xlane.xlu0 %1165
        %1167 = vmax.xlane.f32.xlu0 %v1008
        %v1168 = vpop.xlane.xlu0 %1167
        %1169 = vmax.xlane.f32.xlu0 %v1009
        %v1170 = vpop.xlane.xlu0 %1169
        %1171 = vmax.xlane.f32.xlu0 %v1010
        %v1172 = vpop.xlane.xlu0 %1171
        %1173 = vmax.xlane.f32.xlu0 %v1011
        %v1174 = vpop.xlane.xlu0 %1173
        %1175 = vmax.xlane.f32.xlu0 %v1012
        %v1176 = vpop.xlane.xlu0 %1175
        %1177 = vmax.xlane.f32.xlu0 %v1013
        %v1178 = vpop.xlane.xlu0 %1177
        %1179 = vmax.xlane.f32.xlu0 %v1014
        %v1180 = vpop.xlane.xlu0 %1179
        %1181 = vmax.xlane.f32.xlu0 %v1015
        %v1182 = vpop.xlane.xlu0 %1181
        %1183 = vmax.xlane.f32.xlu0 %v1016
        %v1184 = vpop.xlane.xlu0 %1183
        %1185 = vmax.xlane.f32.xlu0 %v1017
        %v1186 = vpop.xlane.xlu0 %1185
        %1187 = vmax.xlane.f32.xlu0 %v1018
        %v1188 = vpop.xlane.xlu0 %1187
        %1189 = vmax.xlane.f32.xlu0 %v1019
        %v1190 = vpop.xlane.xlu0 %1189
        %1191 = vmax.xlane.f32.xlu0 %v1020
        %v1192 = vpop.xlane.xlu0 %1191
        %1193 = vmax.xlane.f32.xlu0 %v1021
        %v1194 = vpop.xlane.xlu0 %1193
        %1195 = vmax.xlane.f32.xlu0 %v1022
        %v1196 = vpop.xlane.xlu0 %1195
        %1197 = vmax.xlane.f32.xlu0 %v1023
        %v1198 = vpop.xlane.xlu0 %1197
        %1199 = vmax.xlane.f32.xlu0 %v1024
        %v1200 = vpop.xlane.xlu0 %1199
        %1201 = vmax.xlane.f32.xlu0 %v1025
        %v1202 = vpop.xlane.xlu0 %1201
        %1203 = vmax.xlane.f32.xlu0 %v1026
        %v1204 = vpop.xlane.xlu0 %1203
        %1205 = vmax.xlane.f32.xlu0 %v1027
        %v1206 = vpop.xlane.xlu0 %1205
        %1207 = vmax.xlane.f32.xlu0 %v1028
        %v1208 = vpop.xlane.xlu0 %1207
        %1209 = vmax.xlane.f32.xlu0 %v1029
        %v1210 = vpop.xlane.xlu0 %1209
        %1211 = vmax.xlane.f32.xlu0 %v1030
        %v1212 = vpop.xlane.xlu0 %1211
        %1213 = vmax.xlane.f32.xlu0 %v1031
        %v1214 = vpop.xlane.xlu0 %1213
        %1215 = vmax.xlane.f32.xlu0 %v1032
        %v1216 = vpop.xlane.xlu0 %1215
        %1217 = vmax.xlane.f32.xlu0 %v1033
        %v1218 = vpop.xlane.xlu0 %1217
        %1219 = vmax.xlane.f32.xlu0 %v1034
        %v1220 = vpop.xlane.xlu0 %1219
        %1221 = vmax.xlane.f32.xlu0 %v1035
        %v1222 = vpop.xlane.xlu0 %1221
        %1223 = vmax.xlane.f32.xlu0 %v1036
        %v1224 = vpop.xlane.xlu0 %1223
        %1225 = vmax.xlane.f32.xlu0 %v1037
        %v1226 = vpop.xlane.xlu0 %1225
        %1227 = vmax.xlane.f32.xlu0 %v1038
        %v1228 = vpop.xlane.xlu0 %1227
        %1229 = vmax.xlane.f32.xlu0 %v1039
        %v1230 = vpop.xlane.xlu0 %1229
        %1231 = vmax.xlane.f32.xlu0 %v1040
        %v1232 = vpop.xlane.xlu0 %1231
        %1233 = vmax.xlane.f32.xlu0 %v1041
        %v1234 = vpop.xlane.xlu0 %1233
        %1235 = vmax.xlane.f32.xlu0 %v1042
        %v1236 = vpop.xlane.xlu0 %1235
        %1237 = vmax.xlane.f32.xlu0 %v1043
        %v1238 = vpop.xlane.xlu0 %1237
        %1239 = vmax.xlane.f32.xlu0 %v1044
        %v1240 = vpop.xlane.xlu0 %1239
        %1241 = vmax.xlane.f32.xlu0 %v1045
        %v1242 = vpop.xlane.xlu0 %1241
        %1243 = vmax.xlane.f32.xlu0 %v1046
        %v1244 = vpop.xlane.xlu0 %1243
        %1245 = vmax.xlane.f32.xlu0 %v1047
        %v1246 = vpop.xlane.xlu0 %1245
        %1247 = vmax.xlane.f32.xlu0 %v1048
        %v1248 = vpop.xlane.xlu0 %1247
        %1249 = vmax.xlane.f32.xlu0 %v1049
        %v1250 = vpop.xlane.xlu0 %1249
        %1251 = vmax.xlane.f32.xlu0 %v1050
        %v1252 = vpop.xlane.xlu0 %1251
        %1253 = vmax.xlane.f32.xlu0 %v1051
        %v1254 = vpop.xlane.xlu0 %1253
        %1255 = vmax.xlane.f32.xlu0 %v1052
        %v1256 = vpop.xlane.xlu0 %1255
        %1257 = vmax.xlane.f32.xlu0 %v1053
        %v1258 = vpop.xlane.xlu0 %1257
        %1259 = vmax.xlane.f32.xlu0 %v1054
        %v1260 = vpop.xlane.xlu0 %1259
        %1261 = vmax.xlane.f32.xlu0 %v1055
        %v1262 = vpop.xlane.xlu0 %1261
        %1263 = vmax.xlane.f32.xlu0 %v1056
        %v1264 = vpop.xlane.xlu0 %1263
        %1265 = vmax.xlane.f32.xlu0 %v1057
        %v1266 = vpop.xlane.xlu0 %1265
        %1267 = vmax.xlane.f32.xlu0 %v1058
        %v1268 = vpop.xlane.xlu0 %1267
        %1269 = vmax.xlane.f32.xlu0 %v1059
        %v1270 = vpop.xlane.xlu0 %1269
        %1271 = vmax.xlane.f32.xlu0 %v1060
        %v1272 = vpop.xlane.xlu0 %1271
        %1273 = vmax.xlane.f32.xlu0 %v1061
        %v1274 = vpop.xlane.xlu0 %1273
        %1275 = vmax.xlane.f32.xlu0 %v1062
        %v1276 = vpop.xlane.xlu0 %1275
        %1277 = vmax.xlane.f32.xlu0 %v1063
        %v1278 = vpop.xlane.xlu0 %1277
        %1279 = vmax.xlane.f32.xlu0 %v1064
        %v1280 = vpop.xlane.xlu0 %1279
        %1281 = vmax.xlane.f32.xlu0 %v1065
        %v1282 = vpop.xlane.xlu0 %1281
        %1283 = vmax.xlane.f32.xlu0 %v1066
        %v1284 = vpop.xlane.xlu0 %1283
        %1285 = vmax.xlane.f32.xlu0 %v1067
        %v1286 = vpop.xlane.xlu0 %1285
        %1287 = vmax.xlane.f32.xlu0 %v1068
        %v1288 = vpop.xlane.xlu0 %1287
        %1289 = vmax.xlane.f32.xlu0 %v1069
        %v1290 = vpop.xlane.xlu0 %1289
        %1291 = vmax.xlane.f32.xlu0 %v1070
        %v1292 = vpop.xlane.xlu0 %1291
        %1293 = vmax.xlane.f32.xlu0 %v1071
        %v1294 = vpop.xlane.xlu0 %1293
        %1295 = vmax.xlane.f32.xlu0 %v1072
        %v1296 = vpop.xlane.xlu0 %1295
        %1297 = vmax.xlane.f32.xlu0 %v1073
        %v1298 = vpop.xlane.xlu0 %1297
        %1299 = vmax.xlane.f32.xlu0 %v1074
        %v1300 = vpop.xlane.xlu0 %1299
        %1301 = vmax.xlane.f32.xlu0 %v1075
        %v1302 = vpop.xlane.xlu0 %1301
        %1303 = vmax.xlane.f32.xlu0 %v1076
        %v1304 = vpop.xlane.xlu0 %1303
        %1305 = vmax.xlane.f32.xlu0 %v1077
        %v1306 = vpop.xlane.xlu0 %1305
        %1307 = vmax.xlane.f32.xlu0 %v1078
        %v1308 = vpop.xlane.xlu0 %1307
        %1309 = vmax.xlane.f32.xlu0 %v1079
        %v1310 = vpop.xlane.xlu0 %1309
        %1311 = vmax.xlane.f32.xlu0 %v1080
        %v1312 = vpop.xlane.xlu0 %1311
        %1313 = vmax.xlane.f32.xlu0 %v1081
        %v1314 = vpop.xlane.xlu0 %1313
        %1315 = vmax.xlane.f32.xlu0 %v1082
        %v1316 = vpop.xlane.xlu0 %1315
        %1317 = vmax.xlane.f32.xlu0 %v1083
        %v1318 = vpop.xlane.xlu0 %1317
        %1319 = vmax.xlane.f32.xlu0 %v1084
        %v1320 = vpop.xlane.xlu0 %1319
        %1321 = vmax.xlane.f32.xlu0 %v1085
        %v1322 = vpop.xlane.xlu0 %1321
        %1323 = vmax.xlane.f32.xlu0 %v1086
        %v1324 = vpop.xlane.xlu0 %1323
        %1325 = vmax.xlane.f32.xlu0 %v1087
        %v1326 = vpop.xlane.xlu0 %1325
        %1327 = vmax.xlane.f32.xlu0 %v1088
        %v1328 = vpop.xlane.xlu0 %1327
        %1329 = vmax.xlane.f32.xlu0 %v1089
        %v1330 = vpop.xlane.xlu0 %1329
        %1331 = vmax.xlane.f32.xlu0 %v1090
        %v1332 = vpop.xlane.xlu0 %1331
        %1333 = vmax.xlane.f32.xlu0 %v1091
        %v1334 = vpop.xlane.xlu0 %1333
        %1335 = vmax.xlane.f32.xlu0 %v1092
        %v1336 = vpop.xlane.xlu0 %1335
        %1337 = vmax.xlane.f32.xlu0 %v1093
        %v1338 = vpop.xlane.xlu0 %1337
        %1339 = vmax.xlane.f32.xlu0 %v1094
        %v1340 = vpop.xlane.xlu0 %1339
        %1341 = vmax.xlane.f32.xlu0 %v1095
        %v1342 = vpop.xlane.xlu0 %1341
        %1343 = vmax.xlane.f32.xlu0 %v1096
        %v1344 = vpop.xlane.xlu0 %1343
        %1345 = vmax.xlane.f32.xlu0 %v1097
        %v1346 = vpop.xlane.xlu0 %1345
        %1347 = vmax.xlane.f32.xlu0 %v1098
        %v1348 = vpop.xlane.xlu0 %1347
        %1349 = vmax.xlane.f32.xlu0 %v1099
        %v1350 = vpop.xlane.xlu0 %1349
        %1351 = vmax.xlane.f32.xlu0 %v1100
        %v1352 = vpop.xlane.xlu0 %1351
        %1353 = vmax.xlane.f32.xlu0 %v1101
        %v1354 = vpop.xlane.xlu0 %1353
        %1355 = vmax.xlane.f32.xlu0 %v1102
        %v1356 = vpop.xlane.xlu0 %1355
        %1357 = vmax.xlane.f32.xlu0 %v1103
        %v1358 = vpop.xlane.xlu0 %1357
        %1359 = vmax.xlane.f32.xlu0 %v1104
        %v1360 = vpop.xlane.xlu0 %1359
        %v1361 = vsub.f32 %v977, %v1106
        %v1362 = vsub.f32 %v978, %v1108
        %v1363 = vsub.f32 %v979, %v1110
        %v1364 = vsub.f32 %v980, %v1112
        %v1365 = vsub.f32 %v981, %v1114
        %v1366 = vsub.f32 %v982, %v1116
        %v1367 = vsub.f32 %v983, %v1118
        %v1368 = vsub.f32 %v984, %v1120
        %v1369 = vsub.f32 %v985, %v1122
        %v1370 = vsub.f32 %v986, %v1124
        %v1371 = vsub.f32 %v987, %v1126
        %v1372 = vsub.f32 %v988, %v1128
        %v1373 = vsub.f32 %v989, %v1130
        %v1374 = vsub.f32 %v990, %v1132
        %v1375 = vsub.f32 %v991, %v1134
        %v1376 = vsub.f32 %v992, %v1136
        %v1377 = vsub.f32 %v993, %v1138
        %v1378 = vsub.f32 %v994, %v1140
        %v1379 = vsub.f32 %v995, %v1142
        %v1380 = vsub.f32 %v996, %v1144
        %v1381 = vsub.f32 %v997, %v1146
        %v1382 = vsub.f32 %v998, %v1148
        %v1383 = vsub.f32 %v999, %v1150
        %v1384 = vsub.f32 %v1000, %v1152
        %v1385 = vsub.f32 %v1001, %v1154
        %v1386 = vsub.f32 %v1002, %v1156
        %v1387 = vsub.f32 %v1003, %v1158
        %v1388 = vsub.f32 %v1004, %v1160
        %v1389 = vsub.f32 %v1005, %v1162
        %v1390 = vsub.f32 %v1006, %v1164
        %v1391 = vsub.f32 %v1007, %v1166
        %v1392 = vsub.f32 %v1008, %v1168
        %v1393 = vsub.f32 %v1009, %v1170
        %v1394 = vsub.f32 %v1010, %v1172
        %v1395 = vsub.f32 %v1011, %v1174
        %v1396 = vsub.f32 %v1012, %v1176
        %v1397 = vsub.f32 %v1013, %v1178
        %v1398 = vsub.f32 %v1014, %v1180
        %v1399 = vsub.f32 %v1015, %v1182
        %v1400 = vsub.f32 %v1016, %v1184
        %v1401 = vsub.f32 %v1017, %v1186
        %v1402 = vsub.f32 %v1018, %v1188
        %v1403 = vsub.f32 %v1019, %v1190
        %v1404 = vsub.f32 %v1020, %v1192
        %v1405 = vsub.f32 %v1021, %v1194
        %v1406 = vsub.f32 %v1022, %v1196
        %v1407 = vsub.f32 %v1023, %v1198
        %v1408 = vsub.f32 %v1024, %v1200
        %v1409 = vsub.f32 %v1025, %v1202
        %v1410 = vsub.f32 %v1026, %v1204
        %v1411 = vsub.f32 %v1027, %v1206
        %v1412 = vsub.f32 %v1028, %v1208
        %v1413 = vsub.f32 %v1029, %v1210
        %v1414 = vsub.f32 %v1030, %v1212
        %v1415 = vsub.f32 %v1031, %v1214
        %v1416 = vsub.f32 %v1032, %v1216
        %v1417 = vsub.f32 %v1033, %v1218
        %v1418 = vsub.f32 %v1034, %v1220
        %v1419 = vsub.f32 %v1035, %v1222
        %v1420 = vsub.f32 %v1036, %v1224
        %v1421 = vsub.f32 %v1037, %v1226
        %v1422 = vsub.f32 %v1038, %v1228
        %v1423 = vsub.f32 %v1039, %v1230
        %v1424 = vsub.f32 %v1040, %v1232
        %v1425 = vsub.f32 %v1041, %v1234
        %v1426 = vsub.f32 %v1042, %v1236
        %v1427 = vsub.f32 %v1043, %v1238
        %v1428 = vsub.f32 %v1044, %v1240
        %v1429 = vsub.f32 %v1045, %v1242
        %v1430 = vsub.f32 %v1046, %v1244
        %v1431 = vsub.f32 %v1047, %v1246
        %v1432 = vsub.f32 %v1048, %v1248
        %v1433 = vsub.f32 %v1049, %v1250
        %v1434 = vsub.f32 %v1050, %v1252
        %v1435 = vsub.f32 %v1051, %v1254
        %v1436 = vsub.f32 %v1052, %v1256
        %v1437 = vsub.f32 %v1053, %v1258
        %v1438 = vsub.f32 %v1054, %v1260
        %v1439 = vsub.f32 %v1055, %v1262
        %v1440 = vsub.f32 %v1056, %v1264
        %v1441 = vsub.f32 %v1057, %v1266
        %v1442 = vsub.f32 %v1058, %v1268
        %v1443 = vsub.f32 %v1059, %v1270
        %v1444 = vsub.f32 %v1060, %v1272
        %v1445 = vsub.f32 %v1061, %v1274
        %v1446 = vsub.f32 %v1062, %v1276
        %v1447 = vsub.f32 %v1063, %v1278
        %v1448 = vsub.f32 %v1064, %v1280
        %v1449 = vsub.f32 %v1065, %v1282
        %v1450 = vsub.f32 %v1066, %v1284
        %v1451 = vsub.f32 %v1067, %v1286
        %v1452 = vsub.f32 %v1068, %v1288
        %v1453 = vsub.f32 %v1069, %v1290
        %v1454 = vsub.f32 %v1070, %v1292
        %v1455 = vsub.f32 %v1071, %v1294
        %v1456 = vsub.f32 %v1072, %v1296
        %v1457 = vsub.f32 %v1073, %v1298
        %v1458 = vsub.f32 %v1074, %v1300
        %v1459 = vsub.f32 %v1075, %v1302
        %v1460 = vsub.f32 %v1076, %v1304
        %v1461 = vsub.f32 %v1077, %v1306
        %v1462 = vsub.f32 %v1078, %v1308
        %v1463 = vsub.f32 %v1079, %v1310
        %v1464 = vsub.f32 %v1080, %v1312
        %v1465 = vsub.f32 %v1081, %v1314
        %v1466 = vsub.f32 %v1082, %v1316
        %v1467 = vsub.f32 %v1083, %v1318
        %v1468 = vsub.f32 %v1084, %v1320
        %v1469 = vsub.f32 %v1085, %v1322
        %v1470 = vsub.f32 %v1086, %v1324
        %v1471 = vsub.f32 %v1087, %v1326
        %v1472 = vsub.f32 %v1088, %v1328
        %v1473 = vsub.f32 %v1089, %v1330
        %v1474 = vsub.f32 %v1090, %v1332
        %v1475 = vsub.f32 %v1091, %v1334
        %v1476 = vsub.f32 %v1092, %v1336
        %v1477 = vsub.f32 %v1093, %v1338
        %v1478 = vsub.f32 %v1094, %v1340
        %v1479 = vsub.f32 %v1095, %v1342
        %v1480 = vsub.f32 %v1096, %v1344
        %v1481 = vsub.f32 %v1097, %v1346
        %v1482 = vsub.f32 %v1098, %v1348
        %v1483 = vsub.f32 %v1099, %v1350
        %v1484 = vsub.f32 %v1100, %v1352
        %v1485 = vsub.f32 %v1101, %v1354
        %v1486 = vsub.f32 %v1102, %v1356
        %v1487 = vsub.f32 %v1103, %v1358
        %v1488 = vsub.f32 %v1104, %v1360
        %v1489 = vmul.f32 %v1361, 1.442695
        %v1490 = vpow.pop %v1489
        %v1491 = vmul.f32 %v1362, 1.442695
        %v1492 = vpow.pop %v1491
        %v1493 = vmul.f32 %v1363, 1.442695
        %v1494 = vpow.pop %v1493
        %v1495 = vmul.f32 %v1364, 1.442695
        %v1496 = vpow.pop %v1495
        %v1497 = vmul.f32 %v1365, 1.442695
        %v1498 = vpow.pop %v1497
        %v1499 = vmul.f32 %v1366, 1.442695
        %v1500 = vpow.pop %v1499
        %v1501 = vmul.f32 %v1367, 1.442695
        %v1502 = vpow.pop %v1501
        %v1503 = vmul.f32 %v1368, 1.442695
        %v1504 = vpow.pop %v1503
        %v1505 = vmul.f32 %v1369, 1.442695
        %v1506 = vpow.pop %v1505
        %v1507 = vmul.f32 %v1370, 1.442695
        %v1508 = vpow.pop %v1507
        %v1509 = vmul.f32 %v1371, 1.442695
        %v1510 = vpow.pop %v1509
        %v1511 = vmul.f32 %v1372, 1.442695
        %v1512 = vpow.pop %v1511
        %v1513 = vmul.f32 %v1373, 1.442695
        %v1514 = vpow.pop %v1513
        %v1515 = vmul.f32 %v1374, 1.442695
        %v1516 = vpow.pop %v1515
        %v1517 = vmul.f32 %v1375, 1.442695
        %v1518 = vpow.pop %v1517
        %v1519 = vmul.f32 %v1376, 1.442695
        %v1520 = vpow.pop %v1519
        %v1521 = vmul.f32 %v1377, 1.442695
        %v1522 = vpow.pop %v1521
        %v1523 = vmul.f32 %v1378, 1.442695
        %v1524 = vpow.pop %v1523
        %v1525 = vmul.f32 %v1379, 1.442695
        %v1526 = vpow.pop %v1525
        %v1527 = vmul.f32 %v1380, 1.442695
        %v1528 = vpow.pop %v1527
        %v1529 = vmul.f32 %v1381, 1.442695
        %v1530 = vpow.pop %v1529
        %v1531 = vmul.f32 %v1382, 1.442695
        %v1532 = vpow.pop %v1531
        %v1533 = vmul.f32 %v1383, 1.442695
        %v1534 = vpow.pop %v1533
        %v1535 = vmul.f32 %v1384, 1.442695
        %v1536 = vpow.pop %v1535
        %v1537 = vmul.f32 %v1385, 1.442695
        %v1538 = vpow.pop %v1537
        %v1539 = vmul.f32 %v1386, 1.442695
        %v1540 = vpow.pop %v1539
        %v1541 = vmul.f32 %v1387, 1.442695
        %v1542 = vpow.pop %v1541
        %v1543 = vmul.f32 %v1388, 1.442695
        %v1544 = vpow.pop %v1543
        %v1545 = vmul.f32 %v1389, 1.442695
        %v1546 = vpow.pop %v1545
        %v1547 = vmul.f32 %v1390, 1.442695
        %v1548 = vpow.pop %v1547
        %v1549 = vmul.f32 %v1391, 1.442695
        %v1550 = vpow.pop %v1549
        %v1551 = vmul.f32 %v1392, 1.442695
        %v1552 = vpow.pop %v1551
        %v1553 = vmul.f32 %v1393, 1.442695
        %v1554 = vpow.pop %v1553
        %v1555 = vmul.f32 %v1394, 1.442695
        %v1556 = vpow.pop %v1555
        %v1557 = vmul.f32 %v1395, 1.442695
        %v1558 = vpow.pop %v1557
        %v1559 = vmul.f32 %v1396, 1.442695
        %v1560 = vpow.pop %v1559
        %v1561 = vmul.f32 %v1397, 1.442695
        %v1562 = vpow.pop %v1561
        %v1563 = vmul.f32 %v1398, 1.442695
        %v1564 = vpow.pop %v1563
        %v1565 = vmul.f32 %v1399, 1.442695
        %v1566 = vpow.pop %v1565
        %v1567 = vmul.f32 %v1400, 1.442695
        %v1568 = vpow.pop %v1567
        %v1569 = vmul.f32 %v1401, 1.442695
        %v1570 = vpow.pop %v1569
        %v1571 = vmul.f32 %v1402, 1.442695
        %v1572 = vpow.pop %v1571
        %v1573 = vmul.f32 %v1403, 1.442695
        %v1574 = vpow.pop %v1573
        %v1575 = vmul.f32 %v1404, 1.442695
        %v1576 = vpow.pop %v1575
        %v1577 = vmul.f32 %v1405, 1.442695
        %v1578 = vpow.pop %v1577
        %v1579 = vmul.f32 %v1406, 1.442695
        %v1580 = vpow.pop %v1579
        %v1581 = vmul.f32 %v1407, 1.442695
        %v1582 = vpow.pop %v1581
        %v1583 = vmul.f32 %v1408, 1.442695
        %v1584 = vpow.pop %v1583
        %v1585 = vmul.f32 %v1409, 1.442695
        %v1586 = vpow.pop %v1585
        %v1587 = vmul.f32 %v1410, 1.442695
        %v1588 = vpow.pop %v1587
        %v1589 = vmul.f32 %v1411, 1.442695
        %v1590 = vpow.pop %v1589
        %v1591 = vmul.f32 %v1412, 1.442695
        %v1592 = vpow.pop %v1591
        %v1593 = vmul.f32 %v1413, 1.442695
        %v1594 = vpow.pop %v1593
        %v1595 = vmul.f32 %v1414, 1.442695
        %v1596 = vpow.pop %v1595
        %v1597 = vmul.f32 %v1415, 1.442695
        %v1598 = vpow.pop %v1597
        %v1599 = vmul.f32 %v1416, 1.442695
        %v1600 = vpow.pop %v1599
        %v1601 = vmul.f32 %v1417, 1.442695
        %v1602 = vpow.pop %v1601
        %v1603 = vmul.f32 %v1418, 1.442695
        %v1604 = vpow.pop %v1603
        %v1605 = vmul.f32 %v1419, 1.442695
        %v1606 = vpow.pop %v1605
        %v1607 = vmul.f32 %v1420, 1.442695
        %v1608 = vpow.pop %v1607
        %v1609 = vmul.f32 %v1421, 1.442695
        %v1610 = vpow.pop %v1609
        %v1611 = vmul.f32 %v1422, 1.442695
        %v1612 = vpow.pop %v1611
        %v1613 = vmul.f32 %v1423, 1.442695
        %v1614 = vpow.pop %v1613
        %v1615 = vmul.f32 %v1424, 1.442695
        %v1616 = vpow.pop %v1615
        %v1617 = vmul.f32 %v1425, 1.442695
        %v1618 = vpow.pop %v1617
        %v1619 = vmul.f32 %v1426, 1.442695
        %v1620 = vpow.pop %v1619
        %v1621 = vmul.f32 %v1427, 1.442695
        %v1622 = vpow.pop %v1621
        %v1623 = vmul.f32 %v1428, 1.442695
        %v1624 = vpow.pop %v1623
        %v1625 = vmul.f32 %v1429, 1.442695
        %v1626 = vpow.pop %v1625
        %v1627 = vmul.f32 %v1430, 1.442695
        %v1628 = vpow.pop %v1627
        %v1629 = vmul.f32 %v1431, 1.442695
        %v1630 = vpow.pop %v1629
        %v1631 = vmul.f32 %v1432, 1.442695
        %v1632 = vpow.pop %v1631
        %v1633 = vmul.f32 %v1433, 1.442695
        %v1634 = vpow.pop %v1633
        %v1635 = vmul.f32 %v1434, 1.442695
        %v1636 = vpow.pop %v1635
        %v1637 = vmul.f32 %v1435, 1.442695
        %v1638 = vpow.pop %v1637
        %v1639 = vmul.f32 %v1436, 1.442695
        %v1640 = vpow.pop %v1639
        %v1641 = vmul.f32 %v1437, 1.442695
        %v1642 = vpow.pop %v1641
        %v1643 = vmul.f32 %v1438, 1.442695
        %v1644 = vpow.pop %v1643
        %v1645 = vmul.f32 %v1439, 1.442695
        %v1646 = vpow.pop %v1645
        %v1647 = vmul.f32 %v1440, 1.442695
        %v1648 = vpow.pop %v1647
        %v1649 = vmul.f32 %v1441, 1.442695
        %v1650 = vpow.pop %v1649
        %v1651 = vmul.f32 %v1442, 1.442695
        %v1652 = vpow.pop %v1651
        %v1653 = vmul.f32 %v1443, 1.442695
        %v1654 = vpow.pop %v1653
        %v1655 = vmul.f32 %v1444, 1.442695
        %v1656 = vpow.pop %v1655
        %v1657 = vmul.f32 %v1445, 1.442695
        %v1658 = vpow.pop %v1657
        %v1659 = vmul.f32 %v1446, 1.442695
        %v1660 = vpow.pop %v1659
        %v1661 = vmul.f32 %v1447, 1.442695
        %v1662 = vpow.pop %v1661
        %v1663 = vmul.f32 %v1448, 1.442695
        %v1664 = vpow.pop %v1663
        %v1665 = vmul.f32 %v1449, 1.442695
        %v1666 = vpow.pop %v1665
        %v1667 = vmul.f32 %v1450, 1.442695
        %v1668 = vpow.pop %v1667
        %v1669 = vmul.f32 %v1451, 1.442695
        %v1670 = vpow.pop %v1669
        %v1671 = vmul.f32 %v1452, 1.442695
        %v1672 = vpow.pop %v1671
        %v1673 = vmul.f32 %v1453, 1.442695
        %v1674 = vpow.pop %v1673
        %v1675 = vmul.f32 %v1454, 1.442695
        %v1676 = vpow.pop %v1675
        %v1677 = vmul.f32 %v1455, 1.442695
        %v1678 = vpow.pop %v1677
        %v1679 = vmul.f32 %v1456, 1.442695
        %v1680 = vpow.pop %v1679
        %v1681 = vmul.f32 %v1457, 1.442695
        %v1682 = vpow.pop %v1681
        %v1683 = vmul.f32 %v1458, 1.442695
        %v1684 = vpow.pop %v1683
        %v1685 = vmul.f32 %v1459, 1.442695
        %v1686 = vpow.pop %v1685
        %v1687 = vmul.f32 %v1460, 1.442695
        %v1688 = vpow.pop %v1687
        %v1689 = vmul.f32 %v1461, 1.442695
        %v1690 = vpow.pop %v1689
        %v1691 = vmul.f32 %v1462, 1.442695
        %v1692 = vpow.pop %v1691
        %v1693 = vmul.f32 %v1463, 1.442695
        %v1694 = vpow.pop %v1693
        %v1695 = vmul.f32 %v1464, 1.442695
        %v1696 = vpow.pop %v1695
        %v1697 = vmul.f32 %v1465, 1.442695
        %v1698 = vpow.pop %v1697
        %v1699 = vmul.f32 %v1466, 1.442695
        %v1700 = vpow.pop %v1699
        %v1701 = vmul.f32 %v1467, 1.442695
        %v1702 = vpow.pop %v1701
        %v1703 = vmul.f32 %v1468, 1.442695
        %v1704 = vpow.pop %v1703
        %v1705 = vmul.f32 %v1469, 1.442695
        %v1706 = vpow.pop %v1705
        %v1707 = vmul.f32 %v1470, 1.442695
        %v1708 = vpow.pop %v1707
        %v1709 = vmul.f32 %v1471, 1.442695
        %v1710 = vpow.pop %v1709
        %v1711 = vmul.f32 %v1472, 1.442695
        %v1712 = vpow.pop %v1711
        %v1713 = vmul.f32 %v1473, 1.442695
        %v1714 = vpow.pop %v1713
        %v1715 = vmul.f32 %v1474, 1.442695
        %v1716 = vpow.pop %v1715
        %v1717 = vmul.f32 %v1475, 1.442695
        %v1718 = vpow.pop %v1717
        %v1719 = vmul.f32 %v1476, 1.442695
        %v1720 = vpow.pop %v1719
        %v1721 = vmul.f32 %v1477, 1.442695
        %v1722 = vpow.pop %v1721
        %v1723 = vmul.f32 %v1478, 1.442695
        %v1724 = vpow.pop %v1723
        %v1725 = vmul.f32 %v1479, 1.442695
        %v1726 = vpow.pop %v1725
        %v1727 = vmul.f32 %v1480, 1.442695
        %v1728 = vpow.pop %v1727
        %v1729 = vmul.f32 %v1481, 1.442695
        %v1730 = vpow.pop %v1729
        %v1731 = vmul.f32 %v1482, 1.442695
        %v1732 = vpow.pop %v1731
        %v1733 = vmul.f32 %v1483, 1.442695
        %v1734 = vpow.pop %v1733
        %v1735 = vmul.f32 %v1484, 1.442695
        %v1736 = vpow.pop %v1735
        %v1737 = vmul.f32 %v1485, 1.442695
        %v1738 = vpow.pop %v1737
        %v1739 = vmul.f32 %v1486, 1.442695
        %v1740 = vpow.pop %v1739
        %v1741 = vmul.f32 %v1487, 1.442695
        %v1742 = vpow.pop %v1741
        %v1743 = vmul.f32 %v1488, 1.442695
        %v1744 = vpow.pop %v1743
        %1745 = vadd.xlane.f32.xlu0 %v1490
        %v1746 = vpop.xlane.xlu0 %1745
        %1747 = vadd.xlane.f32.xlu0 %v1492
        %v1748 = vpop.xlane.xlu0 %1747
        %1749 = vadd.xlane.f32.xlu0 %v1494
        %v1750 = vpop.xlane.xlu0 %1749
        %1751 = vadd.xlane.f32.xlu0 %v1496
        %v1752 = vpop.xlane.xlu0 %1751
        %1753 = vadd.xlane.f32.xlu0 %v1498
        %v1754 = vpop.xlane.xlu0 %1753
        %1755 = vadd.xlane.f32.xlu0 %v1500
        %v1756 = vpop.xlane.xlu0 %1755
        %1757 = vadd.xlane.f32.xlu0 %v1502
        %v1758 = vpop.xlane.xlu0 %1757
        %1759 = vadd.xlane.f32.xlu0 %v1504
        %v1760 = vpop.xlane.xlu0 %1759
        %1761 = vadd.xlane.f32.xlu0 %v1506
        %v1762 = vpop.xlane.xlu0 %1761
        %1763 = vadd.xlane.f32.xlu0 %v1508
        %v1764 = vpop.xlane.xlu0 %1763
        %1765 = vadd.xlane.f32.xlu0 %v1510
        %v1766 = vpop.xlane.xlu0 %1765
        %1767 = vadd.xlane.f32.xlu0 %v1512
        %v1768 = vpop.xlane.xlu0 %1767
        %1769 = vadd.xlane.f32.xlu0 %v1514
        %v1770 = vpop.xlane.xlu0 %1769
        %1771 = vadd.xlane.f32.xlu0 %v1516
        %v1772 = vpop.xlane.xlu0 %1771
        %1773 = vadd.xlane.f32.xlu0 %v1518
        %v1774 = vpop.xlane.xlu0 %1773
        %1775 = vadd.xlane.f32.xlu0 %v1520
        %v1776 = vpop.xlane.xlu0 %1775
        %1777 = vadd.xlane.f32.xlu0 %v1522
        %v1778 = vpop.xlane.xlu0 %1777
        %1779 = vadd.xlane.f32.xlu0 %v1524
        %v1780 = vpop.xlane.xlu0 %1779
        %1781 = vadd.xlane.f32.xlu0 %v1526
        %v1782 = vpop.xlane.xlu0 %1781
        %1783 = vadd.xlane.f32.xlu0 %v1528
        %v1784 = vpop.xlane.xlu0 %1783
        %1785 = vadd.xlane.f32.xlu0 %v1530
        %v1786 = vpop.xlane.xlu0 %1785
        %1787 = vadd.xlane.f32.xlu0 %v1532
        %v1788 = vpop.xlane.xlu0 %1787
        %1789 = vadd.xlane.f32.xlu0 %v1534
        %v1790 = vpop.xlane.xlu0 %1789
        %1791 = vadd.xlane.f32.xlu0 %v1536
        %v1792 = vpop.xlane.xlu0 %1791
        %1793 = vadd.xlane.f32.xlu0 %v1538
        %v1794 = vpop.xlane.xlu0 %1793
        %1795 = vadd.xlane.f32.xlu0 %v1540
        %v1796 = vpop.xlane.xlu0 %1795
        %1797 = vadd.xlane.f32.xlu0 %v1542
        %v1798 = vpop.xlane.xlu0 %1797
        %1799 = vadd.xlane.f32.xlu0 %v1544
        %v1800 = vpop.xlane.xlu0 %1799
        %1801 = vadd.xlane.f32.xlu0 %v1546
        %v1802 = vpop.xlane.xlu0 %1801
        %1803 = vadd.xlane.f32.xlu0 %v1548
        %v1804 = vpop.xlane.xlu0 %1803
        %1805 = vadd.xlane.f32.xlu0 %v1550
        %v1806 = vpop.xlane.xlu0 %1805
        %1807 = vadd.xlane.f32.xlu0 %v1552
        %v1808 = vpop.xlane.xlu0 %1807
        %1809 = vadd.xlane.f32.xlu0 %v1554
        %v1810 = vpop.xlane.xlu0 %1809
        %1811 = vadd.xlane.f32.xlu0 %v1556
        %v1812 = vpop.xlane.xlu0 %1811
        %1813 = vadd.xlane.f32.xlu0 %v1558
        %v1814 = vpop.xlane.xlu0 %1813
        %1815 = vadd.xlane.f32.xlu0 %v1560
        %v1816 = vpop.xlane.xlu0 %1815
        %1817 = vadd.xlane.f32.xlu0 %v1562
        %v1818 = vpop.xlane.xlu0 %1817
        %1819 = vadd.xlane.f32.xlu0 %v1564
        %v1820 = vpop.xlane.xlu0 %1819
        %1821 = vadd.xlane.f32.xlu0 %v1566
        %v1822 = vpop.xlane.xlu0 %1821
        %1823 = vadd.xlane.f32.xlu0 %v1568
        %v1824 = vpop.xlane.xlu0 %1823
        %1825 = vadd.xlane.f32.xlu0 %v1570
        %v1826 = vpop.xlane.xlu0 %1825
        %1827 = vadd.xlane.f32.xlu0 %v1572
        %v1828 = vpop.xlane.xlu0 %1827
        %1829 = vadd.xlane.f32.xlu0 %v1574
        %v1830 = vpop.xlane.xlu0 %1829
        %1831 = vadd.xlane.f32.xlu0 %v1576
        %v1832 = vpop.xlane.xlu0 %1831
        %1833 = vadd.xlane.f32.xlu0 %v1578
        %v1834 = vpop.xlane.xlu0 %1833
        %1835 = vadd.xlane.f32.xlu0 %v1580
        %v1836 = vpop.xlane.xlu0 %1835
        %1837 = vadd.xlane.f32.xlu0 %v1582
        %v1838 = vpop.xlane.xlu0 %1837
        %1839 = vadd.xlane.f32.xlu0 %v1584
        %v1840 = vpop.xlane.xlu0 %1839
        %1841 = vadd.xlane.f32.xlu0 %v1586
        %v1842 = vpop.xlane.xlu0 %1841
        %1843 = vadd.xlane.f32.xlu0 %v1588
        %v1844 = vpop.xlane.xlu0 %1843
        %1845 = vadd.xlane.f32.xlu0 %v1590
        %v1846 = vpop.xlane.xlu0 %1845
        %1847 = vadd.xlane.f32.xlu0 %v1592
        %v1848 = vpop.xlane.xlu0 %1847
        %1849 = vadd.xlane.f32.xlu0 %v1594
        %v1850 = vpop.xlane.xlu0 %1849
        %1851 = vadd.xlane.f32.xlu0 %v1596
        %v1852 = vpop.xlane.xlu0 %1851
        %1853 = vadd.xlane.f32.xlu0 %v1598
        %v1854 = vpop.xlane.xlu0 %1853
        %1855 = vadd.xlane.f32.xlu0 %v1600
        %v1856 = vpop.xlane.xlu0 %1855
        %1857 = vadd.xlane.f32.xlu0 %v1602
        %v1858 = vpop.xlane.xlu0 %1857
        %1859 = vadd.xlane.f32.xlu0 %v1604
        %v1860 = vpop.xlane.xlu0 %1859
        %1861 = vadd.xlane.f32.xlu0 %v1606
        %v1862 = vpop.xlane.xlu0 %1861
        %1863 = vadd.xlane.f32.xlu0 %v1608
        %v1864 = vpop.xlane.xlu0 %1863
        %1865 = vadd.xlane.f32.xlu0 %v1610
        %v1866 = vpop.xlane.xlu0 %1865
        %1867 = vadd.xlane.f32.xlu0 %v1612
        %v1868 = vpop.xlane.xlu0 %1867
        %1869 = vadd.xlane.f32.xlu0 %v1614
        %v1870 = vpop.xlane.xlu0 %1869
        %1871 = vadd.xlane.f32.xlu0 %v1616
        %v1872 = vpop.xlane.xlu0 %1871
        %1873 = vadd.xlane.f32.xlu0 %v1618
        %v1874 = vpop.xlane.xlu0 %1873
        %1875 = vadd.xlane.f32.xlu0 %v1620
        %v1876 = vpop.xlane.xlu0 %1875
        %1877 = vadd.xlane.f32.xlu0 %v1622
        %v1878 = vpop.xlane.xlu0 %1877
        %1879 = vadd.xlane.f32.xlu0 %v1624
        %v1880 = vpop.xlane.xlu0 %1879
        %1881 = vadd.xlane.f32.xlu0 %v1626
        %v1882 = vpop.xlane.xlu0 %1881
        %1883 = vadd.xlane.f32.xlu0 %v1628
        %v1884 = vpop.xlane.xlu0 %1883
        %1885 = vadd.xlane.f32.xlu0 %v1630
        %v1886 = vpop.xlane.xlu0 %1885
        %1887 = vadd.xlane.f32.xlu0 %v1632
        %v1888 = vpop.xlane.xlu0 %1887
        %1889 = vadd.xlane.f32.xlu0 %v1634
        %v1890 = vpop.xlane.xlu0 %1889
        %1891 = vadd.xlane.f32.xlu0 %v1636
        %v1892 = vpop.xlane.xlu0 %1891
        %1893 = vadd.xlane.f32.xlu0 %v1638
        %v1894 = vpop.xlane.xlu0 %1893
        %1895 = vadd.xlane.f32.xlu0 %v1640
        %v1896 = vpop.xlane.xlu0 %1895
        %1897 = vadd.xlane.f32.xlu0 %v1642
        %v1898 = vpop.xlane.xlu0 %1897
        %1899 = vadd.xlane.f32.xlu0 %v1644
        %v1900 = vpop.xlane.xlu0 %1899
        %1901 = vadd.xlane.f32.xlu0 %v1646
        %v1902 = vpop.xlane.xlu0 %1901
        %1903 = vadd.xlane.f32.xlu0 %v1648
        %v1904 = vpop.xlane.xlu0 %1903
        %1905 = vadd.xlane.f32.xlu0 %v1650
        %v1906 = vpop.xlane.xlu0 %1905
        %1907 = vadd.xlane.f32.xlu0 %v1652
        %v1908 = vpop.xlane.xlu0 %1907
        %1909 = vadd.xlane.f32.xlu0 %v1654
        %v1910 = vpop.xlane.xlu0 %1909
        %1911 = vadd.xlane.f32.xlu0 %v1656
        %v1912 = vpop.xlane.xlu0 %1911
        %1913 = vadd.xlane.f32.xlu0 %v1658
        %v1914 = vpop.xlane.xlu0 %1913
        %1915 = vadd.xlane.f32.xlu0 %v1660
        %v1916 = vpop.xlane.xlu0 %1915
        %1917 = vadd.xlane.f32.xlu0 %v1662
        %v1918 = vpop.xlane.xlu0 %1917
        %1919 = vadd.xlane.f32.xlu0 %v1664
        %v1920 = vpop.xlane.xlu0 %1919
        %1921 = vadd.xlane.f32.xlu0 %v1666
        %v1922 = vpop.xlane.xlu0 %1921
        %1923 = vadd.xlane.f32.xlu0 %v1668
        %v1924 = vpop.xlane.xlu0 %1923
        %1925 = vadd.xlane.f32.xlu0 %v1670
        %v1926 = vpop.xlane.xlu0 %1925
        %1927 = vadd.xlane.f32.xlu0 %v1672
        %v1928 = vpop.xlane.xlu0 %1927
        %1929 = vadd.xlane.f32.xlu0 %v1674
        %v1930 = vpop.xlane.xlu0 %1929
        %1931 = vadd.xlane.f32.xlu0 %v1676
        %v1932 = vpop.xlane.xlu0 %1931
        %1933 = vadd.xlane.f32.xlu0 %v1678
        %v1934 = vpop.xlane.xlu0 %1933
        %1935 = vadd.xlane.f32.xlu0 %v1680
        %v1936 = vpop.xlane.xlu0 %1935
        %1937 = vadd.xlane.f32.xlu0 %v1682
        %v1938 = vpop.xlane.xlu0 %1937
        %1939 = vadd.xlane.f32.xlu0 %v1684
        %v1940 = vpop.xlane.xlu0 %1939
        %1941 = vadd.xlane.f32.xlu0 %v1686
        %v1942 = vpop.xlane.xlu0 %1941
        %1943 = vadd.xlane.f32.xlu0 %v1688
        %v1944 = vpop.xlane.xlu0 %1943
        %1945 = vadd.xlane.f32.xlu0 %v1690
        %v1946 = vpop.xlane.xlu0 %1945
        %1947 = vadd.xlane.f32.xlu0 %v1692
        %v1948 = vpop.xlane.xlu0 %1947
        %1949 = vadd.xlane.f32.xlu0 %v1694
        %v1950 = vpop.xlane.xlu0 %1949
        %1951 = vadd.xlane.f32.xlu0 %v1696
        %v1952 = vpop.xlane.xlu0 %1951
        %1953 = vadd.xlane.f32.xlu0 %v1698
        %v1954 = vpop.xlane.xlu0 %1953
        %1955 = vadd.xlane.f32.xlu0 %v1700
        %v1956 = vpop.xlane.xlu0 %1955
        %1957 = vadd.xlane.f32.xlu0 %v1702
        %v1958 = vpop.xlane.xlu0 %1957
        %1959 = vadd.xlane.f32.xlu0 %v1704
        %v1960 = vpop.xlane.xlu0 %1959
        %1961 = vadd.xlane.f32.xlu0 %v1706
        %v1962 = vpop.xlane.xlu0 %1961
        %1963 = vadd.xlane.f32.xlu0 %v1708
        %v1964 = vpop.xlane.xlu0 %1963
        %1965 = vadd.xlane.f32.xlu0 %v1710
        %v1966 = vpop.xlane.xlu0 %1965
        %1967 = vadd.xlane.f32.xlu0 %v1712
        %v1968 = vpop.xlane.xlu0 %1967
        %1969 = vadd.xlane.f32.xlu0 %v1714
        %v1970 = vpop.xlane.xlu0 %1969
        %1971 = vadd.xlane.f32.xlu0 %v1716
        %v1972 = vpop.xlane.xlu0 %1971
        %1973 = vadd.xlane.f32.xlu0 %v1718
        %v1974 = vpop.xlane.xlu0 %1973
        %1975 = vadd.xlane.f32.xlu0 %v1720
        %v1976 = vpop.xlane.xlu0 %1975
        %1977 = vadd.xlane.f32.xlu0 %v1722
        %v1978 = vpop.xlane.xlu0 %1977
        %1979 = vadd.xlane.f32.xlu0 %v1724
        %v1980 = vpop.xlane.xlu0 %1979
        %1981 = vadd.xlane.f32.xlu0 %v1726
        %v1982 = vpop.xlane.xlu0 %1981
        %1983 = vadd.xlane.f32.xlu0 %v1728
        %v1984 = vpop.xlane.xlu0 %1983
        %1985 = vadd.xlane.f32.xlu0 %v1730
        %v1986 = vpop.xlane.xlu0 %1985
        %1987 = vadd.xlane.f32.xlu0 %v1732
        %v1988 = vpop.xlane.xlu0 %1987
        %1989 = vadd.xlane.f32.xlu0 %v1734
        %v1990 = vpop.xlane.xlu0 %1989
        %1991 = vadd.xlane.f32.xlu0 %v1736
        %v1992 = vpop.xlane.xlu0 %1991
        %1993 = vadd.xlane.f32.xlu0 %v1738
        %v1994 = vpop.xlane.xlu0 %1993
        %1995 = vadd.xlane.f32.xlu0 %v1740
        %v1996 = vpop.xlane.xlu0 %1995
        %1997 = vadd.xlane.f32.xlu0 %v1742
        %v1998 = vpop.xlane.xlu0 %1997
        %1999 = vadd.xlane.f32.xlu0 %v1744
        %v2000 = vpop.xlane.xlu0 %1999
        %v2001 = vrcp.pop %v1746
        %v2002 = vrcp.pop %v1748
        %v2003 = vrcp.pop %v1750
        %v2004 = vrcp.pop %v1752
        %v2005 = vrcp.pop %v1754
        %v2006 = vrcp.pop %v1756
        %v2007 = vrcp.pop %v1758
        %v2008 = vrcp.pop %v1760
        %v2009 = vrcp.pop %v1762
        %v2010 = vrcp.pop %v1764
        %v2011 = vrcp.pop %v1766
        %v2012 = vrcp.pop %v1768
        %v2013 = vrcp.pop %v1770
        %v2014 = vrcp.pop %v1772
        %v2015 = vrcp.pop %v1774
        %v2016 = vrcp.pop %v1776
        %v2017 = vrcp.pop %v1778
        %v2018 = vrcp.pop %v1780
        %v2019 = vrcp.pop %v1782
        %v2020 = vrcp.pop %v1784
        %v2021 = vrcp.pop %v1786
        %v2022 = vrcp.pop %v1788
        %v2023 = vrcp.pop %v1790
        %v2024 = vrcp.pop %v1792
        %v2025 = vrcp.pop %v1794
        %v2026 = vrcp.pop %v1796
        %v2027 = vrcp.pop %v1798
        %v2028 = vrcp.pop %v1800
        %v2029 = vrcp.pop %v1802
        %v2030 = vrcp.pop %v1804
        %v2031 = vrcp.pop %v1806
        %v2032 = vrcp.pop %v1808
        %v2033 = vrcp.pop %v1810
        %v2034 = vrcp.pop %v1812
        %v2035 = vrcp.pop %v1814
        %v2036 = vrcp.pop %v1816
        %v2037 = vrcp.pop %v1818
        %v2038 = vrcp.pop %v1820
        %v2039 = vrcp.pop %v1822
        %v2040 = vrcp.pop %v1824
        %v2041 = vrcp.pop %v1826
        %v2042 = vrcp.pop %v1828
        %v2043 = vrcp.pop %v1830
        %v2044 = vrcp.pop %v1832
        %v2045 = vrcp.pop %v1834
        %v2046 = vrcp.pop %v1836
        %v2047 = vrcp.pop %v1838
        %v2048 = vrcp.pop %v1840
        %v2049 = vrcp.pop %v1842
        %v2050 = vrcp.pop %v1844
        %v2051 = vrcp.pop %v1846
        %v2052 = vrcp.pop %v1848
        %v2053 = vrcp.pop %v1850
        %v2054 = vrcp.pop %v1852
        %v2055 = vrcp.pop %v1854
        %v2056 = vrcp.pop %v1856
        %v2057 = vrcp.pop %v1858
        %v2058 = vrcp.pop %v1860
        %v2059 = vrcp.pop %v1862
        %v2060 = vrcp.pop %v1864
        %v2061 = vrcp.pop %v1866
        %v2062 = vrcp.pop %v1868
        %v2063 = vrcp.pop %v1870
        %v2064 = vrcp.pop %v1872
        %v2065 = vrcp.pop %v1874
        %v2066 = vrcp.pop %v1876
        %v2067 = vrcp.pop %v1878
        %v2068 = vrcp.pop %v1880
        %v2069 = vrcp.pop %v1882
        %v2070 = vrcp.pop %v1884
        %v2071 = vrcp.pop %v1886
        %v2072 = vrcp.pop %v1888
        %v2073 = vrcp.pop %v1890
        %v2074 = vrcp.pop %v1892
        %v2075 = vrcp.pop %v1894
        %v2076 = vrcp.pop %v1896
        %v2077 = vrcp.pop %v1898
        %v2078 = vrcp.pop %v1900
        %v2079 = vrcp.pop %v1902
        %v2080 = vrcp.pop %v1904
        %v2081 = vrcp.pop %v1906
        %v2082 = vrcp.pop %v1908
        %v2083 = vrcp.pop %v1910
        %v2084 = vrcp.pop %v1912
        %v2085 = vrcp.pop %v1914
        %v2086 = vrcp.pop %v1916
        %v2087 = vrcp.pop %v1918
        %v2088 = vrcp.pop %v1920
        %v2089 = vrcp.pop %v1922
        %v2090 = vrcp.pop %v1924
        %v2091 = vrcp.pop %v1926
        %v2092 = vrcp.pop %v1928
        %v2093 = vrcp.pop %v1930
        %v2094 = vrcp.pop %v1932
        %v2095 = vrcp.pop %v1934
        %v2096 = vrcp.pop %v1936
        %v2097 = vrcp.pop %v1938
        %v2098 = vrcp.pop %v1940
        %v2099 = vrcp.pop %v1942
        %v2100 = vrcp.pop %v1944
        %v2101 = vrcp.pop %v1946
        %v2102 = vrcp.pop %v1948
        %v2103 = vrcp.pop %v1950
        %v2104 = vrcp.pop %v1952
        %v2105 = vrcp.pop %v1954
        %v2106 = vrcp.pop %v1956
        %v2107 = vrcp.pop %v1958
        %v2108 = vrcp.pop %v1960
        %v2109 = vrcp.pop %v1962
        %v2110 = vrcp.pop %v1964
        %v2111 = vrcp.pop %v1966
        %v2112 = vrcp.pop %v1968
        %v2113 = vrcp.pop %v1970
        %v2114 = vrcp.pop %v1972
        %v2115 = vrcp.pop %v1974
        %v2116 = vrcp.pop %v1976
        %v2117 = vrcp.pop %v1978
        %v2118 = vrcp.pop %v1980
        %v2119 = vrcp.pop %v1982
        %v2120 = vrcp.pop %v1984
        %v2121 = vrcp.pop %v1986
        %v2122 = vrcp.pop %v1988
        %v2123 = vrcp.pop %v1990
        %v2124 = vrcp.pop %v1992
        %v2125 = vrcp.pop %v1994
        %v2126 = vrcp.pop %v1996
        %v2127 = vrcp.pop %v1998
        %v2128 = vrcp.pop %v2000
        %v2129 = vmul.f32 %v1490, %v2001
        %v2130 = vmul.f32 %v1492, %v2002
        %v2131 = vmul.f32 %v1494, %v2003
        %v2132 = vmul.f32 %v1496, %v2004
        %v2133 = vmul.f32 %v1498, %v2005
        %v2134 = vmul.f32 %v1500, %v2006
        %v2135 = vmul.f32 %v1502, %v2007
        %v2136 = vmul.f32 %v1504, %v2008
        %v2137 = vmul.f32 %v1506, %v2009
        %v2138 = vmul.f32 %v1508, %v2010
        %v2139 = vmul.f32 %v1510, %v2011
        %v2140 = vmul.f32 %v1512, %v2012
        %v2141 = vmul.f32 %v1514, %v2013
        %v2142 = vmul.f32 %v1516, %v2014
        %v2143 = vmul.f32 %v1518, %v2015
        %v2144 = vmul.f32 %v1520, %v2016
        %v2145 = vmul.f32 %v1522, %v2017
        %v2146 = vmul.f32 %v1524, %v2018
        %v2147 = vmul.f32 %v1526, %v2019
        %v2148 = vmul.f32 %v1528, %v2020
        %v2149 = vmul.f32 %v1530, %v2021
        %v2150 = vmul.f32 %v1532, %v2022
        %v2151 = vmul.f32 %v1534, %v2023
        %v2152 = vmul.f32 %v1536, %v2024
        %v2153 = vmul.f32 %v1538, %v2025
        %v2154 = vmul.f32 %v1540, %v2026
        %v2155 = vmul.f32 %v1542, %v2027
        %v2156 = vmul.f32 %v1544, %v2028
        %v2157 = vmul.f32 %v1546, %v2029
        %v2158 = vmul.f32 %v1548, %v2030
        %v2159 = vmul.f32 %v1550, %v2031
        %v2160 = vmul.f32 %v1552, %v2032
        %v2161 = vmul.f32 %v1554, %v2033
        %v2162 = vmul.f32 %v1556, %v2034
        %v2163 = vmul.f32 %v1558, %v2035
        %v2164 = vmul.f32 %v1560, %v2036
        %v2165 = vmul.f32 %v1562, %v2037
        %v2166 = vmul.f32 %v1564, %v2038
        %v2167 = vmul.f32 %v1566, %v2039
        %v2168 = vmul.f32 %v1568, %v2040
        %v2169 = vmul.f32 %v1570, %v2041
        %v2170 = vmul.f32 %v1572, %v2042
        %v2171 = vmul.f32 %v1574, %v2043
        %v2172 = vmul.f32 %v1576, %v2044
        %v2173 = vmul.f32 %v1578, %v2045
        %v2174 = vmul.f32 %v1580, %v2046
        %v2175 = vmul.f32 %v1582, %v2047
        %v2176 = vmul.f32 %v1584, %v2048
        %v2177 = vmul.f32 %v1586, %v2049
        %v2178 = vmul.f32 %v1588, %v2050
        %v2179 = vmul.f32 %v1590, %v2051
        %v2180 = vmul.f32 %v1592, %v2052
        %v2181 = vmul.f32 %v1594, %v2053
        %v2182 = vmul.f32 %v1596, %v2054
        %v2183 = vmul.f32 %v1598, %v2055
        %v2184 = vmul.f32 %v1600, %v2056
        %v2185 = vmul.f32 %v1602, %v2057
        %v2186 = vmul.f32 %v1604, %v2058
        %v2187 = vmul.f32 %v1606, %v2059
        %v2188 = vmul.f32 %v1608, %v2060
        %v2189 = vmul.f32 %v1610, %v2061
        %v2190 = vmul.f32 %v1612, %v2062
        %v2191 = vmul.f32 %v1614, %v2063
        %v2192 = vmul.f32 %v1616, %v2064
        %v2193 = vmul.f32 %v1618, %v2065
        %v2194 = vmul.f32 %v1620, %v2066
        %v2195 = vmul.f32 %v1622, %v2067
        %v2196 = vmul.f32 %v1624, %v2068
        %v2197 = vmul.f32 %v1626, %v2069
        %v2198 = vmul.f32 %v1628, %v2070
        %v2199 = vmul.f32 %v1630, %v2071
        %v2200 = vmul.f32 %v1632, %v2072
        %v2201 = vmul.f32 %v1634, %v2073
        %v2202 = vmul.f32 %v1636, %v2074
        %v2203 = vmul.f32 %v1638, %v2075
        %v2204 = vmul.f32 %v1640, %v2076
        %v2205 = vmul.f32 %v1642, %v2077
        %v2206 = vmul.f32 %v1644, %v2078
        %v2207 = vmul.f32 %v1646, %v2079
        %v2208 = vmul.f32 %v1648, %v2080
        %v2209 = vmul.f32 %v1650, %v2081
        %v2210 = vmul.f32 %v1652, %v2082
        %v2211 = vmul.f32 %v1654, %v2083
        %v2212 = vmul.f32 %v1656, %v2084
        %v2213 = vmul.f32 %v1658, %v2085
        %v2214 = vmul.f32 %v1660, %v2086
        %v2215 = vmul.f32 %v1662, %v2087
        %v2216 = vmul.f32 %v1664, %v2088
        %v2217 = vmul.f32 %v1666, %v2089
        %v2218 = vmul.f32 %v1668, %v2090
        %v2219 = vmul.f32 %v1670, %v2091
        %v2220 = vmul.f32 %v1672, %v2092
        %v2221 = vmul.f32 %v1674, %v2093
        %v2222 = vmul.f32 %v1676, %v2094
        %v2223 = vmul.f32 %v1678, %v2095
        %v2224 = vmul.f32 %v1680, %v2096
        %v2225 = vmul.f32 %v1682, %v2097
        %v2226 = vmul.f32 %v1684, %v2098
        %v2227 = vmul.f32 %v1686, %v2099
        %v2228 = vmul.f32 %v1688, %v2100
        %v2229 = vmul.f32 %v1690, %v2101
        %v2230 = vmul.f32 %v1692, %v2102
        %v2231 = vmul.f32 %v1694, %v2103
        %v2232 = vmul.f32 %v1696, %v2104
        %v2233 = vmul.f32 %v1698, %v2105
        %v2234 = vmul.f32 %v1700, %v2106
        %v2235 = vmul.f32 %v1702, %v2107
        %v2236 = vmul.f32 %v1704, %v2108
        %v2237 = vmul.f32 %v1706, %v2109
        %v2238 = vmul.f32 %v1708, %v2110
        %v2239 = vmul.f32 %v1710, %v2111
        %v2240 = vmul.f32 %v1712, %v2112
        %v2241 = vmul.f32 %v1714, %v2113
        %v2242 = vmul.f32 %v1716, %v2114
        %v2243 = vmul.f32 %v1718, %v2115
        %v2244 = vmul.f32 %v1720, %v2116
        %v2245 = vmul.f32 %v1722, %v2117
        %v2246 = vmul.f32 %v1724, %v2118
        %v2247 = vmul.f32 %v1726, %v2119
        %v2248 = vmul.f32 %v1728, %v2120
        %v2249 = vmul.f32 %v1730, %v2121
        %v2250 = vmul.f32 %v1732, %v2122
        %v2251 = vmul.f32 %v1734, %v2123
        %v2252 = vmul.f32 %v1736, %v2124
        %v2253 = vmul.f32 %v1738, %v2125
        %v2254 = vmul.f32 %v1740, %v2126
        %v2255 = vmul.f32 %v1742, %v2127
        %v2256 = vmul.f32 %v1744, %v2128
        %v2257 = vld [vmem:[%s384] sm:$0xf]
        %v2258 = vld [vmem:[%s384 + $0x4] sm:$0xf]
        %v2259 = vld [vmem:[%s384 + $0x8] sm:$0xf]
        %v2260 = vld [vmem:[%s384 + $0xc] sm:$0xf]
        %v2261 = vld [vmem:[%s384 + $0x10] sm:$0xf]
        %v2262 = vld [vmem:[%s384 + $0x14] sm:$0xf]
        %v2263 = vld [vmem:[%s384 + $0x18] sm:$0xf]
        %v2264 = vld [vmem:[%s384 + $0x1c] sm:$0xf]
        %v2265 = vld [vmem:[%s384 + $0x20] sm:$0xf]
        %v2266 = vld [vmem:[%s384 + $0x24] sm:$0xf]
        %v2267 = vld [vmem:[%s384 + $0x28] sm:$0xf]
        %v2268 = vld [vmem:[%s384 + $0x2c] sm:$0xf]
        %v2269 = vld [vmem:[%s384 + $0x30] sm:$0xf]
        %v2270 = vld [vmem:[%s384 + $0x34] sm:$0xf]
        %v2271 = vld [vmem:[%s384 + $0x38] sm:$0xf]
        %v2272 = vld [vmem:[%s384 + $0x3c] sm:$0xf]
        %v2273 = vld [vmem:[%s384 + $0x40] sm:$0xf]
        %v2274 = vld [vmem:[%s384 + $0x44] sm:$0xf]
        %v2275 = vld [vmem:[%s384 + $0x48] sm:$0xf]
        %v2276 = vld [vmem:[%s384 + $0x4c] sm:$0xf]
        %v2277 = vld [vmem:[%s384 + $0x50] sm:$0xf]
        %v2278 = vld [vmem:[%s384 + $0x54] sm:$0xf]
        %v2279 = vld [vmem:[%s384 + $0x58] sm:$0xf]
        %v2280 = vld [vmem:[%s384 + $0x5c] sm:$0xf]
        %v2281 = vld [vmem:[%s384 + $0x60] sm:$0xf]
        %v2282 = vld [vmem:[%s384 + $0x64] sm:$0xf]
        %v2283 = vld [vmem:[%s384 + $0x68] sm:$0xf]
        %v2284 = vld [vmem:[%s384 + $0x6c] sm:$0xf]
        %v2285 = vld [vmem:[%s384 + $0x70] sm:$0xf]
        %v2286 = vld [vmem:[%s384 + $0x74] sm:$0xf]
        %v2287 = vld [vmem:[%s384 + $0x78] sm:$0xf]
        %v2288 = vld [vmem:[%s384 + $0x7c] sm:$0xf]
        %v2289 = vld [vmem:[%s384 + $0x80] sm:$0xf]
        %v2290 = vld [vmem:[%s384 + $0x84] sm:$0xf]
        %v2291 = vld [vmem:[%s384 + $0x88] sm:$0xf]
        %v2292 = vld [vmem:[%s384 + $0x8c] sm:$0xf]
        %v2293 = vld [vmem:[%s384 + $0x90] sm:$0xf]
        %v2294 = vld [vmem:[%s384 + $0x94] sm:$0xf]
        %v2295 = vld [vmem:[%s384 + $0x98] sm:$0xf]
        %v2296 = vld [vmem:[%s384 + $0x9c] sm:$0xf]
        %v2297 = vld [vmem:[%s384 + $0xa0] sm:$0xf]
        %v2298 = vld [vmem:[%s384 + $0xa4] sm:$0xf]
        %v2299 = vld [vmem:[%s384 + $0xa8] sm:$0xf]
        %v2300 = vld [vmem:[%s384 + $0xac] sm:$0xf]
        %v2301 = vld [vmem:[%s384 + $0xb0] sm:$0xf]
        %v2302 = vld [vmem:[%s384 + $0xb4] sm:$0xf]
        %v2303 = vld [vmem:[%s384 + $0xb8] sm:$0xf]
        %v2304 = vld [vmem:[%s384 + $0xbc] sm:$0xf]
        %v2305 = vld [vmem:[%s384 + $0xc0] sm:$0xf]
        %v2306 = vld [vmem:[%s384 + $0xc4] sm:$0xf]
        %v2307 = vld [vmem:[%s384 + $0xc8] sm:$0xf]
        %v2308 = vld [vmem:[%s384 + $0xcc] sm:$0xf]
        %v2309 = vld [vmem:[%s384 + $0xd0] sm:$0xf]
        %v2310 = vld [vmem:[%s384 + $0xd4] sm:$0xf]
        %v2311 = vld [vmem:[%s384 + $0xd8] sm:$0xf]
        %v2312 = vld [vmem:[%s384 + $0xdc] sm:$0xf]
        %v2313 = vld [vmem:[%s384 + $0xe0] sm:$0xf]
        %v2314 = vld [vmem:[%s384 + $0xe4] sm:$0xf]
        %v2315 = vld [vmem:[%s384 + $0xe8] sm:$0xf]
        %v2316 = vld [vmem:[%s384 + $0xec] sm:$0xf]
        %v2317 = vld [vmem:[%s384 + $0xf0] sm:$0xf]
        %v2318 = vld [vmem:[%s384 + $0xf4] sm:$0xf]
        %v2319 = vld [vmem:[%s384 + $0xf8] sm:$0xf]
        %v2320 = vld [vmem:[%s384 + $0xfc] sm:$0xf]
        %v2321 = vld [vmem:[%s384 + $0x100] sm:$0xf]
        %v2322 = vld [vmem:[%s384 + $0x104] sm:$0xf]
        %v2323 = vld [vmem:[%s384 + $0x108] sm:$0xf]
        %v2324 = vld [vmem:[%s384 + $0x10c] sm:$0xf]
        %v2325 = vld [vmem:[%s384 + $0x110] sm:$0xf]
        %v2326 = vld [vmem:[%s384 + $0x114] sm:$0xf]
        %v2327 = vld [vmem:[%s384 + $0x118] sm:$0xf]
        %v2328 = vld [vmem:[%s384 + $0x11c] sm:$0xf]
        %v2329 = vld [vmem:[%s384 + $0x120] sm:$0xf]
        %v2330 = vld [vmem:[%s384 + $0x124] sm:$0xf]
        %v2331 = vld [vmem:[%s384 + $0x128] sm:$0xf]
        %v2332 = vld [vmem:[%s384 + $0x12c] sm:$0xf]
        %v2333 = vld [vmem:[%s384 + $0x130] sm:$0xf]
        %v2334 = vld [vmem:[%s384 + $0x134] sm:$0xf]
        %v2335 = vld [vmem:[%s384 + $0x138] sm:$0xf]
        %v2336 = vld [vmem:[%s384 + $0x13c] sm:$0xf]
        %v2337 = vld [vmem:[%s384 + $0x140] sm:$0xf]
        %v2338 = vld [vmem:[%s384 + $0x144] sm:$0xf]
        %v2339 = vld [vmem:[%s384 + $0x148] sm:$0xf]
        %v2340 = vld [vmem:[%s384 + $0x14c] sm:$0xf]
        %v2341 = vld [vmem:[%s384 + $0x150] sm:$0xf]
        %v2342 = vld [vmem:[%s384 + $0x154] sm:$0xf]
        %v2343 = vld [vmem:[%s384 + $0x158] sm:$0xf]
        %v2344 = vld [vmem:[%s384 + $0x15c] sm:$0xf]
        %v2345 = vld [vmem:[%s384 + $0x160] sm:$0xf]
        %v2346 = vld [vmem:[%s384 + $0x164] sm:$0xf]
        %v2347 = vld [vmem:[%s384 + $0x168] sm:$0xf]
        %v2348 = vld [vmem:[%s384 + $0x16c] sm:$0xf]
        %v2349 = vld [vmem:[%s384 + $0x170] sm:$0xf]
        %v2350 = vld [vmem:[%s384 + $0x174] sm:$0xf]
        %v2351 = vld [vmem:[%s384 + $0x178] sm:$0xf]
        %v2352 = vld [vmem:[%s384 + $0x17c] sm:$0xf]
        %v2353 = vld [vmem:[%s384 + $0x180] sm:$0xf]
        %v2354 = vld [vmem:[%s384 + $0x184] sm:$0xf]
        %v2355 = vld [vmem:[%s384 + $0x188] sm:$0xf]
        %v2356 = vld [vmem:[%s384 + $0x18c] sm:$0xf]
        %v2357 = vld [vmem:[%s384 + $0x190] sm:$0xf]
        %v2358 = vld [vmem:[%s384 + $0x194] sm:$0xf]
        %v2359 = vld [vmem:[%s384 + $0x198] sm:$0xf]
        %v2360 = vld [vmem:[%s384 + $0x19c] sm:$0xf]
        %v2361 = vld [vmem:[%s384 + $0x1a0] sm:$0xf]
        %v2362 = vld [vmem:[%s384 + $0x1a4] sm:$0xf]
        %v2363 = vld [vmem:[%s384 + $0x1a8] sm:$0xf]
        %v2364 = vld [vmem:[%s384 + $0x1ac] sm:$0xf]
        %v2365 = vld [vmem:[%s384 + $0x1b0] sm:$0xf]
        %v2366 = vld [vmem:[%s384 + $0x1b4] sm:$0xf]
        %v2367 = vld [vmem:[%s384 + $0x1b8] sm:$0xf]
        %v2368 = vld [vmem:[%s384 + $0x1bc] sm:$0xf]
        %v2369 = vld [vmem:[%s384 + $0x1c0] sm:$0xf]
        %v2370 = vld [vmem:[%s384 + $0x1c4] sm:$0xf]
        %v2371 = vld [vmem:[%s384 + $0x1c8] sm:$0xf]
        %v2372 = vld [vmem:[%s384 + $0x1cc] sm:$0xf]
        %v2373 = vld [vmem:[%s384 + $0x1d0] sm:$0xf]
        %v2374 = vld [vmem:[%s384 + $0x1d4] sm:$0xf]
        %v2375 = vld [vmem:[%s384 + $0x1d8] sm:$0xf]
        %v2376 = vld [vmem:[%s384 + $0x1dc] sm:$0xf]
        %v2377 = vld [vmem:[%s384 + $0x1e0] sm:$0xf]
        %v2378 = vld [vmem:[%s384 + $0x1e4] sm:$0xf]
        %v2379 = vld [vmem:[%s384 + $0x1e8] sm:$0xf]
        %v2380 = vld [vmem:[%s384 + $0x1ec] sm:$0xf]
        %v2381 = vld [vmem:[%s384 + $0x1f0] sm:$0xf]
        %v2382 = vld [vmem:[%s384 + $0x1f4] sm:$0xf]
        %v2383 = vld [vmem:[%s384 + $0x1f8] sm:$0xf]
        %v2384 = vld [vmem:[%s384 + $0x1fc] sm:$0xf]
        %v2385 = vpack.c.bf16 %v2129, %v2129
        %v2386 = vpack.c.bf16 %v2130, %v2130
        %v2387 = vpack.c.bf16 %v2131, %v2131
        %v2388 = vpack.c.bf16 %v2132, %v2132
        %v2389 = vpack.c.bf16 %v2133, %v2133
        %v2390 = vpack.c.bf16 %v2134, %v2134
        %v2391 = vpack.c.bf16 %v2135, %v2135
        %v2392 = vpack.c.bf16 %v2136, %v2136
        %v2393 = vpack.c.bf16 %v2137, %v2137
        %v2394 = vpack.c.bf16 %v2138, %v2138
        %v2395 = vpack.c.bf16 %v2139, %v2139
        %v2396 = vpack.c.bf16 %v2140, %v2140
        %v2397 = vpack.c.bf16 %v2141, %v2141
        %v2398 = vpack.c.bf16 %v2142, %v2142
        %v2399 = vpack.c.bf16 %v2143, %v2143
        %v2400 = vpack.c.bf16 %v2144, %v2144
        %v2401 = vpack.c.bf16 %v2145, %v2145
        %v2402 = vpack.c.bf16 %v2146, %v2146
        %v2403 = vpack.c.bf16 %v2147, %v2147
        %v2404 = vpack.c.bf16 %v2148, %v2148
        %v2405 = vpack.c.bf16 %v2149, %v2149
        %v2406 = vpack.c.bf16 %v2150, %v2150
        %v2407 = vpack.c.bf16 %v2151, %v2151
        %v2408 = vpack.c.bf16 %v2152, %v2152
        %v2409 = vpack.c.bf16 %v2153, %v2153
        %v2410 = vpack.c.bf16 %v2154, %v2154
        %v2411 = vpack.c.bf16 %v2155, %v2155
        %v2412 = vpack.c.bf16 %v2156, %v2156
        %v2413 = vpack.c.bf16 %v2157, %v2157
        %v2414 = vpack.c.bf16 %v2158, %v2158
        %v2415 = vpack.c.bf16 %v2159, %v2159
        %v2416 = vpack.c.bf16 %v2160, %v2160
        %v2417 = vpack.c.bf16 %v2161, %v2161
        %v2418 = vpack.c.bf16 %v2162, %v2162
        %v2419 = vpack.c.bf16 %v2163, %v2163
        %v2420 = vpack.c.bf16 %v2164, %v2164
        %v2421 = vpack.c.bf16 %v2165, %v2165
        %v2422 = vpack.c.bf16 %v2166, %v2166
        %v2423 = vpack.c.bf16 %v2167, %v2167
        %v2424 = vpack.c.bf16 %v2168, %v2168
        %v2425 = vpack.c.bf16 %v2169, %v2169
        %v2426 = vpack.c.bf16 %v2170, %v2170
        %v2427 = vpack.c.bf16 %v2171, %v2171
        %v2428 = vpack.c.bf16 %v2172, %v2172
        %v2429 = vpack.c.bf16 %v2173, %v2173
        %v2430 = vpack.c.bf16 %v2174, %v2174
        %v2431 = vpack.c.bf16 %v2175, %v2175
        %v2432 = vpack.c.bf16 %v2176, %v2176
        %v2433 = vpack.c.bf16 %v2177, %v2177
        %v2434 = vpack.c.bf16 %v2178, %v2178
        %v2435 = vpack.c.bf16 %v2179, %v2179
        %v2436 = vpack.c.bf16 %v2180, %v2180
        %v2437 = vpack.c.bf16 %v2181, %v2181
        %v2438 = vpack.c.bf16 %v2182, %v2182
        %v2439 = vpack.c.bf16 %v2183, %v2183
        %v2440 = vpack.c.bf16 %v2184, %v2184
        %v2441 = vpack.c.bf16 %v2185, %v2185
        %v2442 = vpack.c.bf16 %v2186, %v2186
        %v2443 = vpack.c.bf16 %v2187, %v2187
        %v2444 = vpack.c.bf16 %v2188, %v2188
        %v2445 = vpack.c.bf16 %v2189, %v2189
        %v2446 = vpack.c.bf16 %v2190, %v2190
        %v2447 = vpack.c.bf16 %v2191, %v2191
        %v2448 = vpack.c.bf16 %v2192, %v2192
        %v2449 = vpack.c.bf16 %v2193, %v2193
        %v2450 = vpack.c.bf16 %v2194, %v2194
        %v2451 = vpack.c.bf16 %v2195, %v2195
        %v2452 = vpack.c.bf16 %v2196, %v2196
        %v2453 = vpack.c.bf16 %v2197, %v2197
        %v2454 = vpack.c.bf16 %v2198, %v2198
        %v2455 = vpack.c.bf16 %v2199, %v2199
        %v2456 = vpack.c.bf16 %v2200, %v2200
        %v2457 = vpack.c.bf16 %v2201, %v2201
        %v2458 = vpack.c.bf16 %v2202, %v2202
        %v2459 = vpack.c.bf16 %v2203, %v2203
        %v2460 = vpack.c.bf16 %v2204, %v2204
        %v2461 = vpack.c.bf16 %v2205, %v2205
        %v2462 = vpack.c.bf16 %v2206, %v2206
        %v2463 = vpack.c.bf16 %v2207, %v2207
        %v2464 = vpack.c.bf16 %v2208, %v2208
        %v2465 = vpack.c.bf16 %v2209, %v2209
        %v2466 = vpack.c.bf16 %v2210, %v2210
        %v2467 = vpack.c.bf16 %v2211, %v2211
        %v2468 = vpack.c.bf16 %v2212, %v2212
        %v2469 = vpack.c.bf16 %v2213, %v2213
        %v2470 = vpack.c.bf16 %v2214, %v2214
        %v2471 = vpack.c.bf16 %v2215, %v2215
        %v2472 = vpack.c.bf16 %v2216, %v2216
        %v2473 = vpack.c.bf16 %v2217, %v2217
        %v2474 = vpack.c.bf16 %v2218, %v2218
        %v2475 = vpack.c.bf16 %v2219, %v2219
        %v2476 = vpack.c.bf16 %v2220, %v2220
        %v2477 = vpack.c.bf16 %v2221, %v2221
        %v2478 = vpack.c.bf16 %v2222, %v2222
        %v2479 = vpack.c.bf16 %v2223, %v2223
        %v2480 = vpack.c.bf16 %v2224, %v2224
        %v2481 = vpack.c.bf16 %v2225, %v2225
        %v2482 = vpack.c.bf16 %v2226, %v2226
        %v2483 = vpack.c.bf16 %v2227, %v2227
        %v2484 = vpack.c.bf16 %v2228, %v2228
        %v2485 = vpack.c.bf16 %v2229, %v2229
        %v2486 = vpack.c.bf16 %v2230, %v2230
        %v2487 = vpack.c.bf16 %v2231, %v2231
        %v2488 = vpack.c.bf16 %v2232, %v2232
        %v2489 = vpack.c.bf16 %v2233, %v2233
        %v2490 = vpack.c.bf16 %v2234, %v2234
        %v2491 = vpack.c.bf16 %v2235, %v2235
        %v2492 = vpack.c.bf16 %v2236, %v2236
        %v2493 = vpack.c.bf16 %v2237, %v2237
        %v2494 = vpack.c.bf16 %v2238, %v2238
        %v2495 = vpack.c.bf16 %v2239, %v2239
        %v2496 = vpack.c.bf16 %v2240, %v2240
        %v2497 = vpack.c.bf16 %v2241, %v2241
        %v2498 = vpack.c.bf16 %v2242, %v2242
        %v2499 = vpack.c.bf16 %v2243, %v2243
        %v2500 = vpack.c.bf16 %v2244, %v2244
        %v2501 = vpack.c.bf16 %v2245, %v2245
        %v2502 = vpack.c.bf16 %v2246, %v2246
        %v2503 = vpack.c.bf16 %v2247, %v2247
        %v2504 = vpack.c.bf16 %v2248, %v2248
        %v2505 = vpack.c.bf16 %v2249, %v2249
        %v2506 = vpack.c.bf16 %v2250, %v2250
        %v2507 = vpack.c.bf16 %v2251, %v2251
        %v2508 = vpack.c.bf16 %v2252, %v2252
        %v2509 = vpack.c.bf16 %v2253, %v2253
        %v2510 = vpack.c.bf16 %v2254, %v2254
        %v2511 = vpack.c.bf16 %v2255, %v2255
        %v2512 = vpack.c.bf16 %v2256, %v2256
        %v2529 = vunpack.c.l.b16 %v2385
        %v2530 = vunpack.c.l.b16 %v2386
        %v2531 = vunpack.c.l.b16 %v2387
        %v2532 = vunpack.c.l.b16 %v2388
        %v2533 = vunpack.c.l.b16 %v2389
        %v2534 = vunpack.c.l.b16 %v2390
        %v2535 = vunpack.c.l.b16 %v2391
        %v2536 = vunpack.c.l.b16 %v2392
        %v2537 = vunpack.c.l.b16 %v2393
        %v2538 = vunpack.c.l.b16 %v2394
        %v2539 = vunpack.c.l.b16 %v2395
        %v2540 = vunpack.c.l.b16 %v2396
        %v2541 = vunpack.c.l.b16 %v2397
        %v2542 = vunpack.c.l.b16 %v2398
        %v2543 = vunpack.c.l.b16 %v2399
        %v2544 = vunpack.c.l.b16 %v2400
        %v2545 = vpack.c.b16 %v2530, %v2529
        %v2546 = vpack.c.b16 %v2532, %v2531
        %v2547 = vpack.c.b16 %v2534, %v2533
        %v2548 = vpack.c.b16 %v2536, %v2535
        %v2549 = vpack.c.b16 %v2538, %v2537
        %v2550 = vpack.c.b16 %v2540, %v2539
        %v2551 = vpack.c.b16 %v2542, %v2541
        %v2552 = vpack.c.b16 %v2544, %v2543
        %v2577 = vunpack.c.l.b16 %v2257
        %v2578 = vunpack.c.l.b16 %v2258
        %v2579 = vunpack.c.l.b16 %v2259
        %v2580 = vunpack.c.l.b16 %v2260
        %v2581 = vunpack.c.l.b16 %v2261
        %v2582 = vunpack.c.l.b16 %v2262
        %v2583 = vunpack.c.l.b16 %v2263
        %v2584 = vunpack.c.l.b16 %v2264
        %v2585 = vunpack.c.l.b16 %v2265
        %v2586 = vunpack.c.l.b16 %v2266
        %v2587 = vunpack.c.l.b16 %v2267
        %v2588 = vunpack.c.l.b16 %v2268
        %v2589 = vunpack.c.l.b16 %v2269
        %v2590 = vunpack.c.l.b16 %v2270
        %v2591 = vunpack.c.l.b16 %v2271
        %v2592 = vunpack.c.l.b16 %v2272
        %v2593 = vpack.c.b16 %v2578, %v2577
        %v2594 = vpack.c.b16 %v2580, %v2579
        %v2595 = vpack.c.b16 %v2582, %v2581
        %v2596 = vpack.c.b16 %v2584, %v2583
        %v2597 = vpack.c.b16 %v2586, %v2585
        %v2598 = vpack.c.b16 %v2588, %v2587
        %v2599 = vpack.c.b16 %v2590, %v2589
        %v2600 = vpack.c.b16 %v2592, %v2591
        %2609 = vmatpush.bf16.msra.mxu0 %v2600
        %2610 = vmatpush.bf16.msra.mxu0 %v2599
        %2611 = vmatpush.bf16.msra.mxu0 %v2598
        %2612 = vmatpush.bf16.msra.mxu0 %v2597
        %2613 = vmatpush.bf16.msra.mxu0 %v2596
        %2614 = vmatpush.bf16.msra.mxu0 %v2595
        %2615 = vmatpush.bf16.msra.mxu0 %v2594
        %2616 = vmatpush.bf16.msra.mxu0 %v2593
        %2617 = vmatmul.bf16.gmra.mxu0 %v2545
        %v2618 = vpop.f32.mrf.mxu0
        %v2619 = vadd.f32 0.0, %v2618
        %v2620 = vpop.f32.mrf.mxu0
        %v2621 = vadd.f32 0.0, %v2620
        %2622 = vmatmul.bf16.gmra.mxu0 %v2546
        %v2623 = vpop.f32.mrf.mxu0
        %v2624 = vadd.f32 0.0, %v2623
        %v2625 = vpop.f32.mrf.mxu0
        %v2626 = vadd.f32 0.0, %v2625
        %2627 = vmatmul.bf16.gmra.mxu0 %v2547
        %v2628 = vpop.f32.mrf.mxu0
        %v2629 = vadd.f32 0.0, %v2628
        %v2630 = vpop.f32.mrf.mxu0
        %v2631 = vadd.f32 0.0, %v2630
        %2632 = vmatmul.bf16.gmra.mxu0 %v2548
        %v2633 = vpop.f32.mrf.mxu0
        %v2634 = vadd.f32 0.0, %v2633
        %v2635 = vpop.f32.mrf.mxu0
        %v2636 = vadd.f32 0.0, %v2635
        %2637 = vmatmul.bf16.gmra.mxu0 %v2549
        %v2638 = vpop.f32.mrf.mxu0
        %v2639 = vadd.f32 0.0, %v2638
        %v2640 = vpop.f32.mrf.mxu0
        %v2641 = vadd.f32 0.0, %v2640
        %2642 = vmatmul.bf16.gmra.mxu0 %v2550
        %v2643 = vpop.f32.mrf.mxu0
        %v2644 = vadd.f32 0.0, %v2643
        %v2645 = vpop.f32.mrf.mxu0
        %v2646 = vadd.f32 0.0, %v2645
        %2647 = vmatmul.bf16.gmra.mxu0 %v2551
        %v2648 = vpop.f32.mrf.mxu0
        %v2649 = vadd.f32 0.0, %v2648
        %v2650 = vpop.f32.mrf.mxu0
        %v2651 = vadd.f32 0.0, %v2650
        %2652 = vmatmul.bf16.gmra.mxu0 %v2552
        %v2653 = vpop.f32.mrf.mxu0
        %v2654 = vadd.f32 0.0, %v2653
        %v2655 = vpop.f32.mrf.mxu0
        %v2656 = vadd.f32 0.0, %v2655
        %2657 = vdwg.mxu0
        %v2674 = vunpack.c.l.b16 %v2401
        %v2675 = vunpack.c.l.b16 %v2402
        %v2676 = vunpack.c.l.b16 %v2403
        %v2677 = vunpack.c.l.b16 %v2404
        %v2678 = vunpack.c.l.b16 %v2405
        %v2679 = vunpack.c.l.b16 %v2406
        %v2680 = vunpack.c.l.b16 %v2407
        %v2681 = vunpack.c.l.b16 %v2408
        %v2682 = vunpack.c.l.b16 %v2409
        %v2683 = vunpack.c.l.b16 %v2410
        %v2684 = vunpack.c.l.b16 %v2411
        %v2685 = vunpack.c.l.b16 %v2412
        %v2686 = vunpack.c.l.b16 %v2413
        %v2687 = vunpack.c.l.b16 %v2414
        %v2688 = vunpack.c.l.b16 %v2415
        %v2689 = vunpack.c.l.b16 %v2416
        %v2690 = vpack.c.b16 %v2675, %v2674
        %v2691 = vpack.c.b16 %v2677, %v2676
        %v2692 = vpack.c.b16 %v2679, %v2678
        %v2693 = vpack.c.b16 %v2681, %v2680
        %v2694 = vpack.c.b16 %v2683, %v2682
        %v2695 = vpack.c.b16 %v2685, %v2684
        %v2696 = vpack.c.b16 %v2687, %v2686
        %v2697 = vpack.c.b16 %v2689, %v2688
        %v2722 = vunpack.c.l.b16 %v2273
        %v2723 = vunpack.c.l.b16 %v2274
        %v2724 = vunpack.c.l.b16 %v2275
        %v2725 = vunpack.c.l.b16 %v2276
        %v2726 = vunpack.c.l.b16 %v2277
        %v2727 = vunpack.c.l.b16 %v2278
        %v2728 = vunpack.c.l.b16 %v2279
        %v2729 = vunpack.c.l.b16 %v2280
        %v2730 = vunpack.c.l.b16 %v2281
        %v2731 = vunpack.c.l.b16 %v2282
        %v2732 = vunpack.c.l.b16 %v2283
        %v2733 = vunpack.c.l.b16 %v2284
        %v2734 = vunpack.c.l.b16 %v2285
        %v2735 = vunpack.c.l.b16 %v2286
        %v2736 = vunpack.c.l.b16 %v2287
        %v2737 = vunpack.c.l.b16 %v2288
        %v2738 = vpack.c.b16 %v2723, %v2722
        %v2739 = vpack.c.b16 %v2725, %v2724
        %v2740 = vpack.c.b16 %v2727, %v2726
        %v2741 = vpack.c.b16 %v2729, %v2728
        %v2742 = vpack.c.b16 %v2731, %v2730
        %v2743 = vpack.c.b16 %v2733, %v2732
        %v2744 = vpack.c.b16 %v2735, %v2734
        %v2745 = vpack.c.b16 %v2737, %v2736
        %2754 = vmatpush.bf16.msra.mxu0 %v2745
        %2755 = vmatpush.bf16.msra.mxu0 %v2744
        %2756 = vmatpush.bf16.msra.mxu0 %v2743
        %2757 = vmatpush.bf16.msra.mxu0 %v2742
        %2758 = vmatpush.bf16.msra.mxu0 %v2741
        %2759 = vmatpush.bf16.msra.mxu0 %v2740
        %2760 = vmatpush.bf16.msra.mxu0 %v2739
        %2761 = vmatpush.bf16.msra.mxu0 %v2738
        %2762 = vmatmul.bf16.gmra.mxu0 %v2690
        %v2763 = vpop.f32.mrf.mxu0
        %v2764 = vadd.f32 0.0, %v2763
        %v2765 = vpop.f32.mrf.mxu0
        %v2766 = vadd.f32 0.0, %v2765
        %2767 = vmatmul.bf16.gmra.mxu0 %v2691
        %v2768 = vpop.f32.mrf.mxu0
        %v2769 = vadd.f32 0.0, %v2768
        %v2770 = vpop.f32.mrf.mxu0
        %v2771 = vadd.f32 0.0, %v2770
        %2772 = vmatmul.bf16.gmra.mxu0 %v2692
        %v2773 = vpop.f32.mrf.mxu0
        %v2774 = vadd.f32 0.0, %v2773
        %v2775 = vpop.f32.mrf.mxu0
        %v2776 = vadd.f32 0.0, %v2775
        %2777 = vmatmul.bf16.gmra.mxu0 %v2693
        %v2778 = vpop.f32.mrf.mxu0
        %v2779 = vadd.f32 0.0, %v2778
        %v2780 = vpop.f32.mrf.mxu0
        %v2781 = vadd.f32 0.0, %v2780
        %2782 = vmatmul.bf16.gmra.mxu0 %v2694
        %v2783 = vpop.f32.mrf.mxu0
        %v2784 = vadd.f32 0.0, %v2783
        %v2785 = vpop.f32.mrf.mxu0
        %v2786 = vadd.f32 0.0, %v2785
        %2787 = vmatmul.bf16.gmra.mxu0 %v2695
        %v2788 = vpop.f32.mrf.mxu0
        %v2789 = vadd.f32 0.0, %v2788
        %v2790 = vpop.f32.mrf.mxu0
        %v2791 = vadd.f32 0.0, %v2790
        %2792 = vmatmul.bf16.gmra.mxu0 %v2696
        %v2793 = vpop.f32.mrf.mxu0
        %v2794 = vadd.f32 0.0, %v2793
        %v2795 = vpop.f32.mrf.mxu0
        %v2796 = vadd.f32 0.0, %v2795
        %2797 = vmatmul.bf16.gmra.mxu0 %v2697
        %v2798 = vpop.f32.mrf.mxu0
        %v2799 = vadd.f32 0.0, %v2798
        %v2800 = vpop.f32.mrf.mxu0
        %v2801 = vadd.f32 0.0, %v2800
        %2802 = vdwg.mxu0
        %v2819 = vunpack.c.l.b16 %v2417
        %v2820 = vunpack.c.l.b16 %v2418
        %v2821 = vunpack.c.l.b16 %v2419
        %v2822 = vunpack.c.l.b16 %v2420
        %v2823 = vunpack.c.l.b16 %v2421
        %v2824 = vunpack.c.l.b16 %v2422
        %v2825 = vunpack.c.l.b16 %v2423
        %v2826 = vunpack.c.l.b16 %v2424
        %v2827 = vunpack.c.l.b16 %v2425
        %v2828 = vunpack.c.l.b16 %v2426
        %v2829 = vunpack.c.l.b16 %v2427
        %v2830 = vunpack.c.l.b16 %v2428
        %v2831 = vunpack.c.l.b16 %v2429
        %v2832 = vunpack.c.l.b16 %v2430
        %v2833 = vunpack.c.l.b16 %v2431
        %v2834 = vunpack.c.l.b16 %v2432
        %v2835 = vpack.c.b16 %v2820, %v2819
        %v2836 = vpack.c.b16 %v2822, %v2821
        %v2837 = vpack.c.b16 %v2824, %v2823
        %v2838 = vpack.c.b16 %v2826, %v2825
        %v2839 = vpack.c.b16 %v2828, %v2827
        %v2840 = vpack.c.b16 %v2830, %v2829
        %v2841 = vpack.c.b16 %v2832, %v2831
        %v2842 = vpack.c.b16 %v2834, %v2833
        %v2867 = vunpack.c.l.b16 %v2289
        %v2868 = vunpack.c.l.b16 %v2290
        %v2869 = vunpack.c.l.b16 %v2291
        %v2870 = vunpack.c.l.b16 %v2292
        %v2871 = vunpack.c.l.b16 %v2293
        %v2872 = vunpack.c.l.b16 %v2294
        %v2873 = vunpack.c.l.b16 %v2295
        %v2874 = vunpack.c.l.b16 %v2296
        %v2875 = vunpack.c.l.b16 %v2297
        %v2876 = vunpack.c.l.b16 %v2298
        %v2877 = vunpack.c.l.b16 %v2299
        %v2878 = vunpack.c.l.b16 %v2300
        %v2879 = vunpack.c.l.b16 %v2301
        %v2880 = vunpack.c.l.b16 %v2302
        %v2881 = vunpack.c.l.b16 %v2303
        %v2882 = vunpack.c.l.b16 %v2304
        %v2883 = vpack.c.b16 %v2868, %v2867
        %v2884 = vpack.c.b16 %v2870, %v2869
        %v2885 = vpack.c.b16 %v2872, %v2871
        %v2886 = vpack.c.b16 %v2874, %v2873
        %v2887 = vpack.c.b16 %v2876, %v2875
        %v2888 = vpack.c.b16 %v2878, %v2877
        %v2889 = vpack.c.b16 %v2880, %v2879
        %v2890 = vpack.c.b16 %v2882, %v2881
        %2899 = vmatpush.bf16.msra.mxu0 %v2890
        %2900 = vmatpush.bf16.msra.mxu0 %v2889
        %2901 = vmatpush.bf16.msra.mxu0 %v2888
        %2902 = vmatpush.bf16.msra.mxu0 %v2887
        %2903 = vmatpush.bf16.msra.mxu0 %v2886
        %2904 = vmatpush.bf16.msra.mxu0 %v2885
        %2905 = vmatpush.bf16.msra.mxu0 %v2884
        %2906 = vmatpush.bf16.msra.mxu0 %v2883
        %2907 = vmatmul.bf16.gmra.mxu0 %v2835
        %v2908 = vpop.f32.mrf.mxu0
        %v2909 = vadd.f32 0.0, %v2908
        %v2910 = vpop.f32.mrf.mxu0
        %v2911 = vadd.f32 0.0, %v2910
        %2912 = vmatmul.bf16.gmra.mxu0 %v2836
        %v2913 = vpop.f32.mrf.mxu0
        %v2914 = vadd.f32 0.0, %v2913
        %v2915 = vpop.f32.mrf.mxu0
        %v2916 = vadd.f32 0.0, %v2915
        %2917 = vmatmul.bf16.gmra.mxu0 %v2837
        %v2918 = vpop.f32.mrf.mxu0
        %v2919 = vadd.f32 0.0, %v2918
        %v2920 = vpop.f32.mrf.mxu0
        %v2921 = vadd.f32 0.0, %v2920
        %2922 = vmatmul.bf16.gmra.mxu0 %v2838
        %v2923 = vpop.f32.mrf.mxu0
        %v2924 = vadd.f32 0.0, %v2923
        %v2925 = vpop.f32.mrf.mxu0
        %v2926 = vadd.f32 0.0, %v2925
        %2927 = vmatmul.bf16.gmra.mxu0 %v2839
        %v2928 = vpop.f32.mrf.mxu0
        %v2929 = vadd.f32 0.0, %v2928
        %v2930 = vpop.f32.mrf.mxu0
        %v2931 = vadd.f32 0.0, %v2930
        %2932 = vmatmul.bf16.gmra.mxu0 %v2840
        %v2933 = vpop.f32.mrf.mxu0
        %v2934 = vadd.f32 0.0, %v2933
        %v2935 = vpop.f32.mrf.mxu0
        %v2936 = vadd.f32 0.0, %v2935
        %2937 = vmatmul.bf16.gmra.mxu0 %v2841
        %v2938 = vpop.f32.mrf.mxu0
        %v2939 = vadd.f32 0.0, %v2938
        %v2940 = vpop.f32.mrf.mxu0
        %v2941 = vadd.f32 0.0, %v2940
        %2942 = vmatmul.bf16.gmra.mxu0 %v2842
        %v2943 = vpop.f32.mrf.mxu0
        %v2944 = vadd.f32 0.0, %v2943
        %v2945 = vpop.f32.mrf.mxu0
        %v2946 = vadd.f32 0.0, %v2945
        %2947 = vdwg.mxu0
        %v2964 = vunpack.c.l.b16 %v2433
        %v2965 = vunpack.c.l.b16 %v2434
        %v2966 = vunpack.c.l.b16 %v2435
        %v2967 = vunpack.c.l.b16 %v2436
        %v2968 = vunpack.c.l.b16 %v2437
        %v2969 = vunpack.c.l.b16 %v2438
        %v2970 = vunpack.c.l.b16 %v2439
        %v2971 = vunpack.c.l.b16 %v2440
        %v2972 = vunpack.c.l.b16 %v2441
        %v2973 = vunpack.c.l.b16 %v2442
        %v2974 = vunpack.c.l.b16 %v2443
        %v2975 = vunpack.c.l.b16 %v2444
        %v2976 = vunpack.c.l.b16 %v2445
        %v2977 = vunpack.c.l.b16 %v2446
        %v2978 = vunpack.c.l.b16 %v2447
        %v2979 = vunpack.c.l.b16 %v2448
        %v2980 = vpack.c.b16 %v2965, %v2964
        %v2981 = vpack.c.b16 %v2967, %v2966
        %v2982 = vpack.c.b16 %v2969, %v2968
        %v2983 = vpack.c.b16 %v2971, %v2970
        %v2984 = vpack.c.b16 %v2973, %v2972
        %v2985 = vpack.c.b16 %v2975, %v2974
        %v2986 = vpack.c.b16 %v2977, %v2976
        %v2987 = vpack.c.b16 %v2979, %v2978
        %v3012 = vunpack.c.l.b16 %v2305
        %v3013 = vunpack.c.l.b16 %v2306
        %v3014 = vunpack.c.l.b16 %v2307
        %v3015 = vunpack.c.l.b16 %v2308
        %v3016 = vunpack.c.l.b16 %v2309
        %v3017 = vunpack.c.l.b16 %v2310
        %v3018 = vunpack.c.l.b16 %v2311
        %v3019 = vunpack.c.l.b16 %v2312
        %v3020 = vunpack.c.l.b16 %v2313
        %v3021 = vunpack.c.l.b16 %v2314
        %v3022 = vunpack.c.l.b16 %v2315
        %v3023 = vunpack.c.l.b16 %v2316
        %v3024 = vunpack.c.l.b16 %v2317
        %v3025 = vunpack.c.l.b16 %v2318
        %v3026 = vunpack.c.l.b16 %v2319
        %v3027 = vunpack.c.l.b16 %v2320
        %v3028 = vpack.c.b16 %v3013, %v3012
        %v3029 = vpack.c.b16 %v3015, %v3014
        %v3030 = vpack.c.b16 %v3017, %v3016
        %v3031 = vpack.c.b16 %v3019, %v3018
        %v3032 = vpack.c.b16 %v3021, %v3020
        %v3033 = vpack.c.b16 %v3023, %v3022
        %v3034 = vpack.c.b16 %v3025, %v3024
        %v3035 = vpack.c.b16 %v3027, %v3026
        %3044 = vmatpush.bf16.msra.mxu0 %v3035
        %3045 = vmatpush.bf16.msra.mxu0 %v3034
        %3046 = vmatpush.bf16.msra.mxu0 %v3033
        %3047 = vmatpush.bf16.msra.mxu0 %v3032
        %3048 = vmatpush.bf16.msra.mxu0 %v3031
        %3049 = vmatpush.bf16.msra.mxu0 %v3030
        %3050 = vmatpush.bf16.msra.mxu0 %v3029
        %3051 = vmatpush.bf16.msra.mxu0 %v3028
        %3052 = vmatmul.bf16.gmra.mxu0 %v2980
        %v3053 = vpop.f32.mrf.mxu0
        %v3054 = vadd.f32 0.0, %v3053
        %v3055 = vpop.f32.mrf.mxu0
        %v3056 = vadd.f32 0.0, %v3055
        %3057 = vmatmul.bf16.gmra.mxu0 %v2981
        %v3058 = vpop.f32.mrf.mxu0
        %v3059 = vadd.f32 0.0, %v3058
        %v3060 = vpop.f32.mrf.mxu0
        %v3061 = vadd.f32 0.0, %v3060
        %3062 = vmatmul.bf16.gmra.mxu0 %v2982
        %v3063 = vpop.f32.mrf.mxu0
        %v3064 = vadd.f32 0.0, %v3063
        %v3065 = vpop.f32.mrf.mxu0
        %v3066 = vadd.f32 0.0, %v3065
        %3067 = vmatmul.bf16.gmra.mxu0 %v2983
        %v3068 = vpop.f32.mrf.mxu0
        %v3069 = vadd.f32 0.0, %v3068
        %v3070 = vpop.f32.mrf.mxu0
        %v3071 = vadd.f32 0.0, %v3070
        %3072 = vmatmul.bf16.gmra.mxu0 %v2984
        %v3073 = vpop.f32.mrf.mxu0
        %v3074 = vadd.f32 0.0, %v3073
        %v3075 = vpop.f32.mrf.mxu0
        %v3076 = vadd.f32 0.0, %v3075
        %3077 = vmatmul.bf16.gmra.mxu0 %v2985
        %v3078 = vpop.f32.mrf.mxu0
        %v3079 = vadd.f32 0.0, %v3078
        %v3080 = vpop.f32.mrf.mxu0
        %v3081 = vadd.f32 0.0, %v3080
        %3082 = vmatmul.bf16.gmra.mxu0 %v2986
        %v3083 = vpop.f32.mrf.mxu0
        %v3084 = vadd.f32 0.0, %v3083
        %v3085 = vpop.f32.mrf.mxu0
        %v3086 = vadd.f32 0.0, %v3085
        %3087 = vmatmul.bf16.gmra.mxu0 %v2987
        %v3088 = vpop.f32.mrf.mxu0
        %v3089 = vadd.f32 0.0, %v3088
        %v3090 = vpop.f32.mrf.mxu0
        %v3091 = vadd.f32 0.0, %v3090
        %3092 = vdwg.mxu0
        %v3109 = vunpack.c.l.b16 %v2449
        %v3110 = vunpack.c.l.b16 %v2450
        %v3111 = vunpack.c.l.b16 %v2451
        %v3112 = vunpack.c.l.b16 %v2452
        %v3113 = vunpack.c.l.b16 %v2453
        %v3114 = vunpack.c.l.b16 %v2454
        %v3115 = vunpack.c.l.b16 %v2455
        %v3116 = vunpack.c.l.b16 %v2456
        %v3117 = vunpack.c.l.b16 %v2457
        %v3118 = vunpack.c.l.b16 %v2458
        %v3119 = vunpack.c.l.b16 %v2459
        %v3120 = vunpack.c.l.b16 %v2460
        %v3121 = vunpack.c.l.b16 %v2461
        %v3122 = vunpack.c.l.b16 %v2462
        %v3123 = vunpack.c.l.b16 %v2463
        %v3124 = vunpack.c.l.b16 %v2464
        %v3125 = vpack.c.b16 %v3110, %v3109
        %v3126 = vpack.c.b16 %v3112, %v3111
        %v3127 = vpack.c.b16 %v3114, %v3113
        %v3128 = vpack.c.b16 %v3116, %v3115
        %v3129 = vpack.c.b16 %v3118, %v3117
        %v3130 = vpack.c.b16 %v3120, %v3119
        %v3131 = vpack.c.b16 %v3122, %v3121
        %v3132 = vpack.c.b16 %v3124, %v3123
        %v3157 = vunpack.c.l.b16 %v2321
        %v3158 = vunpack.c.l.b16 %v2322
        %v3159 = vunpack.c.l.b16 %v2323
        %v3160 = vunpack.c.l.b16 %v2324
        %v3161 = vunpack.c.l.b16 %v2325
        %v3162 = vunpack.c.l.b16 %v2326
        %v3163 = vunpack.c.l.b16 %v2327
        %v3164 = vunpack.c.l.b16 %v2328
        %v3165 = vunpack.c.l.b16 %v2329
        %v3166 = vunpack.c.l.b16 %v2330
        %v3167 = vunpack.c.l.b16 %v2331
        %v3168 = vunpack.c.l.b16 %v2332
        %v3169 = vunpack.c.l.b16 %v2333
        %v3170 = vunpack.c.l.b16 %v2334
        %v3171 = vunpack.c.l.b16 %v2335
        %v3172 = vunpack.c.l.b16 %v2336
        %v3173 = vpack.c.b16 %v3158, %v3157
        %v3174 = vpack.c.b16 %v3160, %v3159
        %v3175 = vpack.c.b16 %v3162, %v3161
        %v3176 = vpack.c.b16 %v3164, %v3163
        %v3177 = vpack.c.b16 %v3166, %v3165
        %v3178 = vpack.c.b16 %v3168, %v3167
        %v3179 = vpack.c.b16 %v3170, %v3169
        %v3180 = vpack.c.b16 %v3172, %v3171
        %3189 = vmatpush.bf16.msra.mxu0 %v3180
        %3190 = vmatpush.bf16.msra.mxu0 %v3179
        %3191 = vmatpush.bf16.msra.mxu0 %v3178
        %3192 = vmatpush.bf16.msra.mxu0 %v3177
        %3193 = vmatpush.bf16.msra.mxu0 %v3176
        %3194 = vmatpush.bf16.msra.mxu0 %v3175
        %3195 = vmatpush.bf16.msra.mxu0 %v3174
        %3196 = vmatpush.bf16.msra.mxu0 %v3173
        %3197 = vmatmul.bf16.gmra.mxu0 %v3125
        %v3198 = vpop.f32.mrf.mxu0
        %v3199 = vadd.f32 0.0, %v3198
        %v3200 = vpop.f32.mrf.mxu0
        %v3201 = vadd.f32 0.0, %v3200
        %3202 = vmatmul.bf16.gmra.mxu0 %v3126
        %v3203 = vpop.f32.mrf.mxu0
        %v3204 = vadd.f32 0.0, %v3203
        %v3205 = vpop.f32.mrf.mxu0
        %v3206 = vadd.f32 0.0, %v3205
        %3207 = vmatmul.bf16.gmra.mxu0 %v3127
        %v3208 = vpop.f32.mrf.mxu0
        %v3209 = vadd.f32 0.0, %v3208
        %v3210 = vpop.f32.mrf.mxu0
        %v3211 = vadd.f32 0.0, %v3210
        %3212 = vmatmul.bf16.gmra.mxu0 %v3128
        %v3213 = vpop.f32.mrf.mxu0
        %v3214 = vadd.f32 0.0, %v3213
        %v3215 = vpop.f32.mrf.mxu0
        %v3216 = vadd.f32 0.0, %v3215
        %3217 = vmatmul.bf16.gmra.mxu0 %v3129
        %v3218 = vpop.f32.mrf.mxu0
        %v3219 = vadd.f32 0.0, %v3218
        %v3220 = vpop.f32.mrf.mxu0
        %v3221 = vadd.f32 0.0, %v3220
        %3222 = vmatmul.bf16.gmra.mxu0 %v3130
        %v3223 = vpop.f32.mrf.mxu0
        %v3224 = vadd.f32 0.0, %v3223
        %v3225 = vpop.f32.mrf.mxu0
        %v3226 = vadd.f32 0.0, %v3225
        %3227 = vmatmul.bf16.gmra.mxu0 %v3131
        %v3228 = vpop.f32.mrf.mxu0
        %v3229 = vadd.f32 0.0, %v3228
        %v3230 = vpop.f32.mrf.mxu0
        %v3231 = vadd.f32 0.0, %v3230
        %3232 = vmatmul.bf16.gmra.mxu0 %v3132
        %v3233 = vpop.f32.mrf.mxu0
        %v3234 = vadd.f32 0.0, %v3233
        %v3235 = vpop.f32.mrf.mxu0
        %v3236 = vadd.f32 0.0, %v3235
        %3237 = vdwg.mxu0
        %v3254 = vunpack.c.l.b16 %v2465
        %v3255 = vunpack.c.l.b16 %v2466
        %v3256 = vunpack.c.l.b16 %v2467
        %v3257 = vunpack.c.l.b16 %v2468
        %v3258 = vunpack.c.l.b16 %v2469
        %v3259 = vunpack.c.l.b16 %v2470
        %v3260 = vunpack.c.l.b16 %v2471
        %v3261 = vunpack.c.l.b16 %v2472
        %v3262 = vunpack.c.l.b16 %v2473
        %v3263 = vunpack.c.l.b16 %v2474
        %v3264 = vunpack.c.l.b16 %v2475
        %v3265 = vunpack.c.l.b16 %v2476
        %v3266 = vunpack.c.l.b16 %v2477
        %v3267 = vunpack.c.l.b16 %v2478
        %v3268 = vunpack.c.l.b16 %v2479
        %v3269 = vunpack.c.l.b16 %v2480
        %v3270 = vpack.c.b16 %v3255, %v3254
        %v3271 = vpack.c.b16 %v3257, %v3256
        %v3272 = vpack.c.b16 %v3259, %v3258
        %v3273 = vpack.c.b16 %v3261, %v3260
        %v3274 = vpack.c.b16 %v3263, %v3262
        %v3275 = vpack.c.b16 %v3265, %v3264
        %v3276 = vpack.c.b16 %v3267, %v3266
        %v3277 = vpack.c.b16 %v3269, %v3268
        %v3302 = vunpack.c.l.b16 %v2337
        %v3303 = vunpack.c.l.b16 %v2338
        %v3304 = vunpack.c.l.b16 %v2339
        %v3305 = vunpack.c.l.b16 %v2340
        %v3306 = vunpack.c.l.b16 %v2341
        %v3307 = vunpack.c.l.b16 %v2342
        %v3308 = vunpack.c.l.b16 %v2343
        %v3309 = vunpack.c.l.b16 %v2344
        %v3310 = vunpack.c.l.b16 %v2345
        %v3311 = vunpack.c.l.b16 %v2346
        %v3312 = vunpack.c.l.b16 %v2347
        %v3313 = vunpack.c.l.b16 %v2348
        %v3314 = vunpack.c.l.b16 %v2349
        %v3315 = vunpack.c.l.b16 %v2350
        %v3316 = vunpack.c.l.b16 %v2351
        %v3317 = vunpack.c.l.b16 %v2352
        %v3318 = vpack.c.b16 %v3303, %v3302
        %v3319 = vpack.c.b16 %v3305, %v3304
        %v3320 = vpack.c.b16 %v3307, %v3306
        %v3321 = vpack.c.b16 %v3309, %v3308
        %v3322 = vpack.c.b16 %v3311, %v3310
        %v3323 = vpack.c.b16 %v3313, %v3312
        %v3324 = vpack.c.b16 %v3315, %v3314
        %v3325 = vpack.c.b16 %v3317, %v3316
        %3334 = vmatpush.bf16.msra.mxu0 %v3325
        %3335 = vmatpush.bf16.msra.mxu0 %v3324
        %3336 = vmatpush.bf16.msra.mxu0 %v3323
        %3337 = vmatpush.bf16.msra.mxu0 %v3322
        %3338 = vmatpush.bf16.msra.mxu0 %v3321
        %3339 = vmatpush.bf16.msra.mxu0 %v3320
        %3340 = vmatpush.bf16.msra.mxu0 %v3319
        %3341 = vmatpush.bf16.msra.mxu0 %v3318
        %3342 = vmatmul.bf16.gmra.mxu0 %v3270
        %v3343 = vpop.f32.mrf.mxu0
        %v3344 = vadd.f32 0.0, %v3343
        %v3345 = vpop.f32.mrf.mxu0
        %v3346 = vadd.f32 0.0, %v3345
        %3347 = vmatmul.bf16.gmra.mxu0 %v3271
        %v3348 = vpop.f32.mrf.mxu0
        %v3349 = vadd.f32 0.0, %v3348
        %v3350 = vpop.f32.mrf.mxu0
        %v3351 = vadd.f32 0.0, %v3350
        %3352 = vmatmul.bf16.gmra.mxu0 %v3272
        %v3353 = vpop.f32.mrf.mxu0
        %v3354 = vadd.f32 0.0, %v3353
        %v3355 = vpop.f32.mrf.mxu0
        %v3356 = vadd.f32 0.0, %v3355
        %3357 = vmatmul.bf16.gmra.mxu0 %v3273
        %v3358 = vpop.f32.mrf.mxu0
        %v3359 = vadd.f32 0.0, %v3358
        %v3360 = vpop.f32.mrf.mxu0
        %v3361 = vadd.f32 0.0, %v3360
        %3362 = vmatmul.bf16.gmra.mxu0 %v3274
        %v3363 = vpop.f32.mrf.mxu0
        %v3364 = vadd.f32 0.0, %v3363
        %v3365 = vpop.f32.mrf.mxu0
        %v3366 = vadd.f32 0.0, %v3365
        %3367 = vmatmul.bf16.gmra.mxu0 %v3275
        %v3368 = vpop.f32.mrf.mxu0
        %v3369 = vadd.f32 0.0, %v3368
        %v3370 = vpop.f32.mrf.mxu0
        %v3371 = vadd.f32 0.0, %v3370
        %3372 = vmatmul.bf16.gmra.mxu0 %v3276
        %v3373 = vpop.f32.mrf.mxu0
        %v3374 = vadd.f32 0.0, %v3373
        %v3375 = vpop.f32.mrf.mxu0
        %v3376 = vadd.f32 0.0, %v3375
        %3377 = vmatmul.bf16.gmra.mxu0 %v3277
        %v3378 = vpop.f32.mrf.mxu0
        %v3379 = vadd.f32 0.0, %v3378
        %v3380 = vpop.f32.mrf.mxu0
        %v3381 = vadd.f32 0.0, %v3380
        %3382 = vdwg.mxu0
        %v3399 = vunpack.c.l.b16 %v2481
        %v3400 = vunpack.c.l.b16 %v2482
        %v3401 = vunpack.c.l.b16 %v2483
        %v3402 = vunpack.c.l.b16 %v2484
        %v3403 = vunpack.c.l.b16 %v2485
        %v3404 = vunpack.c.l.b16 %v2486
        %v3405 = vunpack.c.l.b16 %v2487
        %v3406 = vunpack.c.l.b16 %v2488
        %v3407 = vunpack.c.l.b16 %v2489
        %v3408 = vunpack.c.l.b16 %v2490
        %v3409 = vunpack.c.l.b16 %v2491
        %v3410 = vunpack.c.l.b16 %v2492
        %v3411 = vunpack.c.l.b16 %v2493
        %v3412 = vunpack.c.l.b16 %v2494
        %v3413 = vunpack.c.l.b16 %v2495
        %v3414 = vunpack.c.l.b16 %v2496
        %v3415 = vpack.c.b16 %v3400, %v3399
        %v3416 = vpack.c.b16 %v3402, %v3401
        %v3417 = vpack.c.b16 %v3404, %v3403
        %v3418 = vpack.c.b16 %v3406, %v3405
        %v3419 = vpack.c.b16 %v3408, %v3407
        %v3420 = vpack.c.b16 %v3410, %v3409
        %v3421 = vpack.c.b16 %v3412, %v3411
        %v3422 = vpack.c.b16 %v3414, %v3413
        %v3447 = vunpack.c.l.b16 %v2353
        %v3448 = vunpack.c.l.b16 %v2354
        %v3449 = vunpack.c.l.b16 %v2355
        %v3450 = vunpack.c.l.b16 %v2356
        %v3451 = vunpack.c.l.b16 %v2357
        %v3452 = vunpack.c.l.b16 %v2358
        %v3453 = vunpack.c.l.b16 %v2359
        %v3454 = vunpack.c.l.b16 %v2360
        %v3455 = vunpack.c.l.b16 %v2361
        %v3456 = vunpack.c.l.b16 %v2362
        %v3457 = vunpack.c.l.b16 %v2363
        %v3458 = vunpack.c.l.b16 %v2364
        %v3459 = vunpack.c.l.b16 %v2365
        %v3460 = vunpack.c.l.b16 %v2366
        %v3461 = vunpack.c.l.b16 %v2367
        %v3462 = vunpack.c.l.b16 %v2368
        %v3463 = vpack.c.b16 %v3448, %v3447
        %v3464 = vpack.c.b16 %v3450, %v3449
        %v3465 = vpack.c.b16 %v3452, %v3451
        %v3466 = vpack.c.b16 %v3454, %v3453
        %v3467 = vpack.c.b16 %v3456, %v3455
        %v3468 = vpack.c.b16 %v3458, %v3457
        %v3469 = vpack.c.b16 %v3460, %v3459
        %v3470 = vpack.c.b16 %v3462, %v3461
        %3479 = vmatpush.bf16.msra.mxu0 %v3470
        %3480 = vmatpush.bf16.msra.mxu0 %v3469
        %3481 = vmatpush.bf16.msra.mxu0 %v3468
        %3482 = vmatpush.bf16.msra.mxu0 %v3467
        %3483 = vmatpush.bf16.msra.mxu0 %v3466
        %3484 = vmatpush.bf16.msra.mxu0 %v3465
        %3485 = vmatpush.bf16.msra.mxu0 %v3464
        %3486 = vmatpush.bf16.msra.mxu0 %v3463
        %3487 = vmatmul.bf16.gmra.mxu0 %v3415
        %v3488 = vpop.f32.mrf.mxu0
        %v3489 = vadd.f32 0.0, %v3488
        %v3490 = vpop.f32.mrf.mxu0
        %v3491 = vadd.f32 0.0, %v3490
        %3492 = vmatmul.bf16.gmra.mxu0 %v3416
        %v3493 = vpop.f32.mrf.mxu0
        %v3494 = vadd.f32 0.0, %v3493
        %v3495 = vpop.f32.mrf.mxu0
        %v3496 = vadd.f32 0.0, %v3495
        %3497 = vmatmul.bf16.gmra.mxu0 %v3417
        %v3498 = vpop.f32.mrf.mxu0
        %v3499 = vadd.f32 0.0, %v3498
        %v3500 = vpop.f32.mrf.mxu0
        %v3501 = vadd.f32 0.0, %v3500
        %3502 = vmatmul.bf16.gmra.mxu0 %v3418
        %v3503 = vpop.f32.mrf.mxu0
        %v3504 = vadd.f32 0.0, %v3503
        %v3505 = vpop.f32.mrf.mxu0
        %v3506 = vadd.f32 0.0, %v3505
        %3507 = vmatmul.bf16.gmra.mxu0 %v3419
        %v3508 = vpop.f32.mrf.mxu0
        %v3509 = vadd.f32 0.0, %v3508
        %v3510 = vpop.f32.mrf.mxu0
        %v3511 = vadd.f32 0.0, %v3510
        %3512 = vmatmul.bf16.gmra.mxu0 %v3420
        %v3513 = vpop.f32.mrf.mxu0
        %v3514 = vadd.f32 0.0, %v3513
        %v3515 = vpop.f32.mrf.mxu0
        %v3516 = vadd.f32 0.0, %v3515
        %3517 = vmatmul.bf16.gmra.mxu0 %v3421
        %v3518 = vpop.f32.mrf.mxu0
        %v3519 = vadd.f32 0.0, %v3518
        %v3520 = vpop.f32.mrf.mxu0
        %v3521 = vadd.f32 0.0, %v3520
        %3522 = vmatmul.bf16.gmra.mxu0 %v3422
        %v3523 = vpop.f32.mrf.mxu0
        %v3524 = vadd.f32 0.0, %v3523
        %v3525 = vpop.f32.mrf.mxu0
        %v3526 = vadd.f32 0.0, %v3525
        %3527 = vdwg.mxu0
        %v3544 = vunpack.c.l.b16 %v2497
        %v3545 = vunpack.c.l.b16 %v2498
        %v3546 = vunpack.c.l.b16 %v2499
        %v3547 = vunpack.c.l.b16 %v2500
        %v3548 = vunpack.c.l.b16 %v2501
        %v3549 = vunpack.c.l.b16 %v2502
        %v3550 = vunpack.c.l.b16 %v2503
        %v3551 = vunpack.c.l.b16 %v2504
        %v3552 = vunpack.c.l.b16 %v2505
        %v3553 = vunpack.c.l.b16 %v2506
        %v3554 = vunpack.c.l.b16 %v2507
        %v3555 = vunpack.c.l.b16 %v2508
        %v3556 = vunpack.c.l.b16 %v2509
        %v3557 = vunpack.c.l.b16 %v2510
        %v3558 = vunpack.c.l.b16 %v2511
        %v3559 = vunpack.c.l.b16 %v2512
        %v3560 = vpack.c.b16 %v3545, %v3544
        %v3561 = vpack.c.b16 %v3547, %v3546
        %v3562 = vpack.c.b16 %v3549, %v3548
        %v3563 = vpack.c.b16 %v3551, %v3550
        %v3564 = vpack.c.b16 %v3553, %v3552
        %v3565 = vpack.c.b16 %v3555, %v3554
        %v3566 = vpack.c.b16 %v3557, %v3556
        %v3567 = vpack.c.b16 %v3559, %v3558
        %v3592 = vunpack.c.l.b16 %v2369
        %v3593 = vunpack.c.l.b16 %v2370
        %v3594 = vunpack.c.l.b16 %v2371
        %v3595 = vunpack.c.l.b16 %v2372
        %v3596 = vunpack.c.l.b16 %v2373
        %v3597 = vunpack.c.l.b16 %v2374
        %v3598 = vunpack.c.l.b16 %v2375
        %v3599 = vunpack.c.l.b16 %v2376
        %v3600 = vunpack.c.l.b16 %v2377
        %v3601 = vunpack.c.l.b16 %v2378
        %v3602 = vunpack.c.l.b16 %v2379
        %v3603 = vunpack.c.l.b16 %v2380
        %v3604 = vunpack.c.l.b16 %v2381
        %v3605 = vunpack.c.l.b16 %v2382
        %v3606 = vunpack.c.l.b16 %v2383
        %v3607 = vunpack.c.l.b16 %v2384
        %v3608 = vpack.c.b16 %v3593, %v3592
        %v3609 = vpack.c.b16 %v3595, %v3594
        %v3610 = vpack.c.b16 %v3597, %v3596
        %v3611 = vpack.c.b16 %v3599, %v3598
        %v3612 = vpack.c.b16 %v3601, %v3600
        %v3613 = vpack.c.b16 %v3603, %v3602
        %v3614 = vpack.c.b16 %v3605, %v3604
        %v3615 = vpack.c.b16 %v3607, %v3606
        %3624 = vmatpush.bf16.msra.mxu0 %v3615
        %3625 = vmatpush.bf16.msra.mxu0 %v3614
        %3626 = vmatpush.bf16.msra.mxu0 %v3613
        %3627 = vmatpush.bf16.msra.mxu0 %v3612
        %3628 = vmatpush.bf16.msra.mxu0 %v3611
        %3629 = vmatpush.bf16.msra.mxu0 %v3610
        %3630 = vmatpush.bf16.msra.mxu0 %v3609
        %3631 = vmatpush.bf16.msra.mxu0 %v3608
        %3632 = vmatmul.bf16.gmra.mxu0 %v3560
        %v3633 = vpop.f32.mrf.mxu0
        %v3634 = vadd.f32 0.0, %v3633
        %v3635 = vpop.f32.mrf.mxu0
        %v3636 = vadd.f32 0.0, %v3635
        %3637 = vmatmul.bf16.gmra.mxu0 %v3561
        %v3638 = vpop.f32.mrf.mxu0
        %v3639 = vadd.f32 0.0, %v3638
        %v3640 = vpop.f32.mrf.mxu0
        %v3641 = vadd.f32 0.0, %v3640
        %3642 = vmatmul.bf16.gmra.mxu0 %v3562
        %v3643 = vpop.f32.mrf.mxu0
        %v3644 = vadd.f32 0.0, %v3643
        %v3645 = vpop.f32.mrf.mxu0
        %v3646 = vadd.f32 0.0, %v3645
        %3647 = vmatmul.bf16.gmra.mxu0 %v3563
        %v3648 = vpop.f32.mrf.mxu0
        %v3649 = vadd.f32 0.0, %v3648
        %v3650 = vpop.f32.mrf.mxu0
        %v3651 = vadd.f32 0.0, %v3650
        %3652 = vmatmul.bf16.gmra.mxu0 %v3564
        %v3653 = vpop.f32.mrf.mxu0
        %v3654 = vadd.f32 0.0, %v3653
        %v3655 = vpop.f32.mrf.mxu0
        %v3656 = vadd.f32 0.0, %v3655
        %3657 = vmatmul.bf16.gmra.mxu0 %v3565
        %v3658 = vpop.f32.mrf.mxu0
        %v3659 = vadd.f32 0.0, %v3658
        %v3660 = vpop.f32.mrf.mxu0
        %v3661 = vadd.f32 0.0, %v3660
        %3662 = vmatmul.bf16.gmra.mxu0 %v3566
        %v3663 = vpop.f32.mrf.mxu0
        %v3664 = vadd.f32 0.0, %v3663
        %v3665 = vpop.f32.mrf.mxu0
        %v3666 = vadd.f32 0.0, %v3665
        %3667 = vmatmul.bf16.gmra.mxu0 %v3567
        %v3668 = vpop.f32.mrf.mxu0
        %v3669 = vadd.f32 0.0, %v3668
        %v3670 = vpop.f32.mrf.mxu0
        %v3671 = vadd.f32 0.0, %v3670
        %3672 = vdwg.mxu0
        %s3673 = smul.u32 %s33, 256
        %s3674 = scalar_lea.vmem [#allocation8], %s3673
        %v3675 = vld [vmem:[%s3674] sm:$0xff]
        %v3676 = vld [vmem:[%s3674 + $0x8] sm:$0xff]
        %v3677 = vld [vmem:[%s3674 + $0x10] sm:$0xff]
        %v3678 = vld [vmem:[%s3674 + $0x18] sm:$0xff]
        %v3679 = vld [vmem:[%s3674 + $0x20] sm:$0xff]
        %v3680 = vld [vmem:[%s3674 + $0x28] sm:$0xff]
        %v3681 = vld [vmem:[%s3674 + $0x30] sm:$0xff]
        %v3682 = vld [vmem:[%s3674 + $0x38] sm:$0xff]
        %v3683 = vld [vmem:[%s3674 + $0x40] sm:$0xff]
        %v3684 = vld [vmem:[%s3674 + $0x48] sm:$0xff]
        %v3685 = vld [vmem:[%s3674 + $0x50] sm:$0xff]
        %v3686 = vld [vmem:[%s3674 + $0x58] sm:$0xff]
        %v3687 = vld [vmem:[%s3674 + $0x60] sm:$0xff]
        %v3688 = vld [vmem:[%s3674 + $0x68] sm:$0xff]
        %v3689 = vld [vmem:[%s3674 + $0x70] sm:$0xff]
        %v3690 = vld [vmem:[%s3674 + $0x78] sm:$0xff]
        %v3691 = vld [vmem:[%s3674 + $0x80] sm:$0xff]
        %v3692 = vld [vmem:[%s3674 + $0x88] sm:$0xff]
        %v3693 = vld [vmem:[%s3674 + $0x90] sm:$0xff]
        %v3694 = vld [vmem:[%s3674 + $0x98] sm:$0xff]
        %v3695 = vld [vmem:[%s3674 + $0xa0] sm:$0xff]
        %v3696 = vld [vmem:[%s3674 + $0xa8] sm:$0xff]
        %v3697 = vld [vmem:[%s3674 + $0xb0] sm:$0xff]
        %v3698 = vld [vmem:[%s3674 + $0xb8] sm:$0xff]
        %v3699 = vld [vmem:[%s3674 + $0xc0] sm:$0xff]
        %v3700 = vld [vmem:[%s3674 + $0xc8] sm:$0xff]
        %v3701 = vld [vmem:[%s3674 + $0xd0] sm:$0xff]
        %v3702 = vld [vmem:[%s3674 + $0xd8] sm:$0xff]
        %v3703 = vld [vmem:[%s3674 + $0xe0] sm:$0xff]
        %v3704 = vld [vmem:[%s3674 + $0xe8] sm:$0xff]
        %v3705 = vld [vmem:[%s3674 + $0xf0] sm:$0xff]
        %v3706 = vld [vmem:[%s3674 + $0xf8] sm:$0xff]
        %3707 = vmatpush.msra.mxu0 %v3690
        %3708 = vmatpush.msra.mxu0 %v3689
        %3709 = vmatpush.msra.mxu0 %v3688
        %3710 = vmatpush.msra.mxu0 %v3687
        %3711 = vmatpush.msra.mxu0 %v3686
        %3712 = vmatpush.msra.mxu0 %v3685
        %3713 = vmatpush.msra.mxu0 %v3684
        %3714 = vmatpush.msra.mxu0 %v3683
        %3715 = vmatpush.msra.mxu0 %v3682
        %3716 = vmatpush.msra.mxu0 %v3681
        %3717 = vmatpush.msra.mxu0 %v3680
        %3718 = vmatpush.msra.mxu0 %v3679
        %3719 = vmatpush.msra.mxu0 %v3678
        %3720 = vmatpush.msra.mxu0 %v3677
        %3721 = vmatpush.msra.mxu0 %v3676
        %3722 = vmatpush.msra.mxu0 %v3675
        %3723 = vmatmul.f32.gmra.mxu0 %v2619
        %v3724 = vpop.f32.mrf.mxu0
        %v3725 = vadd.f32 0.0, %v3724
        %3726 = vmatmul.f32.gmra.mxu0 %v2621
        %v3727 = vpop.f32.mrf.mxu0
        %v3728 = vadd.f32 0.0, %v3727
        %3729 = vmatmul.f32.gmra.mxu0 %v2624
        %v3730 = vpop.f32.mrf.mxu0
        %v3731 = vadd.f32 0.0, %v3730
        %3732 = vmatmul.f32.gmra.mxu0 %v2626
        %v3733 = vpop.f32.mrf.mxu0
        %v3734 = vadd.f32 0.0, %v3733
        %3735 = vmatmul.f32.gmra.mxu0 %v2629
        %v3736 = vpop.f32.mrf.mxu0
        %v3737 = vadd.f32 0.0, %v3736
        %3738 = vmatmul.f32.gmra.mxu0 %v2631
        %v3739 = vpop.f32.mrf.mxu0
        %v3740 = vadd.f32 0.0, %v3739
        %3741 = vmatmul.f32.gmra.mxu0 %v2634
        %v3742 = vpop.f32.mrf.mxu0
        %v3743 = vadd.f32 0.0, %v3742
        %3744 = vmatmul.f32.gmra.mxu0 %v2636
        %v3745 = vpop.f32.mrf.mxu0
        %v3746 = vadd.f32 0.0, %v3745
        %3747 = vmatmul.f32.gmra.mxu0 %v2639
        %v3748 = vpop.f32.mrf.mxu0
        %v3749 = vadd.f32 0.0, %v3748
        %3750 = vmatmul.f32.gmra.mxu0 %v2641
        %v3751 = vpop.f32.mrf.mxu0
        %v3752 = vadd.f32 0.0, %v3751
        %3753 = vmatmul.f32.gmra.mxu0 %v2644
        %v3754 = vpop.f32.mrf.mxu0
        %v3755 = vadd.f32 0.0, %v3754
        %3756 = vmatmul.f32.gmra.mxu0 %v2646
        %v3757 = vpop.f32.mrf.mxu0
        %v3758 = vadd.f32 0.0, %v3757
        %3759 = vmatmul.f32.gmra.mxu0 %v2649
        %v3760 = vpop.f32.mrf.mxu0
        %v3761 = vadd.f32 0.0, %v3760
        %3762 = vmatmul.f32.gmra.mxu0 %v2651
        %v3763 = vpop.f32.mrf.mxu0
        %v3764 = vadd.f32 0.0, %v3763
        %3765 = vmatmul.f32.gmra.mxu0 %v2654
        %v3766 = vpop.f32.mrf.mxu0
        %v3767 = vadd.f32 0.0, %v3766
        %3768 = vmatmul.f32.gmra.mxu0 %v2656
        %v3769 = vpop.f32.mrf.mxu0
        %v3770 = vadd.f32 0.0, %v3769
        %3771 = vmatmul.f32.gmra.mxu0 %v2764
        %v3772 = vpop.f32.mrf.mxu0
        %v3773 = vadd.f32 0.0, %v3772
        %3774 = vmatmul.f32.gmra.mxu0 %v2766
        %v3775 = vpop.f32.mrf.mxu0
        %v3776 = vadd.f32 0.0, %v3775
        %3777 = vmatmul.f32.gmra.mxu0 %v2769
        %v3778 = vpop.f32.mrf.mxu0
        %v3779 = vadd.f32 0.0, %v3778
        %3780 = vmatmul.f32.gmra.mxu0 %v2771
        %v3781 = vpop.f32.mrf.mxu0
        %v3782 = vadd.f32 0.0, %v3781
        %3783 = vmatmul.f32.gmra.mxu0 %v2774
        %v3784 = vpop.f32.mrf.mxu0
        %v3785 = vadd.f32 0.0, %v3784
        %3786 = vmatmul.f32.gmra.mxu0 %v2776
        %v3787 = vpop.f32.mrf.mxu0
        %v3788 = vadd.f32 0.0, %v3787
        %3789 = vmatmul.f32.gmra.mxu0 %v2779
        %v3790 = vpop.f32.mrf.mxu0
        %v3791 = vadd.f32 0.0, %v3790
        %3792 = vmatmul.f32.gmra.mxu0 %v2781
        %v3793 = vpop.f32.mrf.mxu0
        %v3794 = vadd.f32 0.0, %v3793
        %3795 = vmatmul.f32.gmra.mxu0 %v2784
        %v3796 = vpop.f32.mrf.mxu0
        %v3797 = vadd.f32 0.0, %v3796
        %3798 = vmatmul.f32.gmra.mxu0 %v2786
        %v3799 = vpop.f32.mrf.mxu0
        %v3800 = vadd.f32 0.0, %v3799
        %3801 = vmatmul.f32.gmra.mxu0 %v2789
        %v3802 = vpop.f32.mrf.mxu0
        %v3803 = vadd.f32 0.0, %v3802
        %3804 = vmatmul.f32.gmra.mxu0 %v2791
        %v3805 = vpop.f32.mrf.mxu0
        %v3806 = vadd.f32 0.0, %v3805
        %3807 = vmatmul.f32.gmra.mxu0 %v2794
        %v3808 = vpop.f32.mrf.mxu0
        %v3809 = vadd.f32 0.0, %v3808
        %3810 = vmatmul.f32.gmra.mxu0 %v2796
        %v3811 = vpop.f32.mrf.mxu0
        %v3812 = vadd.f32 0.0, %v3811
        %3813 = vmatmul.f32.gmra.mxu0 %v2799
        %v3814 = vpop.f32.mrf.mxu0
        %v3815 = vadd.f32 0.0, %v3814
        %3816 = vmatmul.f32.gmra.mxu0 %v2801
        %v3817 = vpop.f32.mrf.mxu0
        %v3818 = vadd.f32 0.0, %v3817
        %3819 = vmatmul.f32.gmra.mxu0 %v2909
        %v3820 = vpop.f32.mrf.mxu0
        %v3821 = vadd.f32 0.0, %v3820
        %3822 = vmatmul.f32.gmra.mxu0 %v2911
        %v3823 = vpop.f32.mrf.mxu0
        %v3824 = vadd.f32 0.0, %v3823
        %3825 = vmatmul.f32.gmra.mxu0 %v2914
        %v3826 = vpop.f32.mrf.mxu0
        %v3827 = vadd.f32 0.0, %v3826
        %3828 = vmatmul.f32.gmra.mxu0 %v2916
        %v3829 = vpop.f32.mrf.mxu0
        %v3830 = vadd.f32 0.0, %v3829
        %3831 = vmatmul.f32.gmra.mxu0 %v2919
        %v3832 = vpop.f32.mrf.mxu0
        %v3833 = vadd.f32 0.0, %v3832
        %3834 = vmatmul.f32.gmra.mxu0 %v2921
        %v3835 = vpop.f32.mrf.mxu0
        %v3836 = vadd.f32 0.0, %v3835
        %3837 = vmatmul.f32.gmra.mxu0 %v2924
        %v3838 = vpop.f32.mrf.mxu0
        %v3839 = vadd.f32 0.0, %v3838
        %3840 = vmatmul.f32.gmra.mxu0 %v2926
        %v3841 = vpop.f32.mrf.mxu0
        %v3842 = vadd.f32 0.0, %v3841
        %3843 = vmatmul.f32.gmra.mxu0 %v2929
        %v3844 = vpop.f32.mrf.mxu0
        %v3845 = vadd.f32 0.0, %v3844
        %3846 = vmatmul.f32.gmra.mxu0 %v2931
        %v3847 = vpop.f32.mrf.mxu0
        %v3848 = vadd.f32 0.0, %v3847
        %3849 = vmatmul.f32.gmra.mxu0 %v2934
        %v3850 = vpop.f32.mrf.mxu0
        %v3851 = vadd.f32 0.0, %v3850
        %3852 = vmatmul.f32.gmra.mxu0 %v2936
        %v3853 = vpop.f32.mrf.mxu0
        %v3854 = vadd.f32 0.0, %v3853
        %3855 = vmatmul.f32.gmra.mxu0 %v2939
        %v3856 = vpop.f32.mrf.mxu0
        %v3857 = vadd.f32 0.0, %v3856
        %3858 = vmatmul.f32.gmra.mxu0 %v2941
        %v3859 = vpop.f32.mrf.mxu0
        %v3860 = vadd.f32 0.0, %v3859
        %3861 = vmatmul.f32.gmra.mxu0 %v2944
        %v3862 = vpop.f32.mrf.mxu0
        %v3863 = vadd.f32 0.0, %v3862
        %3864 = vmatmul.f32.gmra.mxu0 %v2946
        %v3865 = vpop.f32.mrf.mxu0
        %v3866 = vadd.f32 0.0, %v3865
        %3867 = vmatmul.f32.gmra.mxu0 %v3054
        %v3868 = vpop.f32.mrf.mxu0
        %v3869 = vadd.f32 0.0, %v3868
        %3870 = vmatmul.f32.gmra.mxu0 %v3056
        %v3871 = vpop.f32.mrf.mxu0
        %v3872 = vadd.f32 0.0, %v3871
        %3873 = vmatmul.f32.gmra.mxu0 %v3059
        %v3874 = vpop.f32.mrf.mxu0
        %v3875 = vadd.f32 0.0, %v3874
        %3876 = vmatmul.f32.gmra.mxu0 %v3061
        %v3877 = vpop.f32.mrf.mxu0
        %v3878 = vadd.f32 0.0, %v3877
        %3879 = vmatmul.f32.gmra.mxu0 %v3064
        %v3880 = vpop.f32.mrf.mxu0
        %v3881 = vadd.f32 0.0, %v3880
        %3882 = vmatmul.f32.gmra.mxu0 %v3066
        %v3883 = vpop.f32.mrf.mxu0
        %v3884 = vadd.f32 0.0, %v3883
        %3885 = vmatmul.f32.gmra.mxu0 %v3069
        %v3886 = vpop.f32.mrf.mxu0
        %v3887 = vadd.f32 0.0, %v3886
        %3888 = vmatmul.f32.gmra.mxu0 %v3071
        %v3889 = vpop.f32.mrf.mxu0
        %v3890 = vadd.f32 0.0, %v3889
        %3891 = vmatmul.f32.gmra.mxu0 %v3074
        %v3892 = vpop.f32.mrf.mxu0
        %v3893 = vadd.f32 0.0, %v3892
        %3894 = vmatmul.f32.gmra.mxu0 %v3076
        %v3895 = vpop.f32.mrf.mxu0
        %v3896 = vadd.f32 0.0, %v3895
        %3897 = vmatmul.f32.gmra.mxu0 %v3079
        %v3898 = vpop.f32.mrf.mxu0
        %v3899 = vadd.f32 0.0, %v3898
        %3900 = vmatmul.f32.gmra.mxu0 %v3081
        %v3901 = vpop.f32.mrf.mxu0
        %v3902 = vadd.f32 0.0, %v3901
        %3903 = vmatmul.f32.gmra.mxu0 %v3084
        %v3904 = vpop.f32.mrf.mxu0
        %v3905 = vadd.f32 0.0, %v3904
        %3906 = vmatmul.f32.gmra.mxu0 %v3086
        %v3907 = vpop.f32.mrf.mxu0
        %v3908 = vadd.f32 0.0, %v3907
        %3909 = vmatmul.f32.gmra.mxu0 %v3089
        %v3910 = vpop.f32.mrf.mxu0
        %v3911 = vadd.f32 0.0, %v3910
        %3912 = vmatmul.f32.gmra.mxu0 %v3091
        %v3913 = vpop.f32.mrf.mxu0
        %v3914 = vadd.f32 0.0, %v3913
        %3915 = vdwg.mxu0
        %3916 = vmatpush.msra.mxu0 %v3706
        %3917 = vmatpush.msra.mxu0 %v3705
        %3918 = vmatpush.msra.mxu0 %v3704
        %3919 = vmatpush.msra.mxu0 %v3703
        %3920 = vmatpush.msra.mxu0 %v3702
        %3921 = vmatpush.msra.mxu0 %v3701
        %3922 = vmatpush.msra.mxu0 %v3700
        %3923 = vmatpush.msra.mxu0 %v3699
        %3924 = vmatpush.msra.mxu0 %v3698
        %3925 = vmatpush.msra.mxu0 %v3697
        %3926 = vmatpush.msra.mxu0 %v3696
        %3927 = vmatpush.msra.mxu0 %v3695
        %3928 = vmatpush.msra.mxu0 %v3694
        %3929 = vmatpush.msra.mxu0 %v3693
        %3930 = vmatpush.msra.mxu0 %v3692
        %3931 = vmatpush.msra.mxu0 %v3691
        %3932 = vmatmul.f32.gmra.mxu0 %v3199
        %v3933 = vpop.f32.mrf.mxu0
        %v3934 = vadd.f32 %v3725, %v3933
        %3935 = vmatmul.f32.gmra.mxu0 %v3201
        %v3936 = vpop.f32.mrf.mxu0
        %v3937 = vadd.f32 %v3728, %v3936
        %3938 = vmatmul.f32.gmra.mxu0 %v3204
        %v3939 = vpop.f32.mrf.mxu0
        %v3940 = vadd.f32 %v3731, %v3939
        %3941 = vmatmul.f32.gmra.mxu0 %v3206
        %v3942 = vpop.f32.mrf.mxu0
        %v3943 = vadd.f32 %v3734, %v3942
        %3944 = vmatmul.f32.gmra.mxu0 %v3209
        %v3945 = vpop.f32.mrf.mxu0
        %v3946 = vadd.f32 %v3737, %v3945
        %3947 = vmatmul.f32.gmra.mxu0 %v3211
        %v3948 = vpop.f32.mrf.mxu0
        %v3949 = vadd.f32 %v3740, %v3948
        %3950 = vmatmul.f32.gmra.mxu0 %v3214
        %v3951 = vpop.f32.mrf.mxu0
        %v3952 = vadd.f32 %v3743, %v3951
        %3953 = vmatmul.f32.gmra.mxu0 %v3216
        %v3954 = vpop.f32.mrf.mxu0
        %v3955 = vadd.f32 %v3746, %v3954
        %3956 = vmatmul.f32.gmra.mxu0 %v3219
        %v3957 = vpop.f32.mrf.mxu0
        %v3958 = vadd.f32 %v3749, %v3957
        %3959 = vmatmul.f32.gmra.mxu0 %v3221
        %v3960 = vpop.f32.mrf.mxu0
        %v3961 = vadd.f32 %v3752, %v3960
        %3962 = vmatmul.f32.gmra.mxu0 %v3224
        %v3963 = vpop.f32.mrf.mxu0
        %v3964 = vadd.f32 %v3755, %v3963
        %3965 = vmatmul.f32.gmra.mxu0 %v3226
        %v3966 = vpop.f32.mrf.mxu0
        %v3967 = vadd.f32 %v3758, %v3966
        %3968 = vmatmul.f32.gmra.mxu0 %v3229
        %v3969 = vpop.f32.mrf.mxu0
        %v3970 = vadd.f32 %v3761, %v3969
        %3971 = vmatmul.f32.gmra.mxu0 %v3231
        %v3972 = vpop.f32.mrf.mxu0
        %v3973 = vadd.f32 %v3764, %v3972
        %3974 = vmatmul.f32.gmra.mxu0 %v3234
        %v3975 = vpop.f32.mrf.mxu0
        %v3976 = vadd.f32 %v3767, %v3975
        %3977 = vmatmul.f32.gmra.mxu0 %v3236
        %v3978 = vpop.f32.mrf.mxu0
        %v3979 = vadd.f32 %v3770, %v3978
        %3980 = vmatmul.f32.gmra.mxu0 %v3344
        %v3981 = vpop.f32.mrf.mxu0
        %v3982 = vadd.f32 %v3773, %v3981
        %3983 = vmatmul.f32.gmra.mxu0 %v3346
        %v3984 = vpop.f32.mrf.mxu0
        %v3985 = vadd.f32 %v3776, %v3984
        %3986 = vmatmul.f32.gmra.mxu0 %v3349
        %v3987 = vpop.f32.mrf.mxu0
        %v3988 = vadd.f32 %v3779, %v3987
        %3989 = vmatmul.f32.gmra.mxu0 %v3351
        %v3990 = vpop.f32.mrf.mxu0
        %v3991 = vadd.f32 %v3782, %v3990
        %3992 = vmatmul.f32.gmra.mxu0 %v3354
        %v3993 = vpop.f32.mrf.mxu0
        %v3994 = vadd.f32 %v3785, %v3993
        %3995 = vmatmul.f32.gmra.mxu0 %v3356
        %v3996 = vpop.f32.mrf.mxu0
        %v3997 = vadd.f32 %v3788, %v3996
        %3998 = vmatmul.f32.gmra.mxu0 %v3359
        %v3999 = vpop.f32.mrf.mxu0
        %v4000 = vadd.f32 %v3791, %v3999
        %4001 = vmatmul.f32.gmra.mxu0 %v3361
        %v4002 = vpop.f32.mrf.mxu0
        %v4003 = vadd.f32 %v3794, %v4002
        %4004 = vmatmul.f32.gmra.mxu0 %v3364
        %v4005 = vpop.f32.mrf.mxu0
        %v4006 = vadd.f32 %v3797, %v4005
        %4007 = vmatmul.f32.gmra.mxu0 %v3366
        %v4008 = vpop.f32.mrf.mxu0
        %v4009 = vadd.f32 %v3800, %v4008
        %4010 = vmatmul.f32.gmra.mxu0 %v3369
        %v4011 = vpop.f32.mrf.mxu0
        %v4012 = vadd.f32 %v3803, %v4011
        %4013 = vmatmul.f32.gmra.mxu0 %v3371
        %v4014 = vpop.f32.mrf.mxu0
        %v4015 = vadd.f32 %v3806, %v4014
        %4016 = vmatmul.f32.gmra.mxu0 %v3374
        %v4017 = vpop.f32.mrf.mxu0
        %v4018 = vadd.f32 %v3809, %v4017
        %4019 = vmatmul.f32.gmra.mxu0 %v3376
        %v4020 = vpop.f32.mrf.mxu0
        %v4021 = vadd.f32 %v3812, %v4020
        %4022 = vmatmul.f32.gmra.mxu0 %v3379
        %v4023 = vpop.f32.mrf.mxu0
        %v4024 = vadd.f32 %v3815, %v4023
        %4025 = vmatmul.f32.gmra.mxu0 %v3381
        %v4026 = vpop.f32.mrf.mxu0
        %v4027 = vadd.f32 %v3818, %v4026
        %4028 = vmatmul.f32.gmra.mxu0 %v3489
        %v4029 = vpop.f32.mrf.mxu0
        %v4030 = vadd.f32 %v3821, %v4029
        %4031 = vmatmul.f32.gmra.mxu0 %v3491
        %v4032 = vpop.f32.mrf.mxu0
        %v4033 = vadd.f32 %v3824, %v4032
        %4034 = vmatmul.f32.gmra.mxu0 %v3494
        %v4035 = vpop.f32.mrf.mxu0
        %v4036 = vadd.f32 %v3827, %v4035
        %4037 = vmatmul.f32.gmra.mxu0 %v3496
        %v4038 = vpop.f32.mrf.mxu0
        %v4039 = vadd.f32 %v3830, %v4038
        %4040 = vmatmul.f32.gmra.mxu0 %v3499
        %v4041 = vpop.f32.mrf.mxu0
        %v4042 = vadd.f32 %v3833, %v4041
        %4043 = vmatmul.f32.gmra.mxu0 %v3501
        %v4044 = vpop.f32.mrf.mxu0
        %v4045 = vadd.f32 %v3836, %v4044
        %4046 = vmatmul.f32.gmra.mxu0 %v3504
        %v4047 = vpop.f32.mrf.mxu0
        %v4048 = vadd.f32 %v3839, %v4047
        %4049 = vmatmul.f32.gmra.mxu0 %v3506
        %v4050 = vpop.f32.mrf.mxu0
        %v4051 = vadd.f32 %v3842, %v4050
        %4052 = vmatmul.f32.gmra.mxu0 %v3509
        %v4053 = vpop.f32.mrf.mxu0
        %v4054 = vadd.f32 %v3845, %v4053
        %4055 = vmatmul.f32.gmra.mxu0 %v3511
        %v4056 = vpop.f32.mrf.mxu0
        %v4057 = vadd.f32 %v3848, %v4056
        %4058 = vmatmul.f32.gmra.mxu0 %v3514
        %v4059 = vpop.f32.mrf.mxu0
        %v4060 = vadd.f32 %v3851, %v4059
        %4061 = vmatmul.f32.gmra.mxu0 %v3516
        %v4062 = vpop.f32.mrf.mxu0
        %v4063 = vadd.f32 %v3854, %v4062
        %4064 = vmatmul.f32.gmra.mxu0 %v3519
        %v4065 = vpop.f32.mrf.mxu0
        %v4066 = vadd.f32 %v3857, %v4065
        %4067 = vmatmul.f32.gmra.mxu0 %v3521
        %v4068 = vpop.f32.mrf.mxu0
        %v4069 = vadd.f32 %v3860, %v4068
        %4070 = vmatmul.f32.gmra.mxu0 %v3524
        %v4071 = vpop.f32.mrf.mxu0
        %v4072 = vadd.f32 %v3863, %v4071
        %4073 = vmatmul.f32.gmra.mxu0 %v3526
        %v4074 = vpop.f32.mrf.mxu0
        %v4075 = vadd.f32 %v3866, %v4074
        %4076 = vmatmul.f32.gmra.mxu0 %v3634
        %v4077 = vpop.f32.mrf.mxu0
        %v4078 = vadd.f32 %v3869, %v4077
        %4079 = vmatmul.f32.gmra.mxu0 %v3636
        %v4080 = vpop.f32.mrf.mxu0
        %v4081 = vadd.f32 %v3872, %v4080
        %4082 = vmatmul.f32.gmra.mxu0 %v3639
        %v4083 = vpop.f32.mrf.mxu0
        %v4084 = vadd.f32 %v3875, %v4083
        %4085 = vmatmul.f32.gmra.mxu0 %v3641
        %v4086 = vpop.f32.mrf.mxu0
        %v4087 = vadd.f32 %v3878, %v4086
        %4088 = vmatmul.f32.gmra.mxu0 %v3644
        %v4089 = vpop.f32.mrf.mxu0
        %v4090 = vadd.f32 %v3881, %v4089
        %4091 = vmatmul.f32.gmra.mxu0 %v3646
        %v4092 = vpop.f32.mrf.mxu0
        %v4093 = vadd.f32 %v3884, %v4092
        %4094 = vmatmul.f32.gmra.mxu0 %v3649
        %v4095 = vpop.f32.mrf.mxu0
        %v4096 = vadd.f32 %v3887, %v4095
        %4097 = vmatmul.f32.gmra.mxu0 %v3651
        %v4098 = vpop.f32.mrf.mxu0
        %v4099 = vadd.f32 %v3890, %v4098
        %4100 = vmatmul.f32.gmra.mxu0 %v3654
        %v4101 = vpop.f32.mrf.mxu0
        %v4102 = vadd.f32 %v3893, %v4101
        %4103 = vmatmul.f32.gmra.mxu0 %v3656
        %v4104 = vpop.f32.mrf.mxu0
        %v4105 = vadd.f32 %v3896, %v4104
        %4106 = vmatmul.f32.gmra.mxu0 %v3659
        %v4107 = vpop.f32.mrf.mxu0
        %v4108 = vadd.f32 %v3899, %v4107
        %4109 = vmatmul.f32.gmra.mxu0 %v3661
        %v4110 = vpop.f32.mrf.mxu0
        %v4111 = vadd.f32 %v3902, %v4110
        %4112 = vmatmul.f32.gmra.mxu0 %v3664
        %v4113 = vpop.f32.mrf.mxu0
        %v4114 = vadd.f32 %v3905, %v4113
        %4115 = vmatmul.f32.gmra.mxu0 %v3666
        %v4116 = vpop.f32.mrf.mxu0
        %v4117 = vadd.f32 %v3908, %v4116
        %4118 = vmatmul.f32.gmra.mxu0 %v3669
        %v4119 = vpop.f32.mrf.mxu0
        %v4120 = vadd.f32 %v3911, %v4119
        %4121 = vmatmul.f32.gmra.mxu0 %v3671
        %v4122 = vpop.f32.mrf.mxu0
        %v4123 = vadd.f32 %v3914, %v4122
        %4124 = vdwg.mxu0
        %p4125 = scmp.eq.s32.totalorder %s33, 0
        // Predicated region
        $region57: #{tpu_custom_call.1} parent=39 // pred_check
          %p4126 = pneg %p4125
        $region58: #{tpu_custom_call.1} parent=39 // pred_check_branch
          %4128 = sbr.rel (%p4126) target = $region60
        $region59: #{tpu_custom_call.1} parent=39 // pred_region
          %4129 = vst [vmem:[%s421] sm:$0xff] 0.0
          %4130 = vst [vmem:[%s421 + $0x8] sm:$0xff] 0.0
          %4131 = vst [vmem:[%s421 + $0x10] sm:$0xff] 0.0
          %4132 = vst [vmem:[%s421 + $0x18] sm:$0xff] 0.0
          %4133 = vst [vmem:[%s421 + $0x20] sm:$0xff] 0.0
          %4134 = vst [vmem:[%s421 + $0x28] sm:$0xff] 0.0
          %4135 = vst [vmem:[%s421 + $0x30] sm:$0xff] 0.0
          %4136 = vst [vmem:[%s421 + $0x38] sm:$0xff] 0.0
          %4137 = vst [vmem:[%s421 + $0x40] sm:$0xff] 0.0
          %4138 = vst [vmem:[%s421 + $0x48] sm:$0xff] 0.0
          %4139 = vst [vmem:[%s421 + $0x50] sm:$0xff] 0.0
          %4140 = vst [vmem:[%s421 + $0x58] sm:$0xff] 0.0
          %4141 = vst [vmem:[%s421 + $0x60] sm:$0xff] 0.0
          %4142 = vst [vmem:[%s421 + $0x68] sm:$0xff] 0.0
          %4143 = vst [vmem:[%s421 + $0x70] sm:$0xff] 0.0
          %4144 = vst [vmem:[%s421 + $0x78] sm:$0xff] 0.0
          %4145 = vst [vmem:[%s421 + $0x80] sm:$0xff] 0.0
          %4146 = vst [vmem:[%s421 + $0x88] sm:$0xff] 0.0
          %4147 = vst [vmem:[%s421 + $0x90] sm:$0xff] 0.0
          %4148 = vst [vmem:[%s421 + $0x98] sm:$0xff] 0.0
          %4149 = vst [vmem:[%s421 + $0xa0] sm:$0xff] 0.0
          %4150 = vst [vmem:[%s421 + $0xa8] sm:$0xff] 0.0
          %4151 = vst [vmem:[%s421 + $0xb0] sm:$0xff] 0.0
          %4152 = vst [vmem:[%s421 + $0xb8] sm:$0xff] 0.0
          %4153 = vst [vmem:[%s421 + $0xc0] sm:$0xff] 0.0
          %4154 = vst [vmem:[%s421 + $0xc8] sm:$0xff] 0.0
          %4155 = vst [vmem:[%s421 + $0xd0] sm:$0xff] 0.0
          %4156 = vst [vmem:[%s421 + $0xd8] sm:$0xff] 0.0
          %4157 = vst [vmem:[%s421 + $0xe0] sm:$0xff] 0.0
          %4158 = vst [vmem:[%s421 + $0xe8] sm:$0xff] 0.0
          %4159 = vst [vmem:[%s421 + $0xf0] sm:$0xff] 0.0
          %4160 = vst [vmem:[%s421 + $0xf8] sm:$0xff] 0.0
          %4161 = vst [vmem:[%s421 + $0x100] sm:$0xff] 0.0
          %4162 = vst [vmem:[%s421 + $0x108] sm:$0xff] 0.0
          %4163 = vst [vmem:[%s421 + $0x110] sm:$0xff] 0.0
          %4164 = vst [vmem:[%s421 + $0x118] sm:$0xff] 0.0
          %4165 = vst [vmem:[%s421 + $0x120] sm:$0xff] 0.0
          %4166 = vst [vmem:[%s421 + $0x128] sm:$0xff] 0.0
          %4167 = vst [vmem:[%s421 + $0x130] sm:$0xff] 0.0
          %4168 = vst [vmem:[%s421 + $0x138] sm:$0xff] 0.0
          %4169 = vst [vmem:[%s421 + $0x140] sm:$0xff] 0.0
          %4170 = vst [vmem:[%s421 + $0x148] sm:$0xff] 0.0
          %4171 = vst [vmem:[%s421 + $0x150] sm:$0xff] 0.0
          %4172 = vst [vmem:[%s421 + $0x158] sm:$0xff] 0.0
          %4173 = vst [vmem:[%s421 + $0x160] sm:$0xff] 0.0
          %4174 = vst [vmem:[%s421 + $0x168] sm:$0xff] 0.0
          %4175 = vst [vmem:[%s421 + $0x170] sm:$0xff] 0.0
          %4176 = vst [vmem:[%s421 + $0x178] sm:$0xff] 0.0
          %4177 = vst [vmem:[%s421 + $0x180] sm:$0xff] 0.0
          %4178 = vst [vmem:[%s421 + $0x188] sm:$0xff] 0.0
          %4179 = vst [vmem:[%s421 + $0x190] sm:$0xff] 0.0
          %4180 = vst [vmem:[%s421 + $0x198] sm:$0xff] 0.0
          %4181 = vst [vmem:[%s421 + $0x1a0] sm:$0xff] 0.0
          %4182 = vst [vmem:[%s421 + $0x1a8] sm:$0xff] 0.0
          %4183 = vst [vmem:[%s421 + $0x1b0] sm:$0xff] 0.0
          %4184 = vst [vmem:[%s421 + $0x1b8] sm:$0xff] 0.0
          %4185 = vst [vmem:[%s421 + $0x1c0] sm:$0xff] 0.0
          %4186 = vst [vmem:[%s421 + $0x1c8] sm:$0xff] 0.0
          %4187 = vst [vmem:[%s421 + $0x1d0] sm:$0xff] 0.0
          %4188 = vst [vmem:[%s421 + $0x1d8] sm:$0xff] 0.0
          %4189 = vst [vmem:[%s421 + $0x1e0] sm:$0xff] 0.0
          %4190 = vst [vmem:[%s421 + $0x1e8] sm:$0xff] 0.0
          %4191 = vst [vmem:[%s421 + $0x1f0] sm:$0xff] 0.0
          %4192 = vst [vmem:[%s421 + $0x1f8] sm:$0xff] 0.0
          %4193 = vst [vmem:[%s428] sm:$0xff] 0.0
          %4194 = vst [vmem:[%s428 + $0x8] sm:$0xff] 0.0
          %4195 = vst [vmem:[%s428 + $0x10] sm:$0xff] 0.0
          %4196 = vst [vmem:[%s428 + $0x18] sm:$0xff] 0.0
          %4197 = vst [vmem:[%s428 + $0x20] sm:$0xff] 0.0
          %4198 = vst [vmem:[%s428 + $0x28] sm:$0xff] 0.0
          %4199 = vst [vmem:[%s428 + $0x30] sm:$0xff] 0.0
          %4200 = vst [vmem:[%s428 + $0x38] sm:$0xff] 0.0
          %4201 = vst [vmem:[%s428 + $0x40] sm:$0xff] 0.0
          %4202 = vst [vmem:[%s428 + $0x48] sm:$0xff] 0.0
          %4203 = vst [vmem:[%s428 + $0x50] sm:$0xff] 0.0
          %4204 = vst [vmem:[%s428 + $0x58] sm:$0xff] 0.0
          %4205 = vst [vmem:[%s428 + $0x60] sm:$0xff] 0.0
          %4206 = vst [vmem:[%s428 + $0x68] sm:$0xff] 0.0
          %4207 = vst [vmem:[%s428 + $0x70] sm:$0xff] 0.0
          %4208 = vst [vmem:[%s428 + $0x78] sm:$0xff] 0.0
          %4209 = vst [vmem:[%s428 + $0x80] sm:$0xff] 0.0
          %4210 = vst [vmem:[%s428 + $0x88] sm:$0xff] 0.0
          %4211 = vst [vmem:[%s428 + $0x90] sm:$0xff] 0.0
          %4212 = vst [vmem:[%s428 + $0x98] sm:$0xff] 0.0
          %4213 = vst [vmem:[%s428 + $0xa0] sm:$0xff] 0.0
          %4214 = vst [vmem:[%s428 + $0xa8] sm:$0xff] 0.0
          %4215 = vst [vmem:[%s428 + $0xb0] sm:$0xff] 0.0
          %4216 = vst [vmem:[%s428 + $0xb8] sm:$0xff] 0.0
          %4217 = vst [vmem:[%s428 + $0xc0] sm:$0xff] 0.0
          %4218 = vst [vmem:[%s428 + $0xc8] sm:$0xff] 0.0
          %4219 = vst [vmem:[%s428 + $0xd0] sm:$0xff] 0.0
          %4220 = vst [vmem:[%s428 + $0xd8] sm:$0xff] 0.0
          %4221 = vst [vmem:[%s428 + $0xe0] sm:$0xff] 0.0
          %4222 = vst [vmem:[%s428 + $0xe8] sm:$0xff] 0.0
          %4223 = vst [vmem:[%s428 + $0xf0] sm:$0xff] 0.0
          %4224 = vst [vmem:[%s428 + $0xf8] sm:$0xff] 0.0
          %4225 = vst [vmem:[%s428 + $0x100] sm:$0xff] 0.0
          %4226 = vst [vmem:[%s428 + $0x108] sm:$0xff] 0.0
          %4227 = vst [vmem:[%s428 + $0x110] sm:$0xff] 0.0
          %4228 = vst [vmem:[%s428 + $0x118] sm:$0xff] 0.0
          %4229 = vst [vmem:[%s428 + $0x120] sm:$0xff] 0.0
          %4230 = vst [vmem:[%s428 + $0x128] sm:$0xff] 0.0
          %4231 = vst [vmem:[%s428 + $0x130] sm:$0xff] 0.0
          %4232 = vst [vmem:[%s428 + $0x138] sm:$0xff] 0.0
          %4233 = vst [vmem:[%s428 + $0x140] sm:$0xff] 0.0
          %4234 = vst [vmem:[%s428 + $0x148] sm:$0xff] 0.0
          %4235 = vst [vmem:[%s428 + $0x150] sm:$0xff] 0.0
          %4236 = vst [vmem:[%s428 + $0x158] sm:$0xff] 0.0
          %4237 = vst [vmem:[%s428 + $0x160] sm:$0xff] 0.0
          %4238 = vst [vmem:[%s428 + $0x168] sm:$0xff] 0.0
          %4239 = vst [vmem:[%s428 + $0x170] sm:$0xff] 0.0
          %4240 = vst [vmem:[%s428 + $0x178] sm:$0xff] 0.0
          %4241 = vst [vmem:[%s428 + $0x180] sm:$0xff] 0.0
          %4242 = vst [vmem:[%s428 + $0x188] sm:$0xff] 0.0
          %4243 = vst [vmem:[%s428 + $0x190] sm:$0xff] 0.0
          %4244 = vst [vmem:[%s428 + $0x198] sm:$0xff] 0.0
          %4245 = vst [vmem:[%s428 + $0x1a0] sm:$0xff] 0.0
          %4246 = vst [vmem:[%s428 + $0x1a8] sm:$0xff] 0.0
          %4247 = vst [vmem:[%s428 + $0x1b0] sm:$0xff] 0.0
          %4248 = vst [vmem:[%s428 + $0x1b8] sm:$0xff] 0.0
          %4249 = vst [vmem:[%s428 + $0x1c0] sm:$0xff] 0.0
          %4250 = vst [vmem:[%s428 + $0x1c8] sm:$0xff] 0.0
          %4251 = vst [vmem:[%s428 + $0x1d0] sm:$0xff] 0.0
          %4252 = vst [vmem:[%s428 + $0x1d8] sm:$0xff] 0.0
          %4253 = vst [vmem:[%s428 + $0x1e0] sm:$0xff] 0.0
          %4254 = vst [vmem:[%s428 + $0x1e8] sm:$0xff] 0.0
          %4255 = vst [vmem:[%s428 + $0x1f0] sm:$0xff] 0.0
          %4256 = vst [vmem:[%s428 + $0x1f8] sm:$0xff] 0.0
        $region60: #{tpu_custom_call.1} parent=39 // pred_fallthru
          _
        %v4257 = vld [vmem:[%s428] sm:$0xff]
        %v4258 = vld [vmem:[%s428 + $0x8] sm:$0xff]
        %v4259 = vld [vmem:[%s428 + $0x10] sm:$0xff]
        %v4260 = vld [vmem:[%s428 + $0x18] sm:$0xff]
        %v4261 = vld [vmem:[%s428 + $0x20] sm:$0xff]
        %v4262 = vld [vmem:[%s428 + $0x28] sm:$0xff]
        %v4263 = vld [vmem:[%s428 + $0x30] sm:$0xff]
        %v4264 = vld [vmem:[%s428 + $0x38] sm:$0xff]
        %v4265 = vld [vmem:[%s428 + $0x40] sm:$0xff]
        %v4266 = vld [vmem:[%s428 + $0x48] sm:$0xff]
        %v4267 = vld [vmem:[%s428 + $0x50] sm:$0xff]
        %v4268 = vld [vmem:[%s428 + $0x58] sm:$0xff]
        %v4269 = vld [vmem:[%s428 + $0x60] sm:$0xff]
        %v4270 = vld [vmem:[%s428 + $0x68] sm:$0xff]
        %v4271 = vld [vmem:[%s428 + $0x70] sm:$0xff]
        %v4272 = vld [vmem:[%s428 + $0x78] sm:$0xff]
        %v4273 = vld [vmem:[%s428 + $0x80] sm:$0xff]
        %v4274 = vld [vmem:[%s428 + $0x88] sm:$0xff]
        %v4275 = vld [vmem:[%s428 + $0x90] sm:$0xff]
        %v4276 = vld [vmem:[%s428 + $0x98] sm:$0xff]
        %v4277 = vld [vmem:[%s428 + $0xa0] sm:$0xff]
        %v4278 = vld [vmem:[%s428 + $0xa8] sm:$0xff]
        %v4279 = vld [vmem:[%s428 + $0xb0] sm:$0xff]
        %v4280 = vld [vmem:[%s428 + $0xb8] sm:$0xff]
        %v4281 = vld [vmem:[%s428 + $0xc0] sm:$0xff]
        %v4282 = vld [vmem:[%s428 + $0xc8] sm:$0xff]
        %v4283 = vld [vmem:[%s428 + $0xd0] sm:$0xff]
        %v4284 = vld [vmem:[%s428 + $0xd8] sm:$0xff]
        %v4285 = vld [vmem:[%s428 + $0xe0] sm:$0xff]
        %v4286 = vld [vmem:[%s428 + $0xe8] sm:$0xff]
        %v4287 = vld [vmem:[%s428 + $0xf0] sm:$0xff]
        %v4288 = vld [vmem:[%s428 + $0xf8] sm:$0xff]
        %v4289 = vld [vmem:[%s428 + $0x100] sm:$0xff]
        %v4290 = vld [vmem:[%s428 + $0x108] sm:$0xff]
        %v4291 = vld [vmem:[%s428 + $0x110] sm:$0xff]
        %v4292 = vld [vmem:[%s428 + $0x118] sm:$0xff]
        %v4293 = vld [vmem:[%s428 + $0x120] sm:$0xff]
        %v4294 = vld [vmem:[%s428 + $0x128] sm:$0xff]
        %v4295 = vld [vmem:[%s428 + $0x130] sm:$0xff]
        %v4296 = vld [vmem:[%s428 + $0x138] sm:$0xff]
        %v4297 = vld [vmem:[%s428 + $0x140] sm:$0xff]
        %v4298 = vld [vmem:[%s428 + $0x148] sm:$0xff]
        %v4299 = vld [vmem:[%s428 + $0x150] sm:$0xff]
        %v4300 = vld [vmem:[%s428 + $0x158] sm:$0xff]
        %v4301 = vld [vmem:[%s428 + $0x160] sm:$0xff]
        %v4302 = vld [vmem:[%s428 + $0x168] sm:$0xff]
        %v4303 = vld [vmem:[%s428 + $0x170] sm:$0xff]
        %v4304 = vld [vmem:[%s428 + $0x178] sm:$0xff]
        %v4305 = vld [vmem:[%s428 + $0x180] sm:$0xff]
        %v4306 = vld [vmem:[%s428 + $0x188] sm:$0xff]
        %v4307 = vld [vmem:[%s428 + $0x190] sm:$0xff]
        %v4308 = vld [vmem:[%s428 + $0x198] sm:$0xff]
        %v4309 = vld [vmem:[%s428 + $0x1a0] sm:$0xff]
        %v4310 = vld [vmem:[%s428 + $0x1a8] sm:$0xff]
        %v4311 = vld [vmem:[%s428 + $0x1b0] sm:$0xff]
        %v4312 = vld [vmem:[%s428 + $0x1b8] sm:$0xff]
        %v4313 = vld [vmem:[%s428 + $0x1c0] sm:$0xff]
        %v4314 = vld [vmem:[%s428 + $0x1c8] sm:$0xff]
        %v4315 = vld [vmem:[%s428 + $0x1d0] sm:$0xff]
        %v4316 = vld [vmem:[%s428 + $0x1d8] sm:$0xff]
        %v4317 = vld [vmem:[%s428 + $0x1e0] sm:$0xff]
        %v4318 = vld [vmem:[%s428 + $0x1e8] sm:$0xff]
        %v4319 = vld [vmem:[%s428 + $0x1f0] sm:$0xff]
        %v4320 = vld [vmem:[%s428 + $0x1f8] sm:$0xff]
        %v4321 = vadd.f32 %v2129, %v2193
        %v4322 = vadd.f32 %v2130, %v2194
        %v4323 = vadd.f32 %v2131, %v2195
        %v4324 = vadd.f32 %v2132, %v2196
        %v4325 = vadd.f32 %v2133, %v2197
        %v4326 = vadd.f32 %v2134, %v2198
        %v4327 = vadd.f32 %v2135, %v2199
        %v4328 = vadd.f32 %v2136, %v2200
        %v4329 = vadd.f32 %v2137, %v2201
        %v4330 = vadd.f32 %v2138, %v2202
        %v4331 = vadd.f32 %v2139, %v2203
        %v4332 = vadd.f32 %v2140, %v2204
        %v4333 = vadd.f32 %v2141, %v2205
        %v4334 = vadd.f32 %v2142, %v2206
        %v4335 = vadd.f32 %v2143, %v2207
        %v4336 = vadd.f32 %v2144, %v2208
        %v4337 = vadd.f32 %v2145, %v2209
        %v4338 = vadd.f32 %v2146, %v2210
        %v4339 = vadd.f32 %v2147, %v2211
        %v4340 = vadd.f32 %v2148, %v2212
        %v4341 = vadd.f32 %v2149, %v2213
        %v4342 = vadd.f32 %v2150, %v2214
        %v4343 = vadd.f32 %v2151, %v2215
        %v4344 = vadd.f32 %v2152, %v2216
        %v4345 = vadd.f32 %v2153, %v2217
        %v4346 = vadd.f32 %v2154, %v2218
        %v4347 = vadd.f32 %v2155, %v2219
        %v4348 = vadd.f32 %v2156, %v2220
        %v4349 = vadd.f32 %v2157, %v2221
        %v4350 = vadd.f32 %v2158, %v2222
        %v4351 = vadd.f32 %v2159, %v2223
        %v4352 = vadd.f32 %v2160, %v2224
        %v4353 = vadd.f32 %v2161, %v2225
        %v4354 = vadd.f32 %v2162, %v2226
        %v4355 = vadd.f32 %v2163, %v2227
        %v4356 = vadd.f32 %v2164, %v2228
        %v4357 = vadd.f32 %v2165, %v2229
        %v4358 = vadd.f32 %v2166, %v2230
        %v4359 = vadd.f32 %v2167, %v2231
        %v4360 = vadd.f32 %v2168, %v2232
        %v4361 = vadd.f32 %v2169, %v2233
        %v4362 = vadd.f32 %v2170, %v2234
        %v4363 = vadd.f32 %v2171, %v2235
        %v4364 = vadd.f32 %v2172, %v2236
        %v4365 = vadd.f32 %v2173, %v2237
        %v4366 = vadd.f32 %v2174, %v2238
        %v4367 = vadd.f32 %v2175, %v2239
        %v4368 = vadd.f32 %v2176, %v2240
        %v4369 = vadd.f32 %v2177, %v2241
        %v4370 = vadd.f32 %v2178, %v2242
        %v4371 = vadd.f32 %v2179, %v2243
        %v4372 = vadd.f32 %v2180, %v2244
        %v4373 = vadd.f32 %v2181, %v2245
        %v4374 = vadd.f32 %v2182, %v2246
        %v4375 = vadd.f32 %v2183, %v2247
        %v4376 = vadd.f32 %v2184, %v2248
        %v4377 = vadd.f32 %v2185, %v2249
        %v4378 = vadd.f32 %v2186, %v2250
        %v4379 = vadd.f32 %v2187, %v2251
        %v4380 = vadd.f32 %v2188, %v2252
        %v4381 = vadd.f32 %v2189, %v2253
        %v4382 = vadd.f32 %v2190, %v2254
        %v4383 = vadd.f32 %v2191, %v2255
        %v4384 = vadd.f32 %v2192, %v2256
        %v4385 = vadd.f32 %v4257, %v4321
        %v4386 = vadd.f32 %v4258, %v4322
        %v4387 = vadd.f32 %v4259, %v4323
        %v4388 = vadd.f32 %v4260, %v4324
        %v4389 = vadd.f32 %v4261, %v4325
        %v4390 = vadd.f32 %v4262, %v4326
        %v4391 = vadd.f32 %v4263, %v4327
        %v4392 = vadd.f32 %v4264, %v4328
        %v4393 = vadd.f32 %v4265, %v4329
        %v4394 = vadd.f32 %v4266, %v4330
        %v4395 = vadd.f32 %v4267, %v4331
        %v4396 = vadd.f32 %v4268, %v4332
        %v4397 = vadd.f32 %v4269, %v4333
        %v4398 = vadd.f32 %v4270, %v4334
        %v4399 = vadd.f32 %v4271, %v4335
        %v4400 = vadd.f32 %v4272, %v4336
        %v4401 = vadd.f32 %v4273, %v4337
        %v4402 = vadd.f32 %v4274, %v4338
        %v4403 = vadd.f32 %v4275, %v4339
        %v4404 = vadd.f32 %v4276, %v4340
        %v4405 = vadd.f32 %v4277, %v4341
        %v4406 = vadd.f32 %v4278, %v4342
        %v4407 = vadd.f32 %v4279, %v4343
        %v4408 = vadd.f32 %v4280, %v4344
        %v4409 = vadd.f32 %v4281, %v4345
        %v4410 = vadd.f32 %v4282, %v4346
        %v4411 = vadd.f32 %v4283, %v4347
        %v4412 = vadd.f32 %v4284, %v4348
        %v4413 = vadd.f32 %v4285, %v4349
        %v4414 = vadd.f32 %v4286, %v4350
        %v4415 = vadd.f32 %v4287, %v4351
        %v4416 = vadd.f32 %v4288, %v4352
        %v4417 = vadd.f32 %v4289, %v4353
        %v4418 = vadd.f32 %v4290, %v4354
        %v4419 = vadd.f32 %v4291, %v4355
        %v4420 = vadd.f32 %v4292, %v4356
        %v4421 = vadd.f32 %v4293, %v4357
        %v4422 = vadd.f32 %v4294, %v4358
        %v4423 = vadd.f32 %v4295, %v4359
        %v4424 = vadd.f32 %v4296, %v4360
        %v4425 = vadd.f32 %v4297, %v4361
        %v4426 = vadd.f32 %v4298, %v4362
        %v4427 = vadd.f32 %v4299, %v4363
        %v4428 = vadd.f32 %v4300, %v4364
        %v4429 = vadd.f32 %v4301, %v4365
        %v4430 = vadd.f32 %v4302, %v4366
        %v4431 = vadd.f32 %v4303, %v4367
        %v4432 = vadd.f32 %v4304, %v4368
        %v4433 = vadd.f32 %v4305, %v4369
        %v4434 = vadd.f32 %v4306, %v4370
        %v4435 = vadd.f32 %v4307, %v4371
        %v4436 = vadd.f32 %v4308, %v4372
        %v4437 = vadd.f32 %v4309, %v4373
        %v4438 = vadd.f32 %v4310, %v4374
        %v4439 = vadd.f32 %v4311, %v4375
        %v4440 = vadd.f32 %v4312, %v4376
        %v4441 = vadd.f32 %v4313, %v4377
        %v4442 = vadd.f32 %v4314, %v4378
        %v4443 = vadd.f32 %v4315, %v4379
        %v4444 = vadd.f32 %v4316, %v4380
        %v4445 = vadd.f32 %v4317, %v4381
        %v4446 = vadd.f32 %v4318, %v4382
        %v4447 = vadd.f32 %v4319, %v4383
        %v4448 = vadd.f32 %v4320, %v4384
        %4449 = vst [vmem:[%s428] sm:$0xff] %v4385
        %4450 = vst [vmem:[%s428 + $0x8] sm:$0xff] %v4386
        %4451 = vst [vmem:[%s428 + $0x10] sm:$0xff] %v4387
        %4452 = vst [vmem:[%s428 + $0x18] sm:$0xff] %v4388
        %4453 = vst [vmem:[%s428 + $0x20] sm:$0xff] %v4389
        %4454 = vst [vmem:[%s428 + $0x28] sm:$0xff] %v4390
        %4455 = vst [vmem:[%s428 + $0x30] sm:$0xff] %v4391
        %4456 = vst [vmem:[%s428 + $0x38] sm:$0xff] %v4392
        %4457 = vst [vmem:[%s428 + $0x40] sm:$0xff] %v4393
        %4458 = vst [vmem:[%s428 + $0x48] sm:$0xff] %v4394
        %4459 = vst [vmem:[%s428 + $0x50] sm:$0xff] %v4395
        %4460 = vst [vmem:[%s428 + $0x58] sm:$0xff] %v4396
        %4461 = vst [vmem:[%s428 + $0x60] sm:$0xff] %v4397
        %4462 = vst [vmem:[%s428 + $0x68] sm:$0xff] %v4398
        %4463 = vst [vmem:[%s428 + $0x70] sm:$0xff] %v4399
        %4464 = vst [vmem:[%s428 + $0x78] sm:$0xff] %v4400
        %4465 = vst [vmem:[%s428 + $0x80] sm:$0xff] %v4401
        %4466 = vst [vmem:[%s428 + $0x88] sm:$0xff] %v4402
        %4467 = vst [vmem:[%s428 + $0x90] sm:$0xff] %v4403
        %4468 = vst [vmem:[%s428 + $0x98] sm:$0xff] %v4404
        %4469 = vst [vmem:[%s428 + $0xa0] sm:$0xff] %v4405
        %4470 = vst [vmem:[%s428 + $0xa8] sm:$0xff] %v4406
        %4471 = vst [vmem:[%s428 + $0xb0] sm:$0xff] %v4407
        %4472 = vst [vmem:[%s428 + $0xb8] sm:$0xff] %v4408
        %4473 = vst [vmem:[%s428 + $0xc0] sm:$0xff] %v4409
        %4474 = vst [vmem:[%s428 + $0xc8] sm:$0xff] %v4410
        %4475 = vst [vmem:[%s428 + $0xd0] sm:$0xff] %v4411
        %4476 = vst [vmem:[%s428 + $0xd8] sm:$0xff] %v4412
        %4477 = vst [vmem:[%s428 + $0xe0] sm:$0xff] %v4413
        %4478 = vst [vmem:[%s428 + $0xe8] sm:$0xff] %v4414
        %4479 = vst [vmem:[%s428 + $0xf0] sm:$0xff] %v4415
        %4480 = vst [vmem:[%s428 + $0xf8] sm:$0xff] %v4416
        %4481 = vst [vmem:[%s428 + $0x100] sm:$0xff] %v4417
        %4482 = vst [vmem:[%s428 + $0x108] sm:$0xff] %v4418
        %4483 = vst [vmem:[%s428 + $0x110] sm:$0xff] %v4419
        %4484 = vst [vmem:[%s428 + $0x118] sm:$0xff] %v4420
        %4485 = vst [vmem:[%s428 + $0x120] sm:$0xff] %v4421
        %4486 = vst [vmem:[%s428 + $0x128] sm:$0xff] %v4422
        %4487 = vst [vmem:[%s428 + $0x130] sm:$0xff] %v4423
        %4488 = vst [vmem:[%s428 + $0x138] sm:$0xff] %v4424
        %4489 = vst [vmem:[%s428 + $0x140] sm:$0xff] %v4425
        %4490 = vst [vmem:[%s428 + $0x148] sm:$0xff] %v4426
        %4491 = vst [vmem:[%s428 + $0x150] sm:$0xff] %v4427
        %4492 = vst [vmem:[%s428 + $0x158] sm:$0xff] %v4428
        %4493 = vst [vmem:[%s428 + $0x160] sm:$0xff] %v4429
        %4494 = vst [vmem:[%s428 + $0x168] sm:$0xff] %v4430
        %4495 = vst [vmem:[%s428 + $0x170] sm:$0xff] %v4431
        %4496 = vst [vmem:[%s428 + $0x178] sm:$0xff] %v4432
        %4497 = vst [vmem:[%s428 + $0x180] sm:$0xff] %v4433
        %4498 = vst [vmem:[%s428 + $0x188] sm:$0xff] %v4434
        %4499 = vst [vmem:[%s428 + $0x190] sm:$0xff] %v4435
        %4500 = vst [vmem:[%s428 + $0x198] sm:$0xff] %v4436
        %4501 = vst [vmem:[%s428 + $0x1a0] sm:$0xff] %v4437
        %4502 = vst [vmem:[%s428 + $0x1a8] sm:$0xff] %v4438
        %4503 = vst [vmem:[%s428 + $0x1b0] sm:$0xff] %v4439
        %4504 = vst [vmem:[%s428 + $0x1b8] sm:$0xff] %v4440
        %4505 = vst [vmem:[%s428 + $0x1c0] sm:$0xff] %v4441
        %4506 = vst [vmem:[%s428 + $0x1c8] sm:$0xff] %v4442
        %4507 = vst [vmem:[%s428 + $0x1d0] sm:$0xff] %v4443
        %4508 = vst [vmem:[%s428 + $0x1d8] sm:$0xff] %v4444
        %4509 = vst [vmem:[%s428 + $0x1e0] sm:$0xff] %v4445
        %4510 = vst [vmem:[%s428 + $0x1e8] sm:$0xff] %v4446
        %4511 = vst [vmem:[%s428 + $0x1f0] sm:$0xff] %v4447
        %4512 = vst [vmem:[%s428 + $0x1f8] sm:$0xff] %v4448
        %v4513 = vld [vmem:[%s421] sm:$0xff]
        %v4514 = vld [vmem:[%s421 + $0x8] sm:$0xff]
        %v4515 = vld [vmem:[%s421 + $0x10] sm:$0xff]
        %v4516 = vld [vmem:[%s421 + $0x18] sm:$0xff]
        %v4517 = vld [vmem:[%s421 + $0x20] sm:$0xff]
        %v4518 = vld [vmem:[%s421 + $0x28] sm:$0xff]
        %v4519 = vld [vmem:[%s421 + $0x30] sm:$0xff]
        %v4520 = vld [vmem:[%s421 + $0x38] sm:$0xff]
        %v4521 = vld [vmem:[%s421 + $0x40] sm:$0xff]
        %v4522 = vld [vmem:[%s421 + $0x48] sm:$0xff]
        %v4523 = vld [vmem:[%s421 + $0x50] sm:$0xff]
        %v4524 = vld [vmem:[%s421 + $0x58] sm:$0xff]
        %v4525 = vld [vmem:[%s421 + $0x60] sm:$0xff]
        %v4526 = vld [vmem:[%s421 + $0x68] sm:$0xff]
        %v4527 = vld [vmem:[%s421 + $0x70] sm:$0xff]
        %v4528 = vld [vmem:[%s421 + $0x78] sm:$0xff]
        %v4529 = vld [vmem:[%s421 + $0x80] sm:$0xff]
        %v4530 = vld [vmem:[%s421 + $0x88] sm:$0xff]
        %v4531 = vld [vmem:[%s421 + $0x90] sm:$0xff]
        %v4532 = vld [vmem:[%s421 + $0x98] sm:$0xff]
        %v4533 = vld [vmem:[%s421 + $0xa0] sm:$0xff]
        %v4534 = vld [vmem:[%s421 + $0xa8] sm:$0xff]
        %v4535 = vld [vmem:[%s421 + $0xb0] sm:$0xff]
        %v4536 = vld [vmem:[%s421 + $0xb8] sm:$0xff]
        %v4537 = vld [vmem:[%s421 + $0xc0] sm:$0xff]
        %v4538 = vld [vmem:[%s421 + $0xc8] sm:$0xff]
        %v4539 = vld [vmem:[%s421 + $0xd0] sm:$0xff]
        %v4540 = vld [vmem:[%s421 + $0xd8] sm:$0xff]
        %v4541 = vld [vmem:[%s421 + $0xe0] sm:$0xff]
        %v4542 = vld [vmem:[%s421 + $0xe8] sm:$0xff]
        %v4543 = vld [vmem:[%s421 + $0xf0] sm:$0xff]
        %v4544 = vld [vmem:[%s421 + $0xf8] sm:$0xff]
        %v4545 = vld [vmem:[%s421 + $0x100] sm:$0xff]
        %v4546 = vld [vmem:[%s421 + $0x108] sm:$0xff]
        %v4547 = vld [vmem:[%s421 + $0x110] sm:$0xff]
        %v4548 = vld [vmem:[%s421 + $0x118] sm:$0xff]
        %v4549 = vld [vmem:[%s421 + $0x120] sm:$0xff]
        %v4550 = vld [vmem:[%s421 + $0x128] sm:$0xff]
        %v4551 = vld [vmem:[%s421 + $0x130] sm:$0xff]
        %v4552 = vld [vmem:[%s421 + $0x138] sm:$0xff]
        %v4553 = vld [vmem:[%s421 + $0x140] sm:$0xff]
        %v4554 = vld [vmem:[%s421 + $0x148] sm:$0xff]
        %v4555 = vld [vmem:[%s421 + $0x150] sm:$0xff]
        %v4556 = vld [vmem:[%s421 + $0x158] sm:$0xff]
        %v4557 = vld [vmem:[%s421 + $0x160] sm:$0xff]
        %v4558 = vld [vmem:[%s421 + $0x168] sm:$0xff]
        %v4559 = vld [vmem:[%s421 + $0x170] sm:$0xff]
        %v4560 = vld [vmem:[%s421 + $0x178] sm:$0xff]
        %v4561 = vld [vmem:[%s421 + $0x180] sm:$0xff]
        %v4562 = vld [vmem:[%s421 + $0x188] sm:$0xff]
        %v4563 = vld [vmem:[%s421 + $0x190] sm:$0xff]
        %v4564 = vld [vmem:[%s421 + $0x198] sm:$0xff]
        %v4565 = vld [vmem:[%s421 + $0x1a0] sm:$0xff]
        %v4566 = vld [vmem:[%s421 + $0x1a8] sm:$0xff]
        %v4567 = vld [vmem:[%s421 + $0x1b0] sm:$0xff]
        %v4568 = vld [vmem:[%s421 + $0x1b8] sm:$0xff]
        %v4569 = vld [vmem:[%s421 + $0x1c0] sm:$0xff]
        %v4570 = vld [vmem:[%s421 + $0x1c8] sm:$0xff]
        %v4571 = vld [vmem:[%s421 + $0x1d0] sm:$0xff]
        %v4572 = vld [vmem:[%s421 + $0x1d8] sm:$0xff]
        %v4573 = vld [vmem:[%s421 + $0x1e0] sm:$0xff]
        %v4574 = vld [vmem:[%s421 + $0x1e8] sm:$0xff]
        %v4575 = vld [vmem:[%s421 + $0x1f0] sm:$0xff]
        %v4576 = vld [vmem:[%s421 + $0x1f8] sm:$0xff]
        %v4577 = vadd.f32 %v4513, %v3934
        %v4578 = vadd.f32 %v4514, %v3937
        %v4579 = vadd.f32 %v4515, %v3940
        %v4580 = vadd.f32 %v4516, %v3943
        %v4581 = vadd.f32 %v4517, %v3946
        %v4582 = vadd.f32 %v4518, %v3949
        %v4583 = vadd.f32 %v4519, %v3952
        %v4584 = vadd.f32 %v4520, %v3955
        %v4585 = vadd.f32 %v4521, %v3958
        %v4586 = vadd.f32 %v4522, %v3961
        %v4587 = vadd.f32 %v4523, %v3964
        %v4588 = vadd.f32 %v4524, %v3967
        %v4589 = vadd.f32 %v4525, %v3970
        %v4590 = vadd.f32 %v4526, %v3973
        %v4591 = vadd.f32 %v4527, %v3976
        %v4592 = vadd.f32 %v4528, %v3979
        %v4593 = vadd.f32 %v4529, %v3982
        %v4594 = vadd.f32 %v4530, %v3985
        %v4595 = vadd.f32 %v4531, %v3988
        %v4596 = vadd.f32 %v4532, %v3991
        %v4597 = vadd.f32 %v4533, %v3994
        %v4598 = vadd.f32 %v4534, %v3997
        %v4599 = vadd.f32 %v4535, %v4000
        %v4600 = vadd.f32 %v4536, %v4003
        %v4601 = vadd.f32 %v4537, %v4006
        %v4602 = vadd.f32 %v4538, %v4009
        %v4603 = vadd.f32 %v4539, %v4012
        %v4604 = vadd.f32 %v4540, %v4015
        %v4605 = vadd.f32 %v4541, %v4018
        %v4606 = vadd.f32 %v4542, %v4021
        %v4607 = vadd.f32 %v4543, %v4024
        %v4608 = vadd.f32 %v4544, %v4027
        %v4609 = vadd.f32 %v4545, %v4030
        %v4610 = vadd.f32 %v4546, %v4033
        %v4611 = vadd.f32 %v4547, %v4036
        %v4612 = vadd.f32 %v4548, %v4039
        %v4613 = vadd.f32 %v4549, %v4042
        %v4614 = vadd.f32 %v4550, %v4045
        %v4615 = vadd.f32 %v4551, %v4048
        %v4616 = vadd.f32 %v4552, %v4051
        %v4617 = vadd.f32 %v4553, %v4054
        %v4618 = vadd.f32 %v4554, %v4057
        %v4619 = vadd.f32 %v4555, %v4060
        %v4620 = vadd.f32 %v4556, %v4063
        %v4621 = vadd.f32 %v4557, %v4066
        %v4622 = vadd.f32 %v4558, %v4069
        %v4623 = vadd.f32 %v4559, %v4072
        %v4624 = vadd.f32 %v4560, %v4075
        %v4625 = vadd.f32 %v4561, %v4078
        %v4626 = vadd.f32 %v4562, %v4081
        %v4627 = vadd.f32 %v4563, %v4084
        %v4628 = vadd.f32 %v4564, %v4087
        %v4629 = vadd.f32 %v4565, %v4090
        %v4630 = vadd.f32 %v4566, %v4093
        %v4631 = vadd.f32 %v4567, %v4096
        %v4632 = vadd.f32 %v4568, %v4099
        %v4633 = vadd.f32 %v4569, %v4102
        %v4634 = vadd.f32 %v4570, %v4105
        %v4635 = vadd.f32 %v4571, %v4108
        %v4636 = vadd.f32 %v4572, %v4111
        %v4637 = vadd.f32 %v4573, %v4114
        %v4638 = vadd.f32 %v4574, %v4117
        %v4639 = vadd.f32 %v4575, %v4120
        %v4640 = vadd.f32 %v4576, %v4123
        %4641 = vst [vmem:[%s421] sm:$0xff] %v4577
        %4642 = vst [vmem:[%s421 + $0x8] sm:$0xff] %v4578
        %4643 = vst [vmem:[%s421 + $0x10] sm:$0xff] %v4579
        %4644 = vst [vmem:[%s421 + $0x18] sm:$0xff] %v4580
        %4645 = vst [vmem:[%s421 + $0x20] sm:$0xff] %v4581
        %4646 = vst [vmem:[%s421 + $0x28] sm:$0xff] %v4582
        %4647 = vst [vmem:[%s421 + $0x30] sm:$0xff] %v4583
        %4648 = vst [vmem:[%s421 + $0x38] sm:$0xff] %v4584
        %4649 = vst [vmem:[%s421 + $0x40] sm:$0xff] %v4585
        %4650 = vst [vmem:[%s421 + $0x48] sm:$0xff] %v4586
        %4651 = vst [vmem:[%s421 + $0x50] sm:$0xff] %v4587
        %4652 = vst [vmem:[%s421 + $0x58] sm:$0xff] %v4588
        %4653 = vst [vmem:[%s421 + $0x60] sm:$0xff] %v4589
        %4654 = vst [vmem:[%s421 + $0x68] sm:$0xff] %v4590
        %4655 = vst [vmem:[%s421 + $0x70] sm:$0xff] %v4591
        %4656 = vst [vmem:[%s421 + $0x78] sm:$0xff] %v4592
        %4657 = vst [vmem:[%s421 + $0x80] sm:$0xff] %v4593
        %4658 = vst [vmem:[%s421 + $0x88] sm:$0xff] %v4594
        %4659 = vst [vmem:[%s421 + $0x90] sm:$0xff] %v4595
        %4660 = vst [vmem:[%s421 + $0x98] sm:$0xff] %v4596
        %4661 = vst [vmem:[%s421 + $0xa0] sm:$0xff] %v4597
        %4662 = vst [vmem:[%s421 + $0xa8] sm:$0xff] %v4598
        %4663 = vst [vmem:[%s421 + $0xb0] sm:$0xff] %v4599
        %4664 = vst [vmem:[%s421 + $0xb8] sm:$0xff] %v4600
        %4665 = vst [vmem:[%s421 + $0xc0] sm:$0xff] %v4601
        %4666 = vst [vmem:[%s421 + $0xc8] sm:$0xff] %v4602
        %4667 = vst [vmem:[%s421 + $0xd0] sm:$0xff] %v4603
        %4668 = vst [vmem:[%s421 + $0xd8] sm:$0xff] %v4604
        %4669 = vst [vmem:[%s421 + $0xe0] sm:$0xff] %v4605
        %4670 = vst [vmem:[%s421 + $0xe8] sm:$0xff] %v4606
        %4671 = vst [vmem:[%s421 + $0xf0] sm:$0xff] %v4607
        %4672 = vst [vmem:[%s421 + $0xf8] sm:$0xff] %v4608
        %4673 = vst [vmem:[%s421 + $0x100] sm:$0xff] %v4609
        %4674 = vst [vmem:[%s421 + $0x108] sm:$0xff] %v4610
        %4675 = vst [vmem:[%s421 + $0x110] sm:$0xff] %v4611
        %4676 = vst [vmem:[%s421 + $0x118] sm:$0xff] %v4612
        %4677 = vst [vmem:[%s421 + $0x120] sm:$0xff] %v4613
        %4678 = vst [vmem:[%s421 + $0x128] sm:$0xff] %v4614
        %4679 = vst [vmem:[%s421 + $0x130] sm:$0xff] %v4615
        %4680 = vst [vmem:[%s421 + $0x138] sm:$0xff] %v4616
        %4681 = vst [vmem:[%s421 + $0x140] sm:$0xff] %v4617
        %4682 = vst [vmem:[%s421 + $0x148] sm:$0xff] %v4618
        %4683 = vst [vmem:[%s421 + $0x150] sm:$0xff] %v4619
        %4684 = vst [vmem:[%s421 + $0x158] sm:$0xff] %v4620
        %4685 = vst [vmem:[%s421 + $0x160] sm:$0xff] %v4621
        %4686 = vst [vmem:[%s421 + $0x168] sm:$0xff] %v4622
        %4687 = vst [vmem:[%s421 + $0x170] sm:$0xff] %v4623
        %4688 = vst [vmem:[%s421 + $0x178] sm:$0xff] %v4624
        %4689 = vst [vmem:[%s421 + $0x180] sm:$0xff] %v4625
        %4690 = vst [vmem:[%s421 + $0x188] sm:$0xff] %v4626
        %4691 = vst [vmem:[%s421 + $0x190] sm:$0xff] %v4627
        %4692 = vst [vmem:[%s421 + $0x198] sm:$0xff] %v4628
        %4693 = vst [vmem:[%s421 + $0x1a0] sm:$0xff] %v4629
        %4694 = vst [vmem:[%s421 + $0x1a8] sm:$0xff] %v4630
        %4695 = vst [vmem:[%s421 + $0x1b0] sm:$0xff] %v4631
        %4696 = vst [vmem:[%s421 + $0x1b8] sm:$0xff] %v4632
        %4697 = vst [vmem:[%s421 + $0x1c0] sm:$0xff] %v4633
        %4698 = vst [vmem:[%s421 + $0x1c8] sm:$0xff] %v4634
        %4699 = vst [vmem:[%s421 + $0x1d0] sm:$0xff] %v4635
        %4700 = vst [vmem:[%s421 + $0x1d8] sm:$0xff] %v4636
        %4701 = vst [vmem:[%s421 + $0x1e0] sm:$0xff] %v4637
        %4702 = vst [vmem:[%s421 + $0x1e8] sm:$0xff] %v4638
        %4703 = vst [vmem:[%s421 + $0x1f0] sm:$0xff] %v4639
        %4704 = vst [vmem:[%s421 + $0x1f8] sm:$0xff] %v4640
        %p4705 = scmp.eq.s32.totalorder %s33, 1
        // Predicated region
        $region61: #{tpu_custom_call.1} parent=39 // pred_check
          %p4706 = pneg %p4705
        $region62: #{tpu_custom_call.1} parent=39 // pred_check_branch
          %4708 = sbr.rel (%p4706) target = $region64
        $region63: #{tpu_custom_call.1} parent=39 // pred_region
          %v4709 = vld [vmem:[%s4] sm:$0x1]
          %v4710 = vld [vmem:[%s421] sm:$0xff]
          %v4711 = vld [vmem:[%s421 + $0x8] sm:$0xff]
          %v4712 = vld [vmem:[%s421 + $0x10] sm:$0xff]
          %v4713 = vld [vmem:[%s421 + $0x18] sm:$0xff]
          %v4714 = vld [vmem:[%s421 + $0x20] sm:$0xff]
          %v4715 = vld [vmem:[%s421 + $0x28] sm:$0xff]
          %v4716 = vld [vmem:[%s421 + $0x30] sm:$0xff]
          %v4717 = vld [vmem:[%s421 + $0x38] sm:$0xff]
          %v4718 = vld [vmem:[%s421 + $0x40] sm:$0xff]
          %v4719 = vld [vmem:[%s421 + $0x48] sm:$0xff]
          %v4720 = vld [vmem:[%s421 + $0x50] sm:$0xff]
          %v4721 = vld [vmem:[%s421 + $0x58] sm:$0xff]
          %v4722 = vld [vmem:[%s421 + $0x60] sm:$0xff]
          %v4723 = vld [vmem:[%s421 + $0x68] sm:$0xff]
          %v4724 = vld [vmem:[%s421 + $0x70] sm:$0xff]
          %v4725 = vld [vmem:[%s421 + $0x78] sm:$0xff]
          %v4726 = vld [vmem:[%s421 + $0x80] sm:$0xff]
          %v4727 = vld [vmem:[%s421 + $0x88] sm:$0xff]
          %v4728 = vld [vmem:[%s421 + $0x90] sm:$0xff]
          %v4729 = vld [vmem:[%s421 + $0x98] sm:$0xff]
          %v4730 = vld [vmem:[%s421 + $0xa0] sm:$0xff]
          %v4731 = vld [vmem:[%s421 + $0xa8] sm:$0xff]
          %v4732 = vld [vmem:[%s421 + $0xb0] sm:$0xff]
          %v4733 = vld [vmem:[%s421 + $0xb8] sm:$0xff]
          %v4734 = vld [vmem:[%s421 + $0xc0] sm:$0xff]
          %v4735 = vld [vmem:[%s421 + $0xc8] sm:$0xff]
          %v4736 = vld [vmem:[%s421 + $0xd0] sm:$0xff]
          %v4737 = vld [vmem:[%s421 + $0xd8] sm:$0xff]
          %v4738 = vld [vmem:[%s421 + $0xe0] sm:$0xff]
          %v4739 = vld [vmem:[%s421 + $0xe8] sm:$0xff]
          %v4740 = vld [vmem:[%s421 + $0xf0] sm:$0xff]
          %v4741 = vld [vmem:[%s421 + $0xf8] sm:$0xff]
          %v4742 = vld [vmem:[%s421 + $0x100] sm:$0xff]
          %v4743 = vld [vmem:[%s421 + $0x108] sm:$0xff]
          %v4744 = vld [vmem:[%s421 + $0x110] sm:$0xff]
          %v4745 = vld [vmem:[%s421 + $0x118] sm:$0xff]
          %v4746 = vld [vmem:[%s421 + $0x120] sm:$0xff]
          %v4747 = vld [vmem:[%s421 + $0x128] sm:$0xff]
          %v4748 = vld [vmem:[%s421 + $0x130] sm:$0xff]
          %v4749 = vld [vmem:[%s421 + $0x138] sm:$0xff]
          %v4750 = vld [vmem:[%s421 + $0x140] sm:$0xff]
          %v4751 = vld [vmem:[%s421 + $0x148] sm:$0xff]
          %v4752 = vld [vmem:[%s421 + $0x150] sm:$0xff]
          %v4753 = vld [vmem:[%s421 + $0x158] sm:$0xff]
          %v4754 = vld [vmem:[%s421 + $0x160] sm:$0xff]
          %v4755 = vld [vmem:[%s421 + $0x168] sm:$0xff]
          %v4756 = vld [vmem:[%s421 + $0x170] sm:$0xff]
          %v4757 = vld [vmem:[%s421 + $0x178] sm:$0xff]
          %v4758 = vld [vmem:[%s421 + $0x180] sm:$0xff]
          %v4759 = vld [vmem:[%s421 + $0x188] sm:$0xff]
          %v4760 = vld [vmem:[%s421 + $0x190] sm:$0xff]
          %v4761 = vld [vmem:[%s421 + $0x198] sm:$0xff]
          %v4762 = vld [vmem:[%s421 + $0x1a0] sm:$0xff]
          %v4763 = vld [vmem:[%s421 + $0x1a8] sm:$0xff]
          %v4764 = vld [vmem:[%s421 + $0x1b0] sm:$0xff]
          %v4765 = vld [vmem:[%s421 + $0x1b8] sm:$0xff]
          %v4766 = vld [vmem:[%s421 + $0x1c0] sm:$0xff]
          %v4767 = vld [vmem:[%s421 + $0x1c8] sm:$0xff]
          %v4768 = vld [vmem:[%s421 + $0x1d0] sm:$0xff]
          %v4769 = vld [vmem:[%s421 + $0x1d8] sm:$0xff]
          %v4770 = vld [vmem:[%s421 + $0x1e0] sm:$0xff]
          %v4771 = vld [vmem:[%s421 + $0x1e8] sm:$0xff]
          %v4772 = vld [vmem:[%s421 + $0x1f0] sm:$0xff]
          %v4773 = vld [vmem:[%s421 + $0x1f8] sm:$0xff]
          %v4775 = vperm.slane %v4709, 0
          %v4777 = vadd.f32 %v4710, %v4775
          %v4778 = vadd.f32 %v4711, %v4775
          %v4779 = vadd.f32 %v4712, %v4775
          %v4780 = vadd.f32 %v4713, %v4775
          %v4781 = vadd.f32 %v4714, %v4775
          %v4782 = vadd.f32 %v4715, %v4775
          %v4783 = vadd.f32 %v4716, %v4775
          %v4784 = vadd.f32 %v4717, %v4775
          %v4785 = vadd.f32 %v4718, %v4775
          %v4786 = vadd.f32 %v4719, %v4775
          %v4787 = vadd.f32 %v4720, %v4775
          %v4788 = vadd.f32 %v4721, %v4775
          %v4789 = vadd.f32 %v4722, %v4775
          %v4790 = vadd.f32 %v4723, %v4775
          %v4791 = vadd.f32 %v4724, %v4775
          %v4792 = vadd.f32 %v4725, %v4775
          %v4793 = vadd.f32 %v4726, %v4775
          %v4794 = vadd.f32 %v4727, %v4775
          %v4795 = vadd.f32 %v4728, %v4775
          %v4796 = vadd.f32 %v4729, %v4775
          %v4797 = vadd.f32 %v4730, %v4775
          %v4798 = vadd.f32 %v4731, %v4775
          %v4799 = vadd.f32 %v4732, %v4775
          %v4800 = vadd.f32 %v4733, %v4775
          %v4801 = vadd.f32 %v4734, %v4775
          %v4802 = vadd.f32 %v4735, %v4775
          %v4803 = vadd.f32 %v4736, %v4775
          %v4804 = vadd.f32 %v4737, %v4775
          %v4805 = vadd.f32 %v4738, %v4775
          %v4806 = vadd.f32 %v4739, %v4775
          %v4807 = vadd.f32 %v4740, %v4775
          %v4808 = vadd.f32 %v4741, %v4775
          %v4809 = vadd.f32 %v4742, %v4775
          %v4810 = vadd.f32 %v4743, %v4775
          %v4811 = vadd.f32 %v4744, %v4775
          %v4812 = vadd.f32 %v4745, %v4775
          %v4813 = vadd.f32 %v4746, %v4775
          %v4814 = vadd.f32 %v4747, %v4775
          %v4815 = vadd.f32 %v4748, %v4775
          %v4816 = vadd.f32 %v4749, %v4775
          %v4817 = vadd.f32 %v4750, %v4775
          %v4818 = vadd.f32 %v4751, %v4775
          %v4819 = vadd.f32 %v4752, %v4775
          %v4820 = vadd.f32 %v4753, %v4775
          %v4821 = vadd.f32 %v4754, %v4775
          %v4822 = vadd.f32 %v4755, %v4775
          %v4823 = vadd.f32 %v4756, %v4775
          %v4824 = vadd.f32 %v4757, %v4775
          %v4825 = vadd.f32 %v4758, %v4775
          %v4826 = vadd.f32 %v4759, %v4775
          %v4827 = vadd.f32 %v4760, %v4775
          %v4828 = vadd.f32 %v4761, %v4775
          %v4829 = vadd.f32 %v4762, %v4775
          %v4830 = vadd.f32 %v4763, %v4775
          %v4831 = vadd.f32 %v4764, %v4775
          %v4832 = vadd.f32 %v4765, %v4775
          %v4833 = vadd.f32 %v4766, %v4775
          %v4834 = vadd.f32 %v4767, %v4775
          %v4835 = vadd.f32 %v4768, %v4775
          %v4836 = vadd.f32 %v4769, %v4775
          %v4837 = vadd.f32 %v4770, %v4775
          %v4838 = vadd.f32 %v4771, %v4775
          %v4839 = vadd.f32 %v4772, %v4775
          %v4840 = vadd.f32 %v4773, %v4775
          %v4841 = vmax.f32 %v4777, 0.0
          %v4842 = vmax.f32 %v4778, 0.0
          %v4843 = vmax.f32 %v4779, 0.0
          %v4844 = vmax.f32 %v4780, 0.0
          %v4845 = vmax.f32 %v4781, 0.0
          %v4846 = vmax.f32 %v4782, 0.0
          %v4847 = vmax.f32 %v4783, 0.0
          %v4848 = vmax.f32 %v4784, 0.0
          %v4849 = vmax.f32 %v4785, 0.0
          %v4850 = vmax.f32 %v4786, 0.0
          %v4851 = vmax.f32 %v4787, 0.0
          %v4852 = vmax.f32 %v4788, 0.0
          %v4853 = vmax.f32 %v4789, 0.0
          %v4854 = vmax.f32 %v4790, 0.0
          %v4855 = vmax.f32 %v4791, 0.0
          %v4856 = vmax.f32 %v4792, 0.0
          %v4857 = vmax.f32 %v4793, 0.0
          %v4858 = vmax.f32 %v4794, 0.0
          %v4859 = vmax.f32 %v4795, 0.0
          %v4860 = vmax.f32 %v4796, 0.0
          %v4861 = vmax.f32 %v4797, 0.0
          %v4862 = vmax.f32 %v4798, 0.0
          %v4863 = vmax.f32 %v4799, 0.0
          %v4864 = vmax.f32 %v4800, 0.0
          %v4865 = vmax.f32 %v4801, 0.0
          %v4866 = vmax.f32 %v4802, 0.0
          %v4867 = vmax.f32 %v4803, 0.0
          %v4868 = vmax.f32 %v4804, 0.0
          %v4869 = vmax.f32 %v4805, 0.0
          %v4870 = vmax.f32 %v4806, 0.0
          %v4871 = vmax.f32 %v4807, 0.0
          %v4872 = vmax.f32 %v4808, 0.0
          %v4873 = vmax.f32 %v4809, 0.0
          %v4874 = vmax.f32 %v4810, 0.0
          %v4875 = vmax.f32 %v4811, 0.0
          %v4876 = vmax.f32 %v4812, 0.0
          %v4877 = vmax.f32 %v4813, 0.0
          %v4878 = vmax.f32 %v4814, 0.0
          %v4879 = vmax.f32 %v4815, 0.0
          %v4880 = vmax.f32 %v4816, 0.0
          %v4881 = vmax.f32 %v4817, 0.0
          %v4882 = vmax.f32 %v4818, 0.0
          %v4883 = vmax.f32 %v4819, 0.0
          %v4884 = vmax.f32 %v4820, 0.0
          %v4885 = vmax.f32 %v4821, 0.0
          %v4886 = vmax.f32 %v4822, 0.0
          %v4887 = vmax.f32 %v4823, 0.0
          %v4888 = vmax.f32 %v4824, 0.0
          %v4889 = vmax.f32 %v4825, 0.0
          %v4890 = vmax.f32 %v4826, 0.0
          %v4891 = vmax.f32 %v4827, 0.0
          %v4892 = vmax.f32 %v4828, 0.0
          %v4893 = vmax.f32 %v4829, 0.0
          %v4894 = vmax.f32 %v4830, 0.0
          %v4895 = vmax.f32 %v4831, 0.0
          %v4896 = vmax.f32 %v4832, 0.0
          %v4897 = vmax.f32 %v4833, 0.0
          %v4898 = vmax.f32 %v4834, 0.0
          %v4899 = vmax.f32 %v4835, 0.0
          %v4900 = vmax.f32 %v4836, 0.0
          %v4901 = vmax.f32 %v4837, 0.0
          %v4902 = vmax.f32 %v4838, 0.0
          %v4903 = vmax.f32 %v4839, 0.0
          %v4904 = vmax.f32 %v4840, 0.0
          %4905 = vst [vmem:[%s421] sm:$0xff] %v4841
          %4906 = vst [vmem:[%s421 + $0x8] sm:$0xff] %v4842
          %4907 = vst [vmem:[%s421 + $0x10] sm:$0xff] %v4843
          %4908 = vst [vmem:[%s421 + $0x18] sm:$0xff] %v4844
          %4909 = vst [vmem:[%s421 + $0x20] sm:$0xff] %v4845
          %4910 = vst [vmem:[%s421 + $0x28] sm:$0xff] %v4846
          %4911 = vst [vmem:[%s421 + $0x30] sm:$0xff] %v4847
          %4912 = vst [vmem:[%s421 + $0x38] sm:$0xff] %v4848
          %4913 = vst [vmem:[%s421 + $0x40] sm:$0xff] %v4849
          %4914 = vst [vmem:[%s421 + $0x48] sm:$0xff] %v4850
          %4915 = vst [vmem:[%s421 + $0x50] sm:$0xff] %v4851
          %4916 = vst [vmem:[%s421 + $0x58] sm:$0xff] %v4852
          %4917 = vst [vmem:[%s421 + $0x60] sm:$0xff] %v4853
          %4918 = vst [vmem:[%s421 + $0x68] sm:$0xff] %v4854
          %4919 = vst [vmem:[%s421 + $0x70] sm:$0xff] %v4855
          %4920 = vst [vmem:[%s421 + $0x78] sm:$0xff] %v4856
          %4921 = vst [vmem:[%s421 + $0x80] sm:$0xff] %v4857
          %4922 = vst [vmem:[%s421 + $0x88] sm:$0xff] %v4858
          %4923 = vst [vmem:[%s421 + $0x90] sm:$0xff] %v4859
          %4924 = vst [vmem:[%s421 + $0x98] sm:$0xff] %v4860
          %4925 = vst [vmem:[%s421 + $0xa0] sm:$0xff] %v4861
          %4926 = vst [vmem:[%s421 + $0xa8] sm:$0xff] %v4862
          %4927 = vst [vmem:[%s421 + $0xb0] sm:$0xff] %v4863
          %4928 = vst [vmem:[%s421 + $0xb8] sm:$0xff] %v4864
          %4929 = vst [vmem:[%s421 + $0xc0] sm:$0xff] %v4865
          %4930 = vst [vmem:[%s421 + $0xc8] sm:$0xff] %v4866
          %4931 = vst [vmem:[%s421 + $0xd0] sm:$0xff] %v4867
          %4932 = vst [vmem:[%s421 + $0xd8] sm:$0xff] %v4868
          %4933 = vst [vmem:[%s421 + $0xe0] sm:$0xff] %v4869
          %4934 = vst [vmem:[%s421 + $0xe8] sm:$0xff] %v4870
          %4935 = vst [vmem:[%s421 + $0xf0] sm:$0xff] %v4871
          %4936 = vst [vmem:[%s421 + $0xf8] sm:$0xff] %v4872
          %4937 = vst [vmem:[%s421 + $0x100] sm:$0xff] %v4873
          %4938 = vst [vmem:[%s421 + $0x108] sm:$0xff] %v4874
          %4939 = vst [vmem:[%s421 + $0x110] sm:$0xff] %v4875
          %4940 = vst [vmem:[%s421 + $0x118] sm:$0xff] %v4876
          %4941 = vst [vmem:[%s421 + $0x120] sm:$0xff] %v4877
          %4942 = vst [vmem:[%s421 + $0x128] sm:$0xff] %v4878
          %4943 = vst [vmem:[%s421 + $0x130] sm:$0xff] %v4879
          %4944 = vst [vmem:[%s421 + $0x138] sm:$0xff] %v4880
          %4945 = vst [vmem:[%s421 + $0x140] sm:$0xff] %v4881
          %4946 = vst [vmem:[%s421 + $0x148] sm:$0xff] %v4882
          %4947 = vst [vmem:[%s421 + $0x150] sm:$0xff] %v4883
          %4948 = vst [vmem:[%s421 + $0x158] sm:$0xff] %v4884
          %4949 = vst [vmem:[%s421 + $0x160] sm:$0xff] %v4885
          %4950 = vst [vmem:[%s421 + $0x168] sm:$0xff] %v4886
          %4951 = vst [vmem:[%s421 + $0x170] sm:$0xff] %v4887
          %4952 = vst [vmem:[%s421 + $0x178] sm:$0xff] %v4888
          %4953 = vst [vmem:[%s421 + $0x180] sm:$0xff] %v4889
          %4954 = vst [vmem:[%s421 + $0x188] sm:$0xff] %v4890
          %4955 = vst [vmem:[%s421 + $0x190] sm:$0xff] %v4891
          %4956 = vst [vmem:[%s421 + $0x198] sm:$0xff] %v4892
          %4957 = vst [vmem:[%s421 + $0x1a0] sm:$0xff] %v4893
          %4958 = vst [vmem:[%s421 + $0x1a8] sm:$0xff] %v4894
          %4959 = vst [vmem:[%s421 + $0x1b0] sm:$0xff] %v4895
          %4960 = vst [vmem:[%s421 + $0x1b8] sm:$0xff] %v4896
          %4961 = vst [vmem:[%s421 + $0x1c0] sm:$0xff] %v4897
          %4962 = vst [vmem:[%s421 + $0x1c8] sm:$0xff] %v4898
          %4963 = vst [vmem:[%s421 + $0x1d0] sm:$0xff] %v4899
          %4964 = vst [vmem:[%s421 + $0x1d8] sm:$0xff] %v4900
          %4965 = vst [vmem:[%s421 + $0x1e0] sm:$0xff] %v4901
          %4966 = vst [vmem:[%s421 + $0x1e8] sm:$0xff] %v4902
          %4967 = vst [vmem:[%s421 + $0x1f0] sm:$0xff] %v4903
          %4968 = vst [vmem:[%s421 + $0x1f8] sm:$0xff] %v4904
        $region64: #{tpu_custom_call.1} parent=39 // pred_fallthru
          _
        %s4969 = sand.u32 %s167, 1
        %s4970 = scalar_lea.sflag [#allocation4], %s4969
        %s4971 = sand.u32 %s167, 1
        %s4972 = smul.addr %s4971, 512
        %s4973 = scalar_lea.vmem [#allocation9], %s4972
        %s4974 = sand.u32 %s193, 1
        %s4975 = scalar_lea.sflag [#allocation11], %s4974
        %s4976 = sand.u32 %s193, 1
        %s4977 = smul.addr %s4976, 512
        %s4978 = scalar_lea.vmem [#allocation10], %s4977
        // Predicated region
        $region65: #{tpu_custom_call.1} parent=39 // pred_check
          %p4979 = pneg %p177
        $region66: #{tpu_custom_call.1} parent=39 // pred_check_branch
          %4981 = sbr.rel (%p4979) target = $region68
        $region67: #{tpu_custom_call.1} parent=39 // pred_region
          %s4982 = smul.u32 4, %s32
          %4984 = vsyncadd %s4970, 0
          %s4985 = smul.addr %s4982, 16
          %s4986 = smul.addr %s4985, 8
          %s4987 = scalar_lea.hbm %s5, %s4986
          %s4988 = sshll.u32 %s4973, 4
          %s4989 = int_to_ptr.vmem [resolvable:$true] %s4988
          %s4990 = sshll.u32 %s4987, 4
          %s4991 = int_to_ptr.hbm [resolvable:$true] %s4990
          %4996 = dma.vmem_to_hbm [thread:$0]  %s4989, 8192, %s4991, %s4970, 128, 128, 8
        $region68: #{tpu_custom_call.1} parent=39 // pred_fallthru
          _
        // Predicated region
        $region69: #{tpu_custom_call.1} parent=39 // pred_check
          %p4997 = pneg %p203
        $region70: #{tpu_custom_call.1} parent=39 // pred_check_branch
          %4999 = sbr.rel (%p4997) target = $region72
        $region71: #{tpu_custom_call.1} parent=39 // pred_region
          %s5000 = smul.u32 4, %s32
          %5002 = vsyncadd %s4975, 0
          %s5003 = smul.addr %s5000, 16
          %s5004 = smul.addr %s5003, 8
          %s5005 = scalar_lea.hbm %s6, %s5004
          %s5006 = sshll.u32 %s4978, 4
          %s5007 = int_to_ptr.vmem [resolvable:$true] %s5006
          %s5008 = sshll.u32 %s5005, 4
          %s5009 = int_to_ptr.hbm [resolvable:$true] %s5008
          %5014 = dma.vmem_to_hbm [thread:$0]  %s5007, 8192, %s5009, %s4975, 128, 128, 8
        $region72: #{tpu_custom_call.1} parent=39 // pred_fallthru
          _
      $region40: #{tpu_custom_call.1} parent=5 // pred_fallthru
        _
      %p5015 = scmp.le.s32.totalorder 2, %s23
      // Predicated region
      $region73: #{tpu_custom_call.1} parent=5 // pred_check
        %p5016 = pneg %p5015
      $region74: #{tpu_custom_call.1} parent=5 // pred_check_branch
        %5018 = sbr.rel (%p5016) target = $region76
      $region75: #{tpu_custom_call.1} parent=5 // pred_region
        %s5019 = ssub.s32 %s23, 2
        // Predicated region
        $region77: #{tpu_custom_call.1} parent=75 // pred_check
          %p5020 = pneg %p183
        $region78: #{tpu_custom_call.1} parent=75 // pred_check_branch
          %5022 = sbr.rel (%p5020) target = $region80
        $region79: #{tpu_custom_call.1} parent=75 // pred_region
          %s5023 = sand.u32 %s168, 1
          %s5024 = scalar_lea.sflag [#allocation4], %s5023
          %s5025 = sand.u32 %s168, 1
          %s5026 = smul.addr %s5025, 512
          %s5027 = scalar_lea.vmem [#allocation9], %s5026
          %5029 = dma.done %s5024, 8192
        $region80: #{tpu_custom_call.1} parent=75 // pred_fallthru
          _
        // Predicated region
        $region81: #{tpu_custom_call.1} parent=75 // pred_check
          %p5030 = pneg %p209
        $region82: #{tpu_custom_call.1} parent=75 // pred_check_branch
          %5032 = sbr.rel (%p5030) target = $region84
        $region83: #{tpu_custom_call.1} parent=75 // pred_region
          %s5033 = sand.u32 %s194, 1
          %s5034 = scalar_lea.sflag [#allocation11], %s5033
          %s5035 = sand.u32 %s194, 1
          %s5036 = smul.addr %s5035, 512
          %s5037 = scalar_lea.vmem [#allocation10], %s5036
          %5039 = dma.done %s5034, 8192
        $region84: #{tpu_custom_call.1} parent=75 // pred_fallthru
          _
      $region76: #{tpu_custom_call.1} parent=5 // pred_fallthru
        _
    $region6: #{tpu_custom_call.1} parent=1 // loop_footer
      %s27 = sadd.s32 1, %s23
    $region7: #{tpu_custom_call.1} parent=1 // loop_footer_branch
      %22 = sbr.rel target = $region3
    $region8: #{tpu_custom_call.1} parent=1 // loop_exit
      _
    %5040 = vsyncpa [#allocation3], 1
    %s5041 = scalar_lea.sflag [#allocation3], 1
    %5042 = vsyncpa %s5041, 1
    %5043 = vsyncpa [#allocation6], 1
    %5044 = vsyncpa [#allocation4], 1
    %s5045 = scalar_lea.sflag [#allocation4], 1
    %5046 = vsyncpa %s5045, 1
    %5047 = vsyncpa [#allocation11], 1
    %s5048 = scalar_lea.sflag [#allocation11], 1
    %5049 = vsyncpa %s5048, 1

</llo_original>
